<compile_context>
chip_gen: v6e
topology: v6e:2x2x1
jax: 0.10.0
libtpu: 0.0.40
codegen_flags: <defaults>
</compile_context>

<pallas_src>
import math

import jax
import jax.numpy as jnp
from jax.experimental import pallas as pl
from jax.experimental.pallas import tpu as pltpu

NORM_EPS = 1e-5
ROPE_THETA = 10000.0
D_CONV = 4
_BF16 = jnp.bfloat16


# ----------------------------- shared helpers ------------------------------

def _rmsnorm(x, w, eps):
    var = jnp.mean(x * x, axis=-1, keepdims=True)
    return w * (x * jax.lax.rsqrt(var + eps))


def _rep_spec(shape):
    # Whole-array block, constant block index -> fetched once across the grid.
    return pl.BlockSpec(shape, lambda b: (0,) * len(shape))


# ------------------------------ Pallas kernels -----------------------------

def _make_attn_stage_kernel(n_layers, num_heads, eps, with_routing):
    def kernel(*refs):
        if with_routing:
            (x_ref, cos_ref, sin_ref, ln1_ref, wqkv_ref, wo_ref,
             ln2_ref, wgu_ref, wd_ref, wb_ref, bb_ref,
             o_ref, route_ref) = refs
        else:
            (x_ref, cos_ref, sin_ref, ln1_ref, wqkv_ref, wo_ref,
             ln2_ref, wgu_ref, wd_ref, o_ref) = refs

        x = x_ref[0]                                  # (L, D) f32
        L, D = x.shape
        cos = cos_ref[...]                            # (L, hd) f32
        sin = sin_ref[...]
        hd = cos.shape[1]
        half = hd // 2
        ghd = 3 * hd                                  # per-head [q|k|v] width
        scale = 1.0 / math.sqrt(hd)

        if with_routing:
            # Routing logits on the VPU: an MXU matvec with N=1 fills <1% of the
            # array, a cross-lane reduction is cheaper.  Output is unused
            # downstream, exactly like the reference module.
            logits = jnp.sum(x * wb_ref[...], axis=-1, keepdims=True) + bb_ref[...]
            route_ref[0] = jax.nn.sigmoid(logits)     # (L, 1)

        # Causal mask shared by every layer / head.
        row = jax.lax.broadcasted_iota(jnp.int32, (L, L), 0)
        col = jax.lax.broadcasted_iota(jnp.int32, (L, L), 1)
        causal = jnp.where(col > row, jnp.float32(-jnp.inf), jnp.float32(0.0))[None]

        # RoPE terms (layer-invariant).  rotate_half(t) = [-t2, t1], so
        # t_rot = [t1*c1 - t2*s1, t2*c2 + t1*s2].  The 1/sqrt(hd) score scale is
        # folded into the q-side cos/sin (every q_rot term carries cos or sin),
        # so the (H,L,L) score tensor never sees a separate scale multiply.
        c1 = cos[:, :half][None]
        c2 = cos[:, half:][None]
        s1 = sin[:, :half][None]
        s2 = sin[:, half:][None]
        c1q, c2q, s1q, s2q = c1 * scale, c2 * scale, s1 * scale, s2 * scale

        for li in range(n_layers):
            h = _rmsnorm(x, ln1_ref[li], eps)
            # Head-major fused QKV: columns are [h0:(q|k|v), h1:(q|k|v), ...].
            qkv = jnp.dot(h.astype(_BF16), wqkv_ref[li],
                          preferred_element_type=jnp.float32)        # (L, 3D)
            # One lanes->heads shuffle per layer (previously 3 slice+stack sets).
            qkv_h = jnp.stack(
                [qkv[:, hh * ghd:(hh + 1) * ghd] for hh in range(num_heads)],
                axis=0)                                              # (H, L, 3hd)
            q = qkv_h[..., :hd]
            k = qkv_h[..., hd:2 * hd]
            v = qkv_h[..., 2 * hd:]

            q1, q2 = q[..., :half], q[..., half:]
            k1, k2 = k[..., :half], k[..., half:]
            qr = jnp.concatenate([q1 * c1q - q2 * s1q,
                                  q2 * c2q + q1 * s2q], axis=-1)     # pre-scaled
            kr = jnp.concatenate([k1 * c1 - k2 * s1,
                                  k2 * c2 + k1 * s2], axis=-1)

            # Single full-head-dim score contraction (K=hd, not 2x K=hd/2).
            s = jnp.einsum('hqd,hkd->hqk', qr.astype(_BF16), kr.astype(_BF16),
                           preferred_element_type=jnp.float32)       # (H, L, L)
            s = s + causal
            m = jnp.max(s, axis=-1, keepdims=True)
            e = jnp.exp(s - m)
            p = e * pl.reciprocal(jnp.sum(e, axis=-1, keepdims=True), approx=True)

            o = jnp.einsum('hqk,hkd->hqd', p.astype(_BF16), v.astype(_BF16),
                           preferred_element_type=jnp.float32)       # (H, L, hd)
            # Concat heads back onto lanes, then a single (L,D)@(D,D) o_proj
            # matmul: the head reduction happens inside the MXU K=D contraction.
            attn_cat = jnp.concatenate([o[hh] for hh in range(num_heads)],
                                       axis=-1)                      # (L, D)
            attn = jnp.dot(attn_cat.astype(_BF16), wo_ref[li],
                           preferred_element_type=jnp.float32)       # (L, D)
            h1 = x + attn

            h2 = _rmsnorm(h1, ln2_ref[li], eps)
            gu = jnp.dot(h2.astype(_BF16), wgu_ref[li],
                         preferred_element_type=jnp.float32)         # (L, 2I)
            inter = gu.shape[1] // 2
            act = jax.nn.silu(gu[:, :inter]) * gu[:, inter:]
            mlp = jnp.dot(act.astype(_BF16), wd_ref[li],
                          preferred_element_type=jnp.float32)
            x = h1 + mlp

        o_ref[0] = x

    return kernel


def _make_mamba_stage_kernel(n_layers, eps, with_routing):
    def kernel(*refs):
        if with_routing:
            (x_ref, ln1_ref, w_in_ref, wconv_ref, bconv_ref, w_out_ref,
             ln2_ref, wgu_ref, wd_ref, wb_ref, bb_ref,
             o_ref, route_ref) = refs
        else:
            (x_ref, ln1_ref, w_in_ref, wconv_ref, bconv_ref, w_out_ref,
             ln2_ref, wgu_ref, wd_ref, o_ref) = refs

        x = x_ref[0]                                  # (L, D) f32
        L, D = x.shape
        d_conv = wconv_ref.shape[1]
        d_inner = wconv_ref.shape[2]

        if with_routing:
            logits = jnp.sum(x * wb_ref[...], axis=-1, keepdims=True) + bb_ref[...]
            route_ref[0] = jax.nn.sigmoid(logits)

        # Zero blocks used for the causal left-padding of the depthwise conv
        # (layer-invariant, hoisted out of the layer loop).
        zero_rows = [jnp.zeros((shift, d_inner), jnp.float32)
                     for shift in range(1, d_conv)]

        for li in range(n_layers):
            h = _rmsnorm(x, ln1_ref[li], eps)
            xz = jnp.dot(h.astype(_BF16), w_in_ref[li],
                         preferred_element_type=jnp.float32)         # (L, 2*d_inner)
            xc = xz[:, :d_inner]
            z = xz[:, d_inner:]

            # Causal depthwise conv1d: y[t] = b + sum_k w[k] * xc[t-(d_conv-1)+k].
            # Shifted operands are built in-register (zero-prepend + aligned
            # slice) — no VMEM scratch round-trip, no unaligned reloads.
            w_l = wconv_ref[li]                                      # (d_conv, d_inner)
            y = xc * w_l[d_conv - 1:d_conv, :] + bconv_ref[li]
            for kk in range(d_conv - 1):
                shift = d_conv - 1 - kk
                shifted = jnp.concatenate(
                    [zero_rows[shift - 1], xc[:L - shift, :]], axis=0)
                y = y + shifted * w_l[kk:kk + 1, :]

            y = jax.nn.silu(y) * jax.nn.silu(z)
            mix = jnp.dot(y.astype(_BF16), w_out_ref[li],
                          preferred_element_type=jnp.float32)
            h1 = x + mix

            h2 = _rmsnorm(h1, ln2_ref[li], eps)
            gu = jnp.dot(h2.astype(_BF16), wgu_ref[li],
                         preferred_element_type=jnp.float32)
            inter = gu.shape[1] // 2
            act = jax.nn.silu(gu[:, :inter]) * gu[:, inter:]
            mlp = jnp.dot(act.astype(_BF16), wd_ref[li],
                          preferred_element_type=jnp.float32)
            x = h1 + mlp

        o_ref[0] = x

    return kernel


# ------------------------------ Python wrappers -----------------------------

_COMPILER_PARAMS = pltpu.CompilerParams(
    dimension_semantics=("parallel",),
    vmem_limit_bytes=32 * 1024 * 1024,
)


def _bytes_of(inputs, out_shapes):
    total = 0
    for a in inputs:
        total += int(a.size) * a.dtype.itemsize
    for s in out_shapes:
        total += int(math.prod(s.shape)) * jnp.dtype(s.dtype).itemsize
    return total


def attention_stage(x, params, cos, sin, *, num_heads, eps=NORM_EPS):
    B, L, D = x.shape
    layers = params["layers"]
    n_layers = len(layers)
    head_dim = D // num_heads
    inter = layers[0]["wg"].shape[1]

    ln1 = jnp.stack([lp["ln1"] for lp in layers])                      # (nl, 1, D)
    ln2 = jnp.stack([lp["ln2"] for lp in layers])

    def fuse_qkv_headmajor(lp):
        # Columns ordered head-major: [h0:(q|k|v), h1:(q|k|v), ...].
        qh = lp["wq"].reshape(D, num_heads, head_dim)
        kh = lp["wk"].reshape(D, num_heads, head_dim)
        vh = lp["wv"].reshape(D, num_heads, head_dim)
        return jnp.concatenate([qh, kh, vh], axis=-1).reshape(D, 3 * D)

    wqkv = jnp.stack([fuse_qkv_headmajor(lp) for lp in layers]).astype(_BF16)
    wo = jnp.stack([lp["wo"] for lp in layers]).astype(_BF16)          # (nl, D, D)
    wgu = jnp.stack([jnp.concatenate([lp["wg"], lp["wu"]], axis=1)
                     for lp in layers]).astype(_BF16)                  # (nl, D, 2I)
    wd = jnp.stack([lp["wd"] for lp in layers]).astype(_BF16)          # (nl, I, D)

    routing = params.get("routing")
    with_routing = routing is not None

    inputs = [x, cos, sin, ln1, wqkv, wo, ln2, wgu, wd]
    in_specs = [
        pl.BlockSpec((1, L, D), lambda b: (b, 0, 0)),
        _rep_spec((L, head_dim)),
        _rep_spec((L, head_dim)),
        _rep_spec((n_layers, 1, D)),
        _rep_spec((n_layers, D, 3 * D)),
        _rep_spec((n_layers, D, D)),
        _rep_spec((n_layers, 1, D)),
        _rep_spec((n_layers, D, 2 * inter)),
        _rep_spec((n_layers, inter, D)),
    ]
    out_shapes = [jax.ShapeDtypeStruct((B, L, D), x.dtype)]
    out_specs = [pl.BlockSpec((1, L, D), lambda b: (b, 0, 0))]
    if with_routing:
        inputs += [routing["wb"].reshape(1, D), routing["bb"]]
        in_specs += [_rep_spec((1, D)), _rep_spec((1, 1))]
        out_shapes.append(jax.ShapeDtypeStruct((B, L, 1), x.dtype))
        out_specs.append(pl.BlockSpec((1, L, 1), lambda b: (b, 0, 0)))

    flops = 2 * B * n_layers * (
        L * D * 3 * D                         # fused QKV
        + 2 * num_heads * L * L * head_dim    # scores + PV
        + L * D * D                           # o_proj (head sum folded in)
        + L * D * 2 * inter                   # gate/up
        + L * inter * D)                      # down
    transcendentals = B * n_layers * (num_heads * L * L + L * inter)
    cost = pl.CostEstimate(flops=flops, transcendentals=transcendentals,
                           bytes_accessed=_bytes_of(inputs, out_shapes))

    kernel = _make_attn_stage_kernel(n_layers, num_heads, eps, with_routing)
    outs = pl.pallas_call(
        kernel,
        out_shape=tuple(out_shapes),
        grid=(B,),
        in_specs=in_specs,
        out_specs=tuple(out_specs),
        compiler_params=_COMPILER_PARAMS,
        cost_estimate=cost,
    )(*inputs)
    boundary = outs[1][..., 0] if with_routing else None
    return outs[0], boundary


def mamba_stage(x, params, *, eps=NORM_EPS):
    B, L, D = x.shape
    layers = params["layers"]
    n_layers = len(layers)
    d_inner = layers[0]["w_in"].shape[1] // 2
    d_conv = layers[0]["wconv"].shape[0]
    inter = layers[0]["wg"].shape[1]

    ln1 = jnp.stack([lp["ln1"] for lp in layers])                      # (nl, 1, D)
    ln2 = jnp.stack([lp["ln2"] for lp in layers])
    w_in = jnp.stack([lp["w_in"] for lp in layers]).astype(_BF16)      # (nl, D, 2*di)
    wconv = jnp.stack([lp["wconv"] for lp in layers])                  # (nl, dc, di)
    bconv = jnp.stack([lp["bconv"] for lp in layers])                  # (nl, 1, di)
    w_out = jnp.stack([lp["w_out"] for lp in layers]).astype(_BF16)    # (nl, di, D)
    wgu = jnp.stack([jnp.concatenate([lp["wg"], lp["wu"]], axis=1)
                     for lp in layers]).astype(_BF16)                  # (nl, D, 2I)
    wd = jnp.stack([lp["wd"] for lp in layers]).astype(_BF16)          # (nl, I, D)

    routing = params.get("routing")
    with_routing = routing is not None

    inputs = [x, ln1, w_in, wconv, bconv, w_out, ln2, wgu, wd]
    in_specs = [
        pl.BlockSpec((1, L, D), lambda b: (b, 0, 0)),
        _rep_spec((n_layers, 1, D)),
        _rep_spec((n_layers, D, 2 * d_inner)),
        _rep_spec((n_layers, d_conv, d_inner)),
        _rep_spec((n_layers, 1, d_inner)),
        _rep_spec((n_layers, d_inner, D)),
        _rep_spec((n_layers, 1, D)),
        _rep_spec((n_layers, D, 2 * inter)),
        _rep_spec((n_layers, inter, D)),
    ]
    out_shapes = [jax.ShapeDtypeStruct((B, L, D), x.dtype)]
    out_specs = [pl.BlockSpec((1, L, D), lambda b: (b, 0, 0))]
    if with_routing:
        inputs += [routing["wb"].reshape(1, D), routing["bb"]]
        in_specs += [_rep_spec((1, D)), _rep_spec((1, 1))]
        out_shapes.append(jax.ShapeDtypeStruct((B, L, 1), x.dtype))
        out_specs.append(pl.BlockSpec((1, L, 1), lambda b: (b, 0, 0)))

    flops = 2 * B * n_layers * (
        L * D * 2 * d_inner                   # in_proj
        + L * d_conv * d_inner                # depthwise conv
        + L * d_inner * D                     # out_proj
        + L * D * 2 * inter                   # gate/up
        + L * inter * D)                      # down
    transcendentals = B * n_layers * (2 * L * d_inner + L * inter)
    cost = pl.CostEstimate(flops=flops, transcendentals=transcendentals,
                           bytes_accessed=_bytes_of(inputs, out_shapes))

    kernel = _make_mamba_stage_kernel(n_layers, eps, with_routing)
    outs = pl.pallas_call(
        kernel,
        out_shape=tuple(out_shapes),
        grid=(B,),
        in_specs=in_specs,
        out_specs=tuple(out_specs),
        compiler_params=_COMPILER_PARAMS,
        cost_estimate=cost,
    )(*inputs)
    boundary = outs[1][..., 0] if with_routing else None
    return outs[0], boundary


def hnet_stage_forward(hidden_states, stage_params, *, layer_type, num_heads,
                       cos, sin):
    """Pallas implementation of HNetStage.forward (attention_mask=None -> causal)."""
    if layer_type == "attention":
        out, _boundary_prob = attention_stage(hidden_states, stage_params,
                                              cos, sin, num_heads=num_heads)
    elif layer_type == "mamba":
        out, _boundary_prob = mamba_stage(hidden_states, stage_params)
    else:
        raise ValueError(layer_type)
    # boundary prob is computed in-kernel (when routing exists) but, exactly like
    # the reference module, it is not used downstream.
    return out


# --------------------------- pure-JAX reference -----------------------------

def _attention_layer_ref(x, cos, sin, p, num_heads, eps=NORM_EPS):
    B, L, D = x.shape
    hd = D // num_heads
    h = _rmsnorm(x, p["ln1"], eps)

    def split_heads(t):
        return t.reshape(B, L, num_heads, hd).transpose(0, 2, 1, 3)

    q = split_heads(h @ p["wq"])
    k = split_heads(h @ p["wk"])
    v = split_heads(h @ p["wv"])

    def rot_half(t):
        return jnp.concatenate([-t[..., hd // 2:], t[..., :hd // 2]], axis=-1)

    q = q * cos + rot_half(q) * sin
    k = k * cos + rot_half(k) * sin
    s = jnp.einsum("bhqd,bhkd->bhqk", q, k) / math.sqrt(hd)
    causal = jnp.where(jnp.triu(jnp.ones((L, L), bool), 1),
                       jnp.float32(-jnp.inf), jnp.float32(0.0))
    a = jax.nn.softmax(s + causal, axis=-1)
    o = jnp.einsum("bhqk,bhkd->bhqd", a, v).transpose(0, 2, 1, 3).reshape(B, L, D)
    h1 = x + o @ p["wo"]
    h2 = _rmsnorm(h1, p["ln2"], eps)
    return h1 + (jax.nn.silu(h2 @ p["wg"]) * (h2 @ p["wu"])) @ p["wd"]


def _mamba_layer_ref(x, p, d_conv=D_CONV, eps=NORM_EPS):
    B, L, D = x.shape
    d_inner = p["w_in"].shape[1] // 2
    h = _rmsnorm(x, p["ln1"], eps)
    xz = h @ p["w_in"]
    xc, z = xz[..., :d_inner], xz[..., d_inner:]
    xp = jnp.pad(xc, ((0, 0), (d_conv - 1, 0), (0, 0)))
    y = sum(xp[:, k:k + L, :] * p["wconv"][k] for k in range(d_conv)) + p["bconv"]
    y = jax.nn.silu(y) * jax.nn.silu(z)
    h1 = x + y @ p["w_out"]
    h2 = _rmsnorm(h1, p["ln2"], eps)
    return h1 + (jax.nn.silu(h2 @ p["wg"]) * (h2 @ p["wu"])) @ p["wd"]


def _stage_ref(x, stage_params, layer_type, num_heads, cos, sin):
    for lp in stage_params["layers"]:
        if layer_type == "attention":
            x = _attention_layer_ref(x, cos, sin, lp, num_heads)
        else:
            x = _mamba_layer_ref(x, lp)
    return x


# ------------------------------- param init ---------------------------------

def _init_layer_params(key, layer_type, D, I, d_inner, d_conv=D_CONV, scale=0.05):
    ks = jax.random.split(key, 9)
    p = {
        "ln1": jnp.ones((1, D), jnp.float32),
        "ln2": jnp.ones((1, D), jnp.float32),
        "wg": jax.random.normal(ks[0], (D, I), jnp.float32) * scale,
        "wu": jax.random.normal(ks[1], (D, I), jnp.float32) * scale,
        "wd": jax.random.normal(ks[2], (I, D), jnp.float32) * scale,
    }
    if layer_type == "attention":
        p["wq"] = jax.random.normal(ks[3], (D, D), jnp.float32) * scale
        p["wk"] = jax.random.normal(ks[4], (D, D), jnp.float32) * scale
        p["wv"] = jax.random.normal(ks[5], (D, D), jnp.float32) * scale
        p["wo"] = jax.random.normal(ks[6], (D, D), jnp.float32) * scale
    else:
        p["w_in"] = jax.random.normal(ks[3], (D, 2 * d_inner), jnp.float32) * scale
        p["wconv"] = jax.random.normal(ks[4], (d_conv, d_inner), jnp.float32) * scale
        p["bconv"] = jax.random.normal(ks[5], (1, d_inner), jnp.float32) * scale
        p["w_out"] = jax.random.normal(ks[6], (d_inner, D), jnp.float32) * scale
    return p


# ----------------------------------- main ------------------------------------

if __name__ == "__main__":
    # Small config consistent with HNetConfig:
    #   hidden_size=32, num_attention_heads=4, intermediate_size=64,
    #   stage_types include 'mamba' and 'attention', use_routing=True.
    B, L, D, H, I = 2, 8, 32, 4, 64
    hd = D // H
    d_inner = 2 * D
    n_layers = 2

    key = jax.random.PRNGKey(0)
    k_x, k_p = jax.random.split(key)
    x = jax.random.normal(k_x, (B, L, D), jnp.float32)

    # RoPE cos/sin cache (HNetRotaryEmbedding).
    inv_freq = 1.0 / (ROPE_THETA ** (jnp.arange(0, hd, 2, dtype=jnp.float32) / hd))
    t = jnp.arange(L, dtype=jnp.float32)
    freqs = jnp.outer(t, inv_freq)
    emb = jnp.concatenate([freqs, freqs], axis=-1)
    cos, sin = jnp.cos(emb), jnp.sin(emb)

    keys = jax.random.split(k_p, 2 * n_layers + 2)

    # Attention stage with routing (stage_idx > 0).
    attn_stage_params = {
        "layers": [_init_layer_params(keys[i], "attention", D, I, d_inner)
                   for i in range(n_layers)],
        "routing": {
            "wb": jax.random.normal(keys[2 * n_layers], (D, 1), jnp.float32) * 0.05,
            "bb": jax.random.normal(keys[2 * n_layers + 1], (1, 1), jnp.float32) * 0.05,
        },
    }
    # Mamba stage, no routing (stage_idx == 0).
    mamba_stage_params = {
        "layers": [_init_layer_params(keys[n_layers + i], "mamba", D, I, d_inner)
                   for i in range(n_layers)],
        "routing": None,
    }

    out_attn = hnet_stage_forward(x, attn_stage_params, layer_type="attention",
                                  num_heads=H, cos=cos, sin=sin)
    out_mamba = hnet_stage_forward(x, mamba_stage_params, layer_type="mamba",
                                   num_heads=H, cos=cos, sin=sin)
    jax.block_until_ready((out_attn, out_mamba))

    # Verify against a pure-JAX reference of the PyTorch semantics
    # (kernel uses bf16 MXU operands + approx reciprocal, hence the tolerance).
    ref_attn = _stage_ref(x, attn_stage_params, "attention", H, cos, sin)
    ref_mamba = _stage_ref(x, mamba_stage_params, "mamba", H, cos, sin)
    assert out_attn.shape == (B, L, D) and out_mamba.shape == (B, L, D)
    err_a = float(jnp.max(jnp.abs(out_attn - ref_attn)))
    err_m = float(jnp.max(jnp.abs(out_mamba - ref_mamba)))
    assert err_a < 2e-2, err_a
    assert err_m < 2e-2, err_m

    print("KERNEL_OK")
</pallas_src>

<mosaic_0001>
module attributes {stable_mosaic.version = 11 : i64} {
  func.func @kernel(%arg0: i32, %arg1: memref<1x8x32xf32, #tpu.memory_space<vmem>>, %arg2: memref<8x8xf32, #tpu.memory_space<vmem>>, %arg3: memref<8x8xf32, #tpu.memory_space<vmem>>, %arg4: memref<2x1x32xf32, #tpu.memory_space<vmem>>, %arg5: memref<2x32x96xbf16, #tpu.memory_space<vmem>>, %arg6: memref<2x32x32xbf16, #tpu.memory_space<vmem>>, %arg7: memref<2x1x32xf32, #tpu.memory_space<vmem>>, %arg8: memref<2x32x128xbf16, #tpu.memory_space<vmem>>, %arg9: memref<2x64x32xbf16, #tpu.memory_space<vmem>>, %arg10: memref<1x32xf32, #tpu.memory_space<vmem>>, %arg11: memref<1x1xf32, #tpu.memory_space<vmem>>, %arg12: memref<1x8x32xf32, #tpu.memory_space<vmem>>, %arg13: memref<1x8x1xf32, #tpu.memory_space<vmem>>) attributes {dimension_semantics = [#tpu.dimension_semantics<parallel>], iteration_bounds = array<i64: 2>, scalar_prefetch = 0 : i64, scratch_operands = 0 : i64, tpu.core_type = #tpu.core_type<tc>, window_params = [{transform_indices = @transform_0, window_bounds = array<i64: 1, 8, 32>}, {pipeline_mode = #tpu.pipeline_mode<synchronous>, transform_indices = @transform_1, window_bounds = array<i64: 8, 8>}, {pipeline_mode = #tpu.pipeline_mode<synchronous>, transform_indices = @transform_2, window_bounds = array<i64: 8, 8>}, {pipeline_mode = #tpu.pipeline_mode<synchronous>, transform_indices = @transform_3, window_bounds = array<i64: 2, 1, 32>}, {pipeline_mode = #tpu.pipeline_mode<synchronous>, transform_indices = @transform_4, window_bounds = array<i64: 2, 32, 96>}, {pipeline_mode = #tpu.pipeline_mode<synchronous>, transform_indices = @transform_5, window_bounds = array<i64: 2, 32, 32>}, {pipeline_mode = #tpu.pipeline_mode<synchronous>, transform_indices = @transform_6, window_bounds = array<i64: 2, 1, 32>}, {pipeline_mode = #tpu.pipeline_mode<synchronous>, transform_indices = @transform_7, window_bounds = array<i64: 2, 32, 128>}, {pipeline_mode = #tpu.pipeline_mode<synchronous>, transform_indices = @transform_8, window_bounds = array<i64: 2, 64, 32>}, {pipeline_mode = #tpu.pipeline_mode<synchronous>, transform_indices = @transform_9, window_bounds = array<i64: 1, 32>}, {pipeline_mode = #tpu.pipeline_mode<synchronous>, transform_indices = @transform_10, window_bounds = array<i64: 1, 1>}, {transform_indices = @transform_11, window_bounds = array<i64: 1, 8, 32>}, {transform_indices = @transform_12, window_bounds = array<i64: 1, 8, 1>}]} {
    %c0 = arith.constant 0 : index
    %c0_0 = arith.constant 0 : index
    %c0_1 = arith.constant 0 : index
    %0 = vector.load %arg1[%c0, %c0_0, %c0_1] : memref<1x8x32xf32, #tpu.memory_space<vmem>>, vector<1x8x32xf32>
    %1 = vector.shape_cast %0 : vector<1x8x32xf32> to vector<8x32xf32>
    %c0_2 = arith.constant 0 : index
    %c0_3 = arith.constant 0 : index
    %2 = vector.load %arg2[%c0_2, %c0_3] : memref<8x8xf32, #tpu.memory_space<vmem>>, vector<8x8xf32>
    %c0_4 = arith.constant 0 : index
    %c0_5 = arith.constant 0 : index
    %3 = vector.load %arg3[%c0_4, %c0_5] : memref<8x8xf32, #tpu.memory_space<vmem>>, vector<8x8xf32>
    %c0_6 = arith.constant 0 : index
    %c0_7 = arith.constant 0 : index
    %4 = vector.load %arg10[%c0_6, %c0_7] : memref<1x32xf32, #tpu.memory_space<vmem>>, vector<1x32xf32>
    %5 = vector.broadcast %4 : vector<1x32xf32> to vector<8x32xf32>
    %6 = arith.mulf %1, %5 : vector<8x32xf32>
    %cst = arith.constant dense<0.000000e+00> : vector<8xf32>
    %7 = vector.multi_reduction <add>, %6, %cst [1] : vector<8x32xf32> to vector<8xf32>
    %8 = vector.shape_cast %7 : vector<8xf32> to vector<8x1xf32>
    %c0_8 = arith.constant 0 : index
    %c0_9 = arith.constant 0 : index
    %9 = vector.load %arg11[%c0_8, %c0_9] : memref<1x1xf32, #tpu.memory_space<vmem>>, vector<1x1xf32>
    %10 = vector.broadcast %9 : vector<1x1xf32> to vector<8x1xf32>
    %11 = arith.addf %8, %10 : vector<8x1xf32>
    %12 = arith.negf %11 : vector<8x1xf32>
    %13 = math.exp %12 : vector<8x1xf32>
    %cst_10 = arith.constant 1.000000e+00 : f32
    %14 = vector.broadcast %cst_10 : f32 to vector<8x1xf32>
    %15 = arith.addf %14, %13 : vector<8x1xf32>
    %16 = arith.divf %14, %15 : vector<8x1xf32>
    %c0_11 = arith.constant 0 : index
    %c0_12 = arith.constant 0 : index
    %c0_13 = arith.constant 0 : index
    %17 = vector.load %arg13[%c0_11, %c0_12, %c0_13] : memref<1x8x1xf32, #tpu.memory_space<vmem>>, vector<1x8x1xf32>
    %18 = vector.shape_cast %17 : vector<1x8x1xf32> to vector<8x1xf32>
    %19 = vector.shape_cast %16 : vector<8x1xf32> to vector<1x8x1xf32>
    tpu.vector_store %arg13[%c0_11, %c0_12, %c0_13], %19 {strides = array<i32>} : memref<1x8x1xf32, #tpu.memory_space<vmem>>, vector<1x8x1xf32>,
    %20 = tpu.iota {dimensions = array<i32: 0>} : vector<8x8xi32>
    %21 = tpu.iota {dimensions = array<i32: 1>} : vector<8x8xi32>
    %22 = arith.cmpi sgt, %21, %20 : vector<8x8xi32>
    %cst_14 = arith.constant 0xFF800000 : f32
    %cst_15 = arith.constant 0.000000e+00 : f32
    %23 = vector.broadcast %cst_14 : f32 to vector<8x8xf32>
    %24 = vector.broadcast %cst_15 : f32 to vector<8x8xf32>
    %25 = arith.select %22, %23, %24 : vector<8x8xi1>, vector<8x8xf32>
    %26 = vector.shape_cast %25 : vector<8x8xf32> to vector<1x8x8xf32>
    %27 = vector.extract_strided_slice %2 {offsets = [0, 0], sizes = [8, 4], strides = [1, 1]} : vector<8x8xf32> to vector<8x4xf32>
    %28 = vector.shape_cast %27 : vector<8x4xf32> to vector<1x8x4xf32>
    %29 = vector.extract_strided_slice %2 {offsets = [0, 4], sizes = [8, 4], strides = [1, 1]} : vector<8x8xf32> to vector<8x4xf32>
    %30 = vector.shape_cast %29 : vector<8x4xf32> to vector<1x8x4xf32>
    %31 = vector.extract_strided_slice %3 {offsets = [0, 0], sizes = [8, 4], strides = [1, 1]} : vector<8x8xf32> to vector<8x4xf32>
    %32 = vector.shape_cast %31 : vector<8x4xf32> to vector<1x8x4xf32>
    %33 = vector.extract_strided_slice %3 {offsets = [0, 4], sizes = [8, 4], strides = [1, 1]} : vector<8x8xf32> to vector<8x4xf32>
    %34 = vector.shape_cast %33 : vector<8x4xf32> to vector<1x8x4xf32>
    %cst_16 = arith.constant 0.353553385 : f32
    %35 = vector.broadcast %cst_16 : f32 to vector<1x8x4xf32>
    %36 = arith.mulf %28, %35 : vector<1x8x4xf32>
    %cst_17 = arith.constant 0.353553385 : f32
    %37 = vector.broadcast %cst_17 : f32 to vector<1x8x4xf32>
    %38 = arith.mulf %30, %37 : vector<1x8x4xf32>
    %cst_18 = arith.constant 0.353553385 : f32
    %39 = vector.broadcast %cst_18 : f32 to vector<1x8x4xf32>
    %40 = arith.mulf %32, %39 : vector<1x8x4xf32>
    %cst_19 = arith.constant 0.353553385 : f32
    %41 = vector.broadcast %cst_19 : f32 to vector<1x8x4xf32>
    %42 = arith.mulf %34, %41 : vector<1x8x4xf32>
    %c0_20 = arith.constant 0 : index
    %c0_21 = arith.constant 0 : index
    %c0_22 = arith.constant 0 : index
    %43 = vector.load %arg4[%c0_20, %c0_21, %c0_22] : memref<2x1x32xf32, #tpu.memory_space<vmem>>, vector<1x1x32xf32>
    %44 = vector.shape_cast %43 : vector<1x1x32xf32> to vector<1x32xf32>
    %45 = arith.mulf %1, %1 : vector<8x32xf32>
    %cst_23 = arith.constant dense<0.000000e+00> : vector<8xf32>
    %46 = vector.multi_reduction <add>, %45, %cst_23 [1] : vector<8x32xf32> to vector<8xf32>
    %47 = vector.shape_cast %46 : vector<8xf32> to vector<8x1xf32>
    %cst_24 = arith.constant 3.200000e+01 : f32
    %48 = vector.broadcast %cst_24 : f32 to vector<8x1xf32>
    %49 = arith.divf %47, %48 : vector<8x1xf32>
    %cst_25 = arith.constant 9.99999974E-6 : f32
    %50 = vector.broadcast %cst_25 : f32 to vector<8x1xf32>
    %51 = arith.addf %49, %50 : vector<8x1xf32>
    %52 = math.rsqrt %51 : vector<8x1xf32>
    %53 = vector.broadcast %52 : vector<8x1xf32> to vector<8x32xf32>
    %54 = arith.mulf %1, %53 : vector<8x32xf32>
    %55 = vector.broadcast %44 : vector<1x32xf32> to vector<8x32xf32>
    %56 = arith.mulf %55, %54 : vector<8x32xf32>
    %57 = arith.truncf %56 : vector<8x32xf32> to vector<8x32xbf16>
    %c0_26 = arith.constant 0 : index
    %c0_27 = arith.constant 0 : index
    %c0_28 = arith.constant 0 : index
    %58 = vector.load %arg5[%c0_26, %c0_27, %c0_28] : memref<2x32x96xbf16, #tpu.memory_space<vmem>>, vector<1x32x96xbf16>
    %59 = vector.shape_cast %58 : vector<1x32x96xbf16> to vector<32x96xbf16>
    %cst_29 = arith.constant dense<0.000000e+00> : vector<8x96xf32>
    %60 = tpu.matmul %57, %59, %cst_29 {dimension_numbers = #tpu.dot_dimension_numbers<[1], [0], [0], [1], [0, 0, 1, 1], [], []>} : vector<8x32xbf16>, vector<32x96xbf16>, vector<8x96xf32> -> vector<8x96xf32>
    %61 = vector.extract_strided_slice %60 {offsets = [0, 0], sizes = [8, 24], strides = [1, 1]} : vector<8x96xf32> to vector<8x24xf32>
    %62 = vector.extract_strided_slice %60 {offsets = [0, 24], sizes = [8, 24], strides = [1, 1]} : vector<8x96xf32> to vector<8x24xf32>
    %63 = vector.extract_strided_slice %60 {offsets = [0, 48], sizes = [8, 24], strides = [1, 1]} : vector<8x96xf32> to vector<8x24xf32>
    %64 = vector.extract_strided_slice %60 {offsets = [0, 72], sizes = [8, 24], strides = [1, 1]} : vector<8x96xf32> to vector<8x24xf32>
    %65 = vector.shape_cast %61 : vector<8x24xf32> to vector<1x8x24xf32>
    %66 = vector.shape_cast %62 : vector<8x24xf32> to vector<1x8x24xf32>
    %67 = vector.shape_cast %63 : vector<8x24xf32> to vector<1x8x24xf32>
    %68 = vector.shape_cast %64 : vector<8x24xf32> to vector<1x8x24xf32>
    %69 = tpu.concatenate %65, %66, %67, %68 in 0 : vector<1x8x24xf32>, vector<1x8x24xf32>, vector<1x8x24xf32>, vector<1x8x24xf32> -> vector<4x8x24xf32>
    %70 = vector.extract_strided_slice %69 {offsets = [0, 0, 0], sizes = [4, 8, 8], strides = [1, 1, 1]} : vector<4x8x24xf32> to vector<4x8x8xf32>
    %71 = vector.extract_strided_slice %69 {offsets = [0, 0, 8], sizes = [4, 8, 8], strides = [1, 1, 1]} : vector<4x8x24xf32> to vector<4x8x8xf32>
    %72 = vector.extract_strided_slice %69 {offsets = [0, 0, 16], sizes = [4, 8, 8], strides = [1, 1, 1]} : vector<4x8x24xf32> to vector<4x8x8xf32>
    %73 = vector.extract_strided_slice %70 {offsets = [0, 0, 0], sizes = [4, 8, 4], strides = [1, 1, 1]} : vector<4x8x8xf32> to vector<4x8x4xf32>
    %74 = vector.extract_strided_slice %70 {offsets = [0, 0, 4], sizes = [4, 8, 4], strides = [1, 1, 1]} : vector<4x8x8xf32> to vector<4x8x4xf32>
    %75 = vector.extract_strided_slice %71 {offsets = [0, 0, 0], sizes = [4, 8, 4], strides = [1, 1, 1]} : vector<4x8x8xf32> to vector<4x8x4xf32>
    %76 = vector.extract_strided_slice %71 {offsets = [0, 0, 4], sizes = [4, 8, 4], strides = [1, 1, 1]} : vector<4x8x8xf32> to vector<4x8x4xf32>
    %77 = vector.broadcast %36 : vector<1x8x4xf32> to vector<4x8x4xf32>
    %78 = arith.mulf %73, %77 : vector<4x8x4xf32>
    %79 = vector.broadcast %40 : vector<1x8x4xf32> to vector<4x8x4xf32>
    %80 = arith.mulf %74, %79 : vector<4x8x4xf32>
    %81 = arith.subf %78, %80 : vector<4x8x4xf32>
    %82 = vector.broadcast %38 : vector<1x8x4xf32> to vector<4x8x4xf32>
    %83 = arith.mulf %74, %82 : vector<4x8x4xf32>
    %84 = vector.broadcast %42 : vector<1x8x4xf32> to vector<4x8x4xf32>
    %85 = arith.mulf %73, %84 : vector<4x8x4xf32>
    %86 = arith.addf %83, %85 : vector<4x8x4xf32>
    %87 = tpu.concatenate %81, %86 in 2 : vector<4x8x4xf32>, vector<4x8x4xf32> -> vector<4x8x8xf32>
    %88 = vector.broadcast %28 : vector<1x8x4xf32> to vector<4x8x4xf32>
    %89 = arith.mulf %75, %88 : vector<4x8x4xf32>
    %90 = vector.broadcast %32 : vector<1x8x4xf32> to vector<4x8x4xf32>
    %91 = arith.mulf %76, %90 : vector<4x8x4xf32>
    %92 = arith.subf %89, %91 : vector<4x8x4xf32>
    %93 = vector.broadcast %30 : vector<1x8x4xf32> to vector<4x8x4xf32>
    %94 = arith.mulf %76, %93 : vector<4x8x4xf32>
    %95 = vector.broadcast %34 : vector<1x8x4xf32> to vector<4x8x4xf32>
    %96 = arith.mulf %75, %95 : vector<4x8x4xf32>
    %97 = arith.addf %94, %96 : vector<4x8x4xf32>
    %98 = tpu.concatenate %92, %97 in 2 : vector<4x8x4xf32>, vector<4x8x4xf32> -> vector<4x8x8xf32>
    %99 = arith.truncf %87 : vector<4x8x8xf32> to vector<4x8x8xbf16>
    %100 = arith.truncf %98 : vector<4x8x8xf32> to vector<4x8x8xbf16>
    "tpu.trace_start"() <{level = 10 : i32, message = "hqd,hkd->hqk"}> : () -> ()
    %cst_30 = arith.constant dense<0.000000e+00> : vector<4x8x8xf32>
    %101 = tpu.matmul %99, %100, %cst_30 {dimension_numbers = #tpu.dot_dimension_numbers<[2], [2], [1], [1], [0, 0, 0, 1, 1, 1], [0], [0]>} : vector<4x8x8xbf16>, vector<4x8x8xbf16>, vector<4x8x8xf32> -> vector<4x8x8xf32>
    "tpu.trace_stop"() : () -> ()
    %102 = vector.broadcast %26 : vector<1x8x8xf32> to vector<4x8x8xf32>
    %103 = arith.addf %101, %102 : vector<4x8x8xf32>
    %cst_31 = arith.constant dense<0xFF800000> : vector<4x8xf32>
    %104 = vector.multi_reduction <maximumf>, %103, %cst_31 [2] : vector<4x8x8xf32> to vector<4x8xf32>
    %105 = vector.shape_cast %104 : vector<4x8xf32> to vector<4x8x1xf32>
    %106 = vector.broadcast %105 : vector<4x8x1xf32> to vector<4x8x8xf32>
    %107 = arith.subf %103, %106 : vector<4x8x8xf32>
    %108 = math.exp %107 : vector<4x8x8xf32>
    %cst_32 = arith.constant dense<0.000000e+00> : vector<4x8xf32>
    %109 = vector.multi_reduction <add>, %108, %cst_32 [2] : vector<4x8x8xf32> to vector<4x8xf32>
    %110 = vector.shape_cast %109 : vector<4x8xf32> to vector<4x8x1xf32>
    %111 = tpu.reciprocal %110 {approx = true} : vector<4x8x1xf32> -> vector<4x8x1xf32>
    %112 = vector.broadcast %111 : vector<4x8x1xf32> to vector<4x8x8xf32>
    %113 = arith.mulf %108, %112 : vector<4x8x8xf32>
    %114 = arith.truncf %113 : vector<4x8x8xf32> to vector<4x8x8xbf16>
    %115 = arith.truncf %72 : vector<4x8x8xf32> to vector<4x8x8xbf16>
    "tpu.trace_start"() <{level = 10 : i32, message = "hqk,hkd->hqd"}> : () -> ()
    %cst_33 = arith.constant dense<0.000000e+00> : vector<4x8x8xf32>
    %116 = tpu.matmul %114, %115, %cst_33 {dimension_numbers = #tpu.dot_dimension_numbers<[2], [1], [1], [2], [0, 0, 0, 1, 1, 2], [0], [0]>} : vector<4x8x8xbf16>, vector<4x8x8xbf16>, vector<4x8x8xf32> -> vector<4x8x8xf32>
    "tpu.trace_stop"() : () -> ()
    %117 = vector.extract_strided_slice %116 {offsets = [0, 0, 0], sizes = [1, 8, 8], strides = [1, 1, 1]} : vector<4x8x8xf32> to vector<1x8x8xf32>
    %118 = vector.shape_cast %117 : vector<1x8x8xf32> to vector<8x8xf32>
    %119 = vector.extract_strided_slice %116 {offsets = [1, 0, 0], sizes = [1, 8, 8], strides = [1, 1, 1]} : vector<4x8x8xf32> to vector<1x8x8xf32>
    %120 = vector.shape_cast %119 : vector<1x8x8xf32> to vector<8x8xf32>
    %121 = vector.extract_strided_slice %116 {offsets = [2, 0, 0], sizes = [1, 8, 8], strides = [1, 1, 1]} : vector<4x8x8xf32> to vector<1x8x8xf32>
    %122 = vector.shape_cast %121 : vector<1x8x8xf32> to vector<8x8xf32>
    %123 = vector.extract_strided_slice %116 {offsets = [3, 0, 0], sizes = [1, 8, 8], strides = [1, 1, 1]} : vector<4x8x8xf32> to vector<1x8x8xf32>
    %124 = vector.shape_cast %123 : vector<1x8x8xf32> to vector<8x8xf32>
    %125 = tpu.concatenate %118, %120, %122, %124 in 1 : vector<8x8xf32>, vector<8x8xf32>, vector<8x8xf32>, vector<8x8xf32> -> vector<8x32xf32>
    %126 = arith.truncf %125 : vector<8x32xf32> to vector<8x32xbf16>
    %c0_34 = arith.constant 0 : index
    %c0_35 = arith.constant 0 : index
    %c0_36 = arith.constant 0 : index
    %127 = vector.load %arg6[%c0_34, %c0_35, %c0_36] : memref<2x32x32xbf16, #tpu.memory_space<vmem>>, vector<1x32x32xbf16>
    %128 = vector.shape_cast %127 : vector<1x32x32xbf16> to vector<32x32xbf16>
    %cst_37 = arith.constant dense<0.000000e+00> : vector<8x32xf32>
    %129 = tpu.matmul %126, %128, %cst_37 {dimension_numbers = #tpu.dot_dimension_numbers<[1], [0], [0], [1], [0, 0, 1, 1], [], []>} : vector<8x32xbf16>, vector<32x32xbf16>, vector<8x32xf32> -> vector<8x32xf32>
    %130 = arith.addf %1, %129 : vector<8x32xf32>
    %c0_38 = arith.constant 0 : index
    %c0_39 = arith.constant 0 : index
    %c0_40 = arith.constant 0 : index
    %131 = vector.load %arg7[%c0_38, %c0_39, %c0_40] : memref<2x1x32xf32, #tpu.memory_space<vmem>>, vector<1x1x32xf32>
    %132 = vector.shape_cast %131 : vector<1x1x32xf32> to vector<1x32xf32>
    %133 = arith.mulf %130, %130 : vector<8x32xf32>
    %cst_41 = arith.constant dense<0.000000e+00> : vector<8xf32>
    %134 = vector.multi_reduction <add>, %133, %cst_41 [1] : vector<8x32xf32> to vector<8xf32>
    %135 = vector.shape_cast %134 : vector<8xf32> to vector<8x1xf32>
    %cst_42 = arith.constant 3.200000e+01 : f32
    %136 = vector.broadcast %cst_42 : f32 to vector<8x1xf32>
    %137 = arith.divf %135, %136 : vector<8x1xf32>
    %cst_43 = arith.constant 9.99999974E-6 : f32
    %138 = vector.broadcast %cst_43 : f32 to vector<8x1xf32>
    %139 = arith.addf %137, %138 : vector<8x1xf32>
    %140 = math.rsqrt %139 : vector<8x1xf32>
    %141 = vector.broadcast %140 : vector<8x1xf32> to vector<8x32xf32>
    %142 = arith.mulf %130, %141 : vector<8x32xf32>
    %143 = vector.broadcast %132 : vector<1x32xf32> to vector<8x32xf32>
    %144 = arith.mulf %143, %142 : vector<8x32xf32>
    %145 = arith.truncf %144 : vector<8x32xf32> to vector<8x32xbf16>
    %c0_44 = arith.constant 0 : index
    %c0_45 = arith.constant 0 : index
    %c0_46 = arith.constant 0 : index
    %146 = vector.load %arg8[%c0_44, %c0_45, %c0_46] : memref<2x32x128xbf16, #tpu.memory_space<vmem>>, vector<1x32x128xbf16>
    %147 = vector.shape_cast %146 : vector<1x32x128xbf16> to vector<32x128xbf16>
    %cst_47 = arith.constant dense<0.000000e+00> : vector<8x128xf32>
    %148 = tpu.matmul %145, %147, %cst_47 {dimension_numbers = #tpu.dot_dimension_numbers<[1], [0], [0], [1], [0, 0, 1, 1], [], []>} : vector<8x32xbf16>, vector<32x128xbf16>, vector<8x128xf32> -> vector<8x128xf32>
    %149 = vector.extract_strided_slice %148 {offsets = [0, 0], sizes = [8, 64], strides = [1, 1]} : vector<8x128xf32> to vector<8x64xf32>
    %150 = arith.negf %149 : vector<8x64xf32>
    %151 = math.exp %150 : vector<8x64xf32>
    %cst_48 = arith.constant 1.000000e+00 : f32
    %152 = vector.broadcast %cst_48 : f32 to vector<8x64xf32>
    %153 = arith.addf %152, %151 : vector<8x64xf32>
    %154 = arith.divf %152, %153 : vector<8x64xf32>
    %155 = arith.mulf %149, %154 : vector<8x64xf32>
    %156 = vector.extract_strided_slice %148 {offsets = [0, 64], sizes = [8, 64], strides = [1, 1]} : vector<8x128xf32> to vector<8x64xf32>
    %157 = arith.mulf %155, %156 : vector<8x64xf32>
    %158 = arith.truncf %157 : vector<8x64xf32> to vector<8x64xbf16>
    %c0_49 = arith.constant 0 : index
    %c0_50 = arith.constant 0 : index
    %c0_51 = arith.constant 0 : index
    %159 = vector.load %arg9[%c0_49, %c0_50, %c0_51] : memref<2x64x32xbf16, #tpu.memory_space<vmem>>, vector<1x64x32xbf16>
    %160 = vector.shape_cast %159 : vector<1x64x32xbf16> to vector<64x32xbf16>
    %cst_52 = arith.constant dense<0.000000e+00> : vector<8x32xf32>
    %161 = tpu.matmul %158, %160, %cst_52 {dimension_numbers = #tpu.dot_dimension_numbers<[1], [0], [0], [1], [0, 0, 1, 1], [], []>} : vector<8x64xbf16>, vector<64x32xbf16>, vector<8x32xf32> -> vector<8x32xf32>
    %162 = arith.addf %130, %161 : vector<8x32xf32>
    %c1 = arith.constant 1 : index
    %c0_53 = arith.constant 0 : index
    %c0_54 = arith.constant 0 : index
    %163 = vector.load %arg4[%c1, %c0_53, %c0_54] : memref<2x1x32xf32, #tpu.memory_space<vmem>>, vector<1x1x32xf32>
    %164 = vector.shape_cast %163 : vector<1x1x32xf32> to vector<1x32xf32>
    %165 = arith.mulf %162, %162 : vector<8x32xf32>
    %cst_55 = arith.constant dense<0.000000e+00> : vector<8xf32>
    %166 = vector.multi_reduction <add>, %165, %cst_55 [1] : vector<8x32xf32> to vector<8xf32>
    %167 = vector.shape_cast %166 : vector<8xf32> to vector<8x1xf32>
    %cst_56 = arith.constant 3.200000e+01 : f32
    %168 = vector.broadcast %cst_56 : f32 to vector<8x1xf32>
    %169 = arith.divf %167, %168 : vector<8x1xf32>
    %cst_57 = arith.constant 9.99999974E-6 : f32
    %170 = vector.broadcast %cst_57 : f32 to vector<8x1xf32>
    %171 = arith.addf %169, %170 : vector<8x1xf32>
    %172 = math.rsqrt %171 : vector<8x1xf32>
    %173 = vector.broadcast %172 : vector<8x1xf32> to vector<8x32xf32>
    %174 = arith.mulf %162, %173 : vector<8x32xf32>
    %175 = vector.broadcast %164 : vector<1x32xf32> to vector<8x32xf32>
    %176 = arith.mulf %175, %174 : vector<8x32xf32>
    %177 = arith.truncf %176 : vector<8x32xf32> to vector<8x32xbf16>
    %c1_58 = arith.constant 1 : index
    %c0_59 = arith.constant 0 : index
    %c0_60 = arith.constant 0 : index
    %178 = vector.load %arg5[%c1_58, %c0_59, %c0_60] : memref<2x32x96xbf16, #tpu.memory_space<vmem>>, vector<1x32x96xbf16>
    %179 = vector.shape_cast %178 : vector<1x32x96xbf16> to vector<32x96xbf16>
    %cst_61 = arith.constant dense<0.000000e+00> : vector<8x96xf32>
    %180 = tpu.matmul %177, %179, %cst_61 {dimension_numbers = #tpu.dot_dimension_numbers<[1], [0], [0], [1], [0, 0, 1, 1], [], []>} : vector<8x32xbf16>, vector<32x96xbf16>, vector<8x96xf32> -> vector<8x96xf32>
    %181 = vector.extract_strided_slice %180 {offsets = [0, 0], sizes = [8, 24], strides = [1, 1]} : vector<8x96xf32> to vector<8x24xf32>
    %182 = vector.extract_strided_slice %180 {offsets = [0, 24], sizes = [8, 24], strides = [1, 1]} : vector<8x96xf32> to vector<8x24xf32>
    %183 = vector.extract_strided_slice %180 {offsets = [0, 48], sizes = [8, 24], strides = [1, 1]} : vector<8x96xf32> to vector<8x24xf32>
    %184 = vector.extract_strided_slice %180 {offsets = [0, 72], sizes = [8, 24], strides = [1, 1]} : vector<8x96xf32> to vector<8x24xf32>
    %185 = vector.shape_cast %181 : vector<8x24xf32> to vector<1x8x24xf32>
    %186 = vector.shape_cast %182 : vector<8x24xf32> to vector<1x8x24xf32>
    %187 = vector.shape_cast %183 : vector<8x24xf32> to vector<1x8x24xf32>
    %188 = vector.shape_cast %184 : vector<8x24xf32> to vector<1x8x24xf32>
    %189 = tpu.concatenate %185, %186, %187, %188 in 0 : vector<1x8x24xf32>, vector<1x8x24xf32>, vector<1x8x24xf32>, vector<1x8x24xf32> -> vector<4x8x24xf32>
    %190 = vector.extract_strided_slice %189 {offsets = [0, 0, 0], sizes = [4, 8, 8], strides = [1, 1, 1]} : vector<4x8x24xf32> to vector<4x8x8xf32>
    %191 = vector.extract_strided_slice %189 {offsets = [0, 0, 8], sizes = [4, 8, 8], strides = [1, 1, 1]} : vector<4x8x24xf32> to vector<4x8x8xf32>
    %192 = vector.extract_strided_slice %189 {offsets = [0, 0, 16], sizes = [4, 8, 8], strides = [1, 1, 1]} : vector<4x8x24xf32> to vector<4x8x8xf32>
    %193 = vector.extract_strided_slice %190 {offsets = [0, 0, 0], sizes = [4, 8, 4], strides = [1, 1, 1]} : vector<4x8x8xf32> to vector<4x8x4xf32>
    %194 = vector.extract_strided_slice %190 {offsets = [0, 0, 4], sizes = [4, 8, 4], strides = [1, 1, 1]} : vector<4x8x8xf32> to vector<4x8x4xf32>
    %195 = vector.extract_strided_slice %191 {offsets = [0, 0, 0], sizes = [4, 8, 4], strides = [1, 1, 1]} : vector<4x8x8xf32> to vector<4x8x4xf32>
    %196 = vector.extract_strided_slice %191 {offsets = [0, 0, 4], sizes = [4, 8, 4], strides = [1, 1, 1]} : vector<4x8x8xf32> to vector<4x8x4xf32>
    %197 = vector.broadcast %36 : vector<1x8x4xf32> to vector<4x8x4xf32>
    %198 = arith.mulf %193, %197 : vector<4x8x4xf32>
    %199 = vector.broadcast %40 : vector<1x8x4xf32> to vector<4x8x4xf32>
    %200 = arith.mulf %194, %199 : vector<4x8x4xf32>
    %201 = arith.subf %198, %200 : vector<4x8x4xf32>
    %202 = vector.broadcast %38 : vector<1x8x4xf32> to vector<4x8x4xf32>
    %203 = arith.mulf %194, %202 : vector<4x8x4xf32>
    %204 = vector.broadcast %42 : vector<1x8x4xf32> to vector<4x8x4xf32>
    %205 = arith.mulf %193, %204 : vector<4x8x4xf32>
    %206 = arith.addf %203, %205 : vector<4x8x4xf32>
    %207 = tpu.concatenate %201, %206 in 2 : vector<4x8x4xf32>, vector<4x8x4xf32> -> vector<4x8x8xf32>
    %208 = vector.broadcast %28 : vector<1x8x4xf32> to vector<4x8x4xf32>
    %209 = arith.mulf %195, %208 : vector<4x8x4xf32>
    %210 = vector.broadcast %32 : vector<1x8x4xf32> to vector<4x8x4xf32>
    %211 = arith.mulf %196, %210 : vector<4x8x4xf32>
    %212 = arith.subf %209, %211 : vector<4x8x4xf32>
    %213 = vector.broadcast %30 : vector<1x8x4xf32> to vector<4x8x4xf32>
    %214 = arith.mulf %196, %213 : vector<4x8x4xf32>
    %215 = vector.broadcast %34 : vector<1x8x4xf32> to vector<4x8x4xf32>
    %216 = arith.mulf %195, %215 : vector<4x8x4xf32>
    %217 = arith.addf %214, %216 : vector<4x8x4xf32>
    %218 = tpu.concatenate %212, %217 in 2 : vector<4x8x4xf32>, vector<4x8x4xf32> -> vector<4x8x8xf32>
    %219 = arith.truncf %207 : vector<4x8x8xf32> to vector<4x8x8xbf16>
    %220 = arith.truncf %218 : vector<4x8x8xf32> to vector<4x8x8xbf16>
    "tpu.trace_start"() <{level = 10 : i32, message = "hqd,hkd->hqk"}> : () -> ()
    %cst_62 = arith.constant dense<0.000000e+00> : vector<4x8x8xf32>
    %221 = tpu.matmul %219, %220, %cst_62 {dimension_numbers = #tpu.dot_dimension_numbers<[2], [2], [1], [1], [0, 0, 0, 1, 1, 1], [0], [0]>} : vector<4x8x8xbf16>, vector<4x8x8xbf16>, vector<4x8x8xf32> -> vector<4x8x8xf32>
    "tpu.trace_stop"() : () -> ()
    %222 = vector.broadcast %26 : vector<1x8x8xf32> to vector<4x8x8xf32>
    %223 = arith.addf %221, %222 : vector<4x8x8xf32>
    %cst_63 = arith.constant dense<0xFF800000> : vector<4x8xf32>
    %224 = vector.multi_reduction <maximumf>, %223, %cst_63 [2] : vector<4x8x8xf32> to vector<4x8xf32>
    %225 = vector.shape_cast %224 : vector<4x8xf32> to vector<4x8x1xf32>
    %226 = vector.broadcast %225 : vector<4x8x1xf32> to vector<4x8x8xf32>
    %227 = arith.subf %223, %226 : vector<4x8x8xf32>
    %228 = math.exp %227 : vector<4x8x8xf32>
    %cst_64 = arith.constant dense<0.000000e+00> : vector<4x8xf32>
    %229 = vector.multi_reduction <add>, %228, %cst_64 [2] : vector<4x8x8xf32> to vector<4x8xf32>
    %230 = vector.shape_cast %229 : vector<4x8xf32> to vector<4x8x1xf32>
    %231 = tpu.reciprocal %230 {approx = true} : vector<4x8x1xf32> -> vector<4x8x1xf32>
    %232 = vector.broadcast %231 : vector<4x8x1xf32> to vector<4x8x8xf32>
    %233 = arith.mulf %228, %232 : vector<4x8x8xf32>
    %234 = arith.truncf %233 : vector<4x8x8xf32> to vector<4x8x8xbf16>
    %235 = arith.truncf %192 : vector<4x8x8xf32> to vector<4x8x8xbf16>
    "tpu.trace_start"() <{level = 10 : i32, message = "hqk,hkd->hqd"}> : () -> ()
    %cst_65 = arith.constant dense<0.000000e+00> : vector<4x8x8xf32>
    %236 = tpu.matmul %234, %235, %cst_65 {dimension_numbers = #tpu.dot_dimension_numbers<[2], [1], [1], [2], [0, 0, 0, 1, 1, 2], [0], [0]>} : vector<4x8x8xbf16>, vector<4x8x8xbf16>, vector<4x8x8xf32> -> vector<4x8x8xf32>
    "tpu.trace_stop"() : () -> ()
    %237 = vector.extract_strided_slice %236 {offsets = [0, 0, 0], sizes = [1, 8, 8], strides = [1, 1, 1]} : vector<4x8x8xf32> to vector<1x8x8xf32>
    %238 = vector.shape_cast %237 : vector<1x8x8xf32> to vector<8x8xf32>
    %239 = vector.extract_strided_slice %236 {offsets = [1, 0, 0], sizes = [1, 8, 8], strides = [1, 1, 1]} : vector<4x8x8xf32> to vector<1x8x8xf32>
    %240 = vector.shape_cast %239 : vector<1x8x8xf32> to vector<8x8xf32>
    %241 = vector.extract_strided_slice %236 {offsets = [2, 0, 0], sizes = [1, 8, 8], strides = [1, 1, 1]} : vector<4x8x8xf32> to vector<1x8x8xf32>
    %242 = vector.shape_cast %241 : vector<1x8x8xf32> to vector<8x8xf32>
    %243 = vector.extract_strided_slice %236 {offsets = [3, 0, 0], sizes = [1, 8, 8], strides = [1, 1, 1]} : vector<4x8x8xf32> to vector<1x8x8xf32>
    %244 = vector.shape_cast %243 : vector<1x8x8xf32> to vector<8x8xf32>
    %245 = tpu.concatenate %238, %240, %242, %244 in 1 : vector<8x8xf32>, vector<8x8xf32>, vector<8x8xf32>, vector<8x8xf32> -> vector<8x32xf32>
    %246 = arith.truncf %245 : vector<8x32xf32> to vector<8x32xbf16>
    %c1_66 = arith.constant 1 : index
    %c0_67 = arith.constant 0 : index
    %c0_68 = arith.constant 0 : index
    %247 = vector.load %arg6[%c1_66, %c0_67, %c0_68] : memref<2x32x32xbf16, #tpu.memory_space<vmem>>, vector<1x32x32xbf16>
    %248 = vector.shape_cast %247 : vector<1x32x32xbf16> to vector<32x32xbf16>
    %cst_69 = arith.constant dense<0.000000e+00> : vector<8x32xf32>
    %249 = tpu.matmul %246, %248, %cst_69 {dimension_numbers = #tpu.dot_dimension_numbers<[1], [0], [0], [1], [0, 0, 1, 1], [], []>} : vector<8x32xbf16>, vector<32x32xbf16>, vector<8x32xf32> -> vector<8x32xf32>
    %250 = arith.addf %162, %249 : vector<8x32xf32>
    %c1_70 = arith.constant 1 : index
    %c0_71 = arith.constant 0 : index
    %c0_72 = arith.constant 0 : index
    %251 = vector.load %arg7[%c1_70, %c0_71, %c0_72] : memref<2x1x32xf32, #tpu.memory_space<vmem>>, vector<1x1x32xf32>
    %252 = vector.shape_cast %251 : vector<1x1x32xf32> to vector<1x32xf32>
    %253 = arith.mulf %250, %250 : vector<8x32xf32>
    %cst_73 = arith.constant dense<0.000000e+00> : vector<8xf32>
    %254 = vector.multi_reduction <add>, %253, %cst_73 [1] : vector<8x32xf32> to vector<8xf32>
    %255 = vector.shape_cast %254 : vector<8xf32> to vector<8x1xf32>
    %cst_74 = arith.constant 3.200000e+01 : f32
    %256 = vector.broadcast %cst_74 : f32 to vector<8x1xf32>
    %257 = arith.divf %255, %256 : vector<8x1xf32>
    %cst_75 = arith.constant 9.99999974E-6 : f32
    %258 = vector.broadcast %cst_75 : f32 to vector<8x1xf32>
    %259 = arith.addf %257, %258 : vector<8x1xf32>
    %260 = math.rsqrt %259 : vector<8x1xf32>
    %261 = vector.broadcast %260 : vector<8x1xf32> to vector<8x32xf32>
    %262 = arith.mulf %250, %261 : vector<8x32xf32>
    %263 = vector.broadcast %252 : vector<1x32xf32> to vector<8x32xf32>
    %264 = arith.mulf %263, %262 : vector<8x32xf32>
    %265 = arith.truncf %264 : vector<8x32xf32> to vector<8x32xbf16>
    %c1_76 = arith.constant 1 : index
    %c0_77 = arith.constant 0 : index
    %c0_78 = arith.constant 0 : index
    %266 = vector.load %arg8[%c1_76, %c0_77, %c0_78] : memref<2x32x128xbf16, #tpu.memory_space<vmem>>, vector<1x32x128xbf16>
    %267 = vector.shape_cast %266 : vector<1x32x128xbf16> to vector<32x128xbf16>
    %cst_79 = arith.constant dense<0.000000e+00> : vector<8x128xf32>
    %268 = tpu.matmul %265, %267, %cst_79 {dimension_numbers = #tpu.dot_dimension_numbers<[1], [0], [0], [1], [0, 0, 1, 1], [], []>} : vector<8x32xbf16>, vector<32x128xbf16>, vector<8x128xf32> -> vector<8x128xf32>
    %269 = vector.extract_strided_slice %268 {offsets = [0, 0], sizes = [8, 64], strides = [1, 1]} : vector<8x128xf32> to vector<8x64xf32>
    %270 = arith.negf %269 : vector<8x64xf32>
    %271 = math.exp %270 : vector<8x64xf32>
    %cst_80 = arith.constant 1.000000e+00 : f32
    %272 = vector.broadcast %cst_80 : f32 to vector<8x64xf32>
    %273 = arith.addf %272, %271 : vector<8x64xf32>
    %274 = arith.divf %272, %273 : vector<8x64xf32>
    %275 = arith.mulf %269, %274 : vector<8x64xf32>
    %276 = vector.extract_strided_slice %268 {offsets = [0, 64], sizes = [8, 64], strides = [1, 1]} : vector<8x128xf32> to vector<8x64xf32>
    %277 = arith.mulf %275, %276 : vector<8x64xf32>
    %278 = arith.truncf %277 : vector<8x64xf32> to vector<8x64xbf16>
    %c1_81 = arith.constant 1 : index
    %c0_82 = arith.constant 0 : index
    %c0_83 = arith.constant 0 : index
    %279 = vector.load %arg9[%c1_81, %c0_82, %c0_83] : memref<2x64x32xbf16, #tpu.memory_space<vmem>>, vector<1x64x32xbf16>
    %280 = vector.shape_cast %279 : vector<1x64x32xbf16> to vector<64x32xbf16>
    %cst_84 = arith.constant dense<0.000000e+00> : vector<8x32xf32>
    %281 = tpu.matmul %278, %280, %cst_84 {dimension_numbers = #tpu.dot_dimension_numbers<[1], [0], [0], [1], [0, 0, 1, 1], [], []>} : vector<8x64xbf16>, vector<64x32xbf16>, vector<8x32xf32> -> vector<8x32xf32>
    %282 = arith.addf %250, %281 : vector<8x32xf32>
    %c0_85 = arith.constant 0 : index
    %c0_86 = arith.constant 0 : index
    %c0_87 = arith.constant 0 : index
    %283 = vector.load %arg12[%c0_85, %c0_86, %c0_87] : memref<1x8x32xf32, #tpu.memory_space<vmem>>, vector<1x8x32xf32>
    %284 = vector.shape_cast %283 : vector<1x8x32xf32> to vector<8x32xf32>
    %285 = vector.shape_cast %282 : vector<8x32xf32> to vector<1x8x32xf32>
    tpu.vector_store %arg12[%c0_85, %c0_86, %c0_87], %285 {strides = array<i32>} : memref<1x8x32xf32, #tpu.memory_space<vmem>>, vector<1x8x32xf32>,
    return
  }
  func.func @transform_0(%arg0: i32) -> (i32, i32, i32) {
    %c0_i32 = arith.constant 0 : i32
    %c0_i32_0 = arith.constant 0 : i32
    %c0_i32_1 = arith.constant 0 : i32
    return %arg0, %c0_i32, %c0_i32_0 : i32, i32, i32
  }
  func.func @transform_1(%arg0: i32) -> (i32, i32) {
    %c0_i32 = arith.constant 0 : i32
    %c0_i32_0 = arith.constant 0 : i32
    %c0_i32_1 = arith.constant 0 : i32
    return %c0_i32, %c0_i32_0 : i32, i32
  }
  func.func @transform_2(%arg0: i32) -> (i32, i32) {
    %c0_i32 = arith.constant 0 : i32
    %c0_i32_0 = arith.constant 0 : i32
    %c0_i32_1 = arith.constant 0 : i32
    return %c0_i32, %c0_i32_0 : i32, i32
  }
  func.func @transform_3(%arg0: i32) -> (i32, i32, i32) {
    %c0_i32 = arith.constant 0 : i32
    %c0_i32_0 = arith.constant 0 : i32
    %c0_i32_1 = arith.constant 0 : i32
    %c0_i32_2 = arith.constant 0 : i32
    return %c0_i32, %c0_i32_0, %c0_i32_1 : i32, i32, i32
  }
  func.func @transform_4(%arg0: i32) -> (i32, i32, i32) {
    %c0_i32 = arith.constant 0 : i32
    %c0_i32_0 = arith.constant 0 : i32
    %c0_i32_1 = arith.constant 0 : i32
    %c0_i32_2 = arith.constant 0 : i32
    return %c0_i32, %c0_i32_0, %c0_i32_1 : i32, i32, i32
  }
  func.func @transform_5(%arg0: i32) -> (i32, i32, i32) {
    %c0_i32 = arith.constant 0 : i32
    %c0_i32_0 = arith.constant 0 : i32
    %c0_i32_1 = arith.constant 0 : i32
    %c0_i32_2 = arith.constant 0 : i32
    return %c0_i32, %c0_i32_0, %c0_i32_1 : i32, i32, i32
  }
  func.func @transform_6(%arg0: i32) -> (i32, i32, i32) {
    %c0_i32 = arith.constant 0 : i32
    %c0_i32_0 = arith.constant 0 : i32
    %c0_i32_1 = arith.constant 0 : i32
    %c0_i32_2 = arith.constant 0 : i32
    return %c0_i32, %c0_i32_0, %c0_i32_1 : i32, i32, i32
  }
  func.func @transform_7(%arg0: i32) -> (i32, i32, i32) {
    %c0_i32 = arith.constant 0 : i32
    %c0_i32_0 = arith.constant 0 : i32
    %c0_i32_1 = arith.constant 0 : i32
    %c0_i32_2 = arith.constant 0 : i32
    return %c0_i32, %c0_i32_0, %c0_i32_1 : i32, i32, i32
  }
  func.func @transform_8(%arg0: i32) -> (i32, i32, i32) {
    %c0_i32 = arith.constant 0 : i32
    %c0_i32_0 = arith.constant 0 : i32
    %c0_i32_1 = arith.constant 0 : i32
    %c0_i32_2 = arith.constant 0 : i32
    return %c0_i32, %c0_i32_0, %c0_i32_1 : i32, i32, i32
  }
  func.func @transform_9(%arg0: i32) -> (i32, i32) {
    %c0_i32 = arith.constant 0 : i32
    %c0_i32_0 = arith.constant 0 : i32
    %c0_i32_1 = arith.constant 0 : i32
    return %c0_i32, %c0_i32_0 : i32, i32
  }
  func.func @transform_10(%arg0: i32) -> (i32, i32) {
    %c0_i32 = arith.constant 0 : i32
    %c0_i32_0 = arith.constant 0 : i32
    %c0_i32_1 = arith.constant 0 : i32
    return %c0_i32, %c0_i32_0 : i32, i32
  }
  func.func @transform_11(%arg0: i32) -> (i32, i32, i32) {
    %c0_i32 = arith.constant 0 : i32
    %c0_i32_0 = arith.constant 0 : i32
    %c0_i32_1 = arith.constant 0 : i32
    return %arg0, %c0_i32, %c0_i32_0 : i32, i32, i32
  }
  func.func @transform_12(%arg0: i32) -> (i32, i32, i32) {
    %c0_i32 = arith.constant 0 : i32
    %c0_i32_0 = arith.constant 0 : i32
    %c0_i32_1 = arith.constant 0 : i32
    return %arg0, %c0_i32, %c0_i32_0 : i32, i32, i32
  }
}

</mosaic_0001>

<llo_original>
// kernel: tpu_custom_call.1
$region0: #{tpu_custom_call.1}
  #allocation0 [shape = 'u32[]', space=smem, size = 0x4, offset = 0x4, fixed_abs, tag = 'smem constant byte address 0x4 - core index']
  #allocation1 [shape = 'u32[144,128]{1,0:T(1,128)}', space=vmem, size = 0x12000, scoped, tag = 'internal scratch']
  #allocation2 [shape = 'f32[1,1]{1,0:T(1,128)S(1)}', space=vmem, size = 0x200, scoped, tag = 'scoped memory for tpu_custom_call.1']
  %s0 = inlined_call_operand.hbm [shape: f32[2,8,32], index: 0, kind: input, shape index: {}]
  %s1 = inlined_call_operand.hbm [shape: f32[8,8], index: 1, kind: input, shape index: {}]
  %s2 = inlined_call_operand.hbm [shape: f32[8,8], index: 2, kind: input, shape index: {}]
  %s3 = inlined_call_operand.vmem [shape: f32[2,1,32], index: 3, kind: input, shape index: {}]
  %s4 = inlined_call_operand.vmem [shape: bf16[2,32,96], index: 4, kind: input, shape index: {}]
  %s5 = inlined_call_operand.vmem [shape: bf16[2,32,32], index: 5, kind: input, shape index: {}]
  %s6 = inlined_call_operand.vmem [shape: f32[2,1,32], index: 6, kind: input, shape index: {}]
  %s7 = inlined_call_operand.vmem [shape: bf16[2,32,128], index: 7, kind: input, shape index: {}]
  %s8 = inlined_call_operand.vmem [shape: bf16[2,64,32], index: 8, kind: input, shape index: {}]
  %s9 = inlined_call_operand.vmem [shape: f32[1,32], index: 9, kind: input, shape index: {}]
  %s10 = inlined_call_operand.<no memory space> [shape: f32[1,1], index: 10, kind: input, shape index: {}]
  %s11 = inlined_call_operand.hbm [shape: f32[2,8,32], index: 11, kind: output, shape index: {0}]
  %s12 = inlined_call_operand.vmem [shape: f32[2,8,1], index: 12, kind: output, shape index: {1}]
  %13 = xla_tuple %s11, %s12
  %s14 = sld [smem:[#allocation0]]
  $region97: #{tpu_custom_call.1} parent=0
    _
  %s16 = ssub.s32 1, %s14
  %s17 = scalar_select 0, %s16, %s14
  %v18 = vstv %s10
  %19 = vst [vmem:[#allocation2] sm:$0x1] %v18
  $region1: #{tpu_custom_call.1} parent=0
    #allocation3 [shape = 'u8[8192]{0}', space=vmem, size = 0x2000, scoped, tag = 'input window, operand 0']
    #allocation4 [shape = 's32[2]{0}', space=sflag, size = 0x8, scoped, tag = 'scoped memory for tpu_custom_call.1']
    #allocation5 [shape = 's32[2]{0}', space=sflag, size = 0x8, scoped, tag = 'scoped memory for tpu_custom_call.1']
    #allocation6 [shape = 'u8[4096]{0}', space=vmem, size = 0x1000, scoped, tag = 'input window, operand 1, single buffered']
    #allocation7 [shape = 's32[1]{0}', space=sflag, size = 0x4, scoped, tag = 'scoped memory for tpu_custom_call.1']
    #allocation8 [shape = 'u8[4096]{0}', space=vmem, size = 0x1000, scoped, tag = 'input window, operand 2, single buffered']
    #allocation9 [shape = 'u8[8192]{0}', space=vmem, size = 0x2000, scoped, tag = 'output window, operand 0']
    %20 = vsyncpa [#allocation4], 0
    %s21 = scalar_lea.sflag [#allocation4], 1
    %22 = vsyncpa %s21, 0
    %23 = vsyncpa [#allocation7], 0
    %24 = vsyncpa [#allocation5], 0
    %s25 = scalar_lea.sflag [#allocation5], 1
    %26 = vsyncpa %s25, 0
    loop: start=0, step=1, limit=4
    $region2: #{tpu_custom_call.1} parent=1 // loop_pre_header
      _
    $region3: #{tpu_custom_call.1} parent=1 // loop_header
      %s28 = sphi 0, %s32
      %p29 = scmp.ge.s32.totalorder %s28, 4
      %s38 = sphi 0, %s40
      %s41 = sphi 0, %s38
      %s42 = sphi 0, %s41
      %s58 = sphi 0, %s42
      %s62 = sphi 0, %s62
      %s64 = sphi 0, %s62
      %s65 = sphi 0, %s64
      %s79 = sphi 0, %s65
      %s83 = sphi 0, %s83
      %s85 = sphi 0, %s83
      %s86 = sphi 0, %s85
      %s100 = sphi 0, %s86
      %s104 = sphi 0, %s104
      %s106 = sphi 0, %s104
      %s107 = sphi 0, %s106
      %s121 = sphi 0, %s107
      %s125 = sphi 0, %s125
      %s127 = sphi 0, %s125
      %s128 = sphi 0, %s127
      %s142 = sphi 0, %s128
      %s146 = sphi 0, %s146
      %s148 = sphi 0, %s146
      %s149 = sphi 0, %s148
      %s163 = sphi 0, %s149
      %s167 = sphi 0, %s167
      %s169 = sphi 0, %s167
      %s170 = sphi 0, %s169
      %s184 = sphi 0, %s170
      %s188 = sphi 0, %s188
      %s190 = sphi 0, %s188
      %s191 = sphi 0, %s190
      %s205 = sphi 0, %s191
      %s209 = sphi 0, %s209
      %s211 = sphi 0, %s209
      %s212 = sphi 0, %s211
      %s226 = sphi 0, %s212
      %s230 = sphi 0, %s230
      %s232 = sphi 0, %s230
      %s233 = sphi 0, %s232
      %s247 = sphi 0, %s233
      %s251 = sphi 0, %s251
      %s253 = sphi 0, %s251
      %s254 = sphi 0, %s253
      %s268 = sphi 0, %s254
      %s274 = sphi 0, %s276
      %s277 = sphi 0, %s274
      %s278 = sphi 0, %s277
      %s294 = sphi 0, %s278
      %s300 = sphi 0, %s302
      %s303 = sphi 0, %s300
      %s304 = sphi 0, %s303
      %s320 = sphi 0, %s304
    $region4: #{tpu_custom_call.1} parent=1 // loop_header_branch
      %31 = sbr.rel (%p29) target = $region8
    $region5: #{tpu_custom_call.1} parent=1 // loop_body
      %s33 = ssub.s32 %s28, 1
      %s34 = ssub.s32 %s28, 2
      %s35 = sadd.s32 %s28, 1
      %s36 = ssub.s32 %s28, %s35
      %p37 = scmp.eq.s32.totalorder %s36, 0
      %s39 = sadd.s32 %s38, 1
      %s40 = scalar_select %p37, %s38, %s39
      %p43 = pneg %p37
      %p44 = scmp.eq.s32.totalorder %s28, 1
      %p45 = por %p43, %p44
      %p46 = scmp.ne.s32.totalorder %s38, %s41
      %p47 = scmp.eq.s32.totalorder %s28, 0
      %p48 = por %p46, %p47
      %p49 = scmp.ne.s32.totalorder %s38, %s41
      %p50 = scmp.eq.s32.totalorder %s33, 1
      %p51 = por %p49, %p50
      %p52 = scmp.ne.s32.totalorder %s41, %s42
      %p53 = scmp.eq.s32.totalorder %s33, 0
      %p54 = por %p52, %p53
      %p55 = scmp.ne.s32.totalorder %s41, %s42
      %p56 = scmp.eq.s32.totalorder %s34, 1
      %p57 = por %p55, %p56
      %p59 = scmp.ne.s32.totalorder %s42, %s58
      %p60 = scmp.eq.s32.totalorder %s34, 0
      %p61 = por %p59, %p60
      %s63 = sadd.s32 %s62, 1
      %p66 = scmp.eq.s32.totalorder %s28, 1
      %p67 = scmp.ne.s32.totalorder %s62, %s64
      %p68 = scmp.eq.s32.totalorder %s28, 0
      %p69 = por %p67, %p68
      %p70 = scmp.ne.s32.totalorder %s62, %s64
      %p71 = scmp.eq.s32.totalorder %s33, 1
      %p72 = por %p70, %p71
      %p73 = scmp.ne.s32.totalorder %s64, %s65
      %p74 = scmp.eq.s32.totalorder %s33, 0
      %p75 = por %p73, %p74
      %p76 = scmp.ne.s32.totalorder %s64, %s65
      %p77 = scmp.eq.s32.totalorder %s34, 1
      %p78 = por %p76, %p77
      %p80 = scmp.ne.s32.totalorder %s65, %s79
      %p81 = scmp.eq.s32.totalorder %s34, 0
      %p82 = por %p80, %p81
      %s84 = sadd.s32 %s83, 1
      %p87 = scmp.eq.s32.totalorder %s28, 1
      %p88 = scmp.ne.s32.totalorder %s83, %s85
      %p89 = scmp.eq.s32.totalorder %s28, 0
      %p90 = por %p88, %p89
      %p91 = scmp.ne.s32.totalorder %s83, %s85
      %p92 = scmp.eq.s32.totalorder %s33, 1
      %p93 = por %p91, %p92
      %p94 = scmp.ne.s32.totalorder %s85, %s86
      %p95 = scmp.eq.s32.totalorder %s33, 0
      %p96 = por %p94, %p95
      %p97 = scmp.ne.s32.totalorder %s85, %s86
      %p98 = scmp.eq.s32.totalorder %s34, 1
      %p99 = por %p97, %p98
      %p101 = scmp.ne.s32.totalorder %s86, %s100
      %p102 = scmp.eq.s32.totalorder %s34, 0
      %p103 = por %p101, %p102
      %s105 = sadd.s32 %s104, 1
      %p108 = scmp.eq.s32.totalorder %s28, 1
      %p109 = scmp.ne.s32.totalorder %s104, %s106
      %p110 = scmp.eq.s32.totalorder %s28, 0
      %p111 = por %p109, %p110
      %p112 = scmp.ne.s32.totalorder %s104, %s106
      %p113 = scmp.eq.s32.totalorder %s33, 1
      %p114 = por %p112, %p113
      %p115 = scmp.ne.s32.totalorder %s106, %s107
      %p116 = scmp.eq.s32.totalorder %s33, 0
      %p117 = por %p115, %p116
      %p118 = scmp.ne.s32.totalorder %s106, %s107
      %p119 = scmp.eq.s32.totalorder %s34, 1
      %p120 = por %p118, %p119
      %p122 = scmp.ne.s32.totalorder %s107, %s121
      %p123 = scmp.eq.s32.totalorder %s34, 0
      %p124 = por %p122, %p123
      %s126 = sadd.s32 %s125, 1
      %p129 = scmp.eq.s32.totalorder %s28, 1
      %p130 = scmp.ne.s32.totalorder %s125, %s127
      %p131 = scmp.eq.s32.totalorder %s28, 0
      %p132 = por %p130, %p131
      %p133 = scmp.ne.s32.totalorder %s125, %s127
      %p134 = scmp.eq.s32.totalorder %s33, 1
      %p135 = por %p133, %p134
      %p136 = scmp.ne.s32.totalorder %s127, %s128
      %p137 = scmp.eq.s32.totalorder %s33, 0
      %p138 = por %p136, %p137
      %p139 = scmp.ne.s32.totalorder %s127, %s128
      %p140 = scmp.eq.s32.totalorder %s34, 1
      %p141 = por %p139, %p140
      %p143 = scmp.ne.s32.totalorder %s128, %s142
      %p144 = scmp.eq.s32.totalorder %s34, 0
      %p145 = por %p143, %p144
      %s147 = sadd.s32 %s146, 1
      %p150 = scmp.eq.s32.totalorder %s28, 1
      %p151 = scmp.ne.s32.totalorder %s146, %s148
      %p152 = scmp.eq.s32.totalorder %s28, 0
      %p153 = por %p151, %p152
      %p154 = scmp.ne.s32.totalorder %s146, %s148
      %p155 = scmp.eq.s32.totalorder %s33, 1
      %p156 = por %p154, %p155
      %p157 = scmp.ne.s32.totalorder %s148, %s149
      %p158 = scmp.eq.s32.totalorder %s33, 0
      %p159 = por %p157, %p158
      %p160 = scmp.ne.s32.totalorder %s148, %s149
      %p161 = scmp.eq.s32.totalorder %s34, 1
      %p162 = por %p160, %p161
      %p164 = scmp.ne.s32.totalorder %s149, %s163
      %p165 = scmp.eq.s32.totalorder %s34, 0
      %p166 = por %p164, %p165
      %s168 = sadd.s32 %s167, 1
      %p171 = scmp.eq.s32.totalorder %s28, 1
      %p172 = scmp.ne.s32.totalorder %s167, %s169
      %p173 = scmp.eq.s32.totalorder %s28, 0
      %p174 = por %p172, %p173
      %p175 = scmp.ne.s32.totalorder %s167, %s169
      %p176 = scmp.eq.s32.totalorder %s33, 1
      %p177 = por %p175, %p176
      %p178 = scmp.ne.s32.totalorder %s169, %s170
      %p179 = scmp.eq.s32.totalorder %s33, 0
      %p180 = por %p178, %p179
      %p181 = scmp.ne.s32.totalorder %s169, %s170
      %p182 = scmp.eq.s32.totalorder %s34, 1
      %p183 = por %p181, %p182
      %p185 = scmp.ne.s32.totalorder %s170, %s184
      %p186 = scmp.eq.s32.totalorder %s34, 0
      %p187 = por %p185, %p186
      %s189 = sadd.s32 %s188, 1
      %p192 = scmp.eq.s32.totalorder %s28, 1
      %p193 = scmp.ne.s32.totalorder %s188, %s190
      %p194 = scmp.eq.s32.totalorder %s28, 0
      %p195 = por %p193, %p194
      %p196 = scmp.ne.s32.totalorder %s188, %s190
      %p197 = scmp.eq.s32.totalorder %s33, 1
      %p198 = por %p196, %p197
      %p199 = scmp.ne.s32.totalorder %s190, %s191
      %p200 = scmp.eq.s32.totalorder %s33, 0
      %p201 = por %p199, %p200
      %p202 = scmp.ne.s32.totalorder %s190, %s191
      %p203 = scmp.eq.s32.totalorder %s34, 1
      %p204 = por %p202, %p203
      %p206 = scmp.ne.s32.totalorder %s191, %s205
      %p207 = scmp.eq.s32.totalorder %s34, 0
      %p208 = por %p206, %p207
      %s210 = sadd.s32 %s209, 1
      %p213 = scmp.eq.s32.totalorder %s28, 1
      %p214 = scmp.ne.s32.totalorder %s209, %s211
      %p215 = scmp.eq.s32.totalorder %s28, 0
      %p216 = por %p214, %p215
      %p217 = scmp.ne.s32.totalorder %s209, %s211
      %p218 = scmp.eq.s32.totalorder %s33, 1
      %p219 = por %p217, %p218
      %p220 = scmp.ne.s32.totalorder %s211, %s212
      %p221 = scmp.eq.s32.totalorder %s33, 0
      %p222 = por %p220, %p221
      %p223 = scmp.ne.s32.totalorder %s211, %s212
      %p224 = scmp.eq.s32.totalorder %s34, 1
      %p225 = por %p223, %p224
      %p227 = scmp.ne.s32.totalorder %s212, %s226
      %p228 = scmp.eq.s32.totalorder %s34, 0
      %p229 = por %p227, %p228
      %s231 = sadd.s32 %s230, 1
      %p234 = scmp.eq.s32.totalorder %s28, 1
      %p235 = scmp.ne.s32.totalorder %s230, %s232
      %p236 = scmp.eq.s32.totalorder %s28, 0
      %p237 = por %p235, %p236
      %p238 = scmp.ne.s32.totalorder %s230, %s232
      %p239 = scmp.eq.s32.totalorder %s33, 1
      %p240 = por %p238, %p239
      %p241 = scmp.ne.s32.totalorder %s232, %s233
      %p242 = scmp.eq.s32.totalorder %s33, 0
      %p243 = por %p241, %p242
      %p244 = scmp.ne.s32.totalorder %s232, %s233
      %p245 = scmp.eq.s32.totalorder %s34, 1
      %p246 = por %p244, %p245
      %p248 = scmp.ne.s32.totalorder %s233, %s247
      %p249 = scmp.eq.s32.totalorder %s34, 0
      %p250 = por %p248, %p249
      %s252 = sadd.s32 %s251, 1
      %p255 = scmp.eq.s32.totalorder %s28, 1
      %p256 = scmp.ne.s32.totalorder %s251, %s253
      %p257 = scmp.eq.s32.totalorder %s28, 0
      %p258 = por %p256, %p257
      %p259 = scmp.ne.s32.totalorder %s251, %s253
      %p260 = scmp.eq.s32.totalorder %s33, 1
      %p261 = por %p259, %p260
      %p262 = scmp.ne.s32.totalorder %s253, %s254
      %p263 = scmp.eq.s32.totalorder %s33, 0
      %p264 = por %p262, %p263
      %p265 = scmp.ne.s32.totalorder %s253, %s254
      %p266 = scmp.eq.s32.totalorder %s34, 1
      %p267 = por %p265, %p266
      %p269 = scmp.ne.s32.totalorder %s254, %s268
      %p270 = scmp.eq.s32.totalorder %s34, 0
      %p271 = por %p269, %p270
      %s272 = ssub.s32 %s28, %s35
      %p273 = scmp.eq.s32.totalorder %s272, 0
      %s275 = sadd.s32 %s274, 1
      %s276 = scalar_select %p273, %s274, %s275
      %p279 = pneg %p273
      %p280 = scmp.eq.s32.totalorder %s28, 1
      %p281 = por %p279, %p280
      %p282 = scmp.ne.s32.totalorder %s274, %s277
      %p283 = scmp.eq.s32.totalorder %s28, 0
      %p284 = por %p282, %p283
      %p285 = scmp.ne.s32.totalorder %s274, %s277
      %p286 = scmp.eq.s32.totalorder %s33, 1
      %p287 = por %p285, %p286
      %p288 = scmp.ne.s32.totalorder %s277, %s278
      %p289 = scmp.eq.s32.totalorder %s33, 0
      %p290 = por %p288, %p289
      %p291 = scmp.ne.s32.totalorder %s277, %s278
      %p292 = scmp.eq.s32.totalorder %s34, 1
      %p293 = por %p291, %p292
      %p295 = scmp.ne.s32.totalorder %s278, %s294
      %p296 = scmp.eq.s32.totalorder %s34, 0
      %p297 = por %p295, %p296
      %s298 = ssub.s32 %s28, %s35
      %p299 = scmp.eq.s32.totalorder %s298, 0
      %s301 = sadd.s32 %s300, 1
      %s302 = scalar_select %p299, %s300, %s301
      %p305 = pneg %p299
      %p306 = scmp.eq.s32.totalorder %s28, 1
      %p307 = por %p305, %p306
      %p308 = scmp.ne.s32.totalorder %s300, %s303
      %p309 = scmp.eq.s32.totalorder %s28, 0
      %p310 = por %p308, %p309
      %p311 = scmp.ne.s32.totalorder %s300, %s303
      %p312 = scmp.eq.s32.totalorder %s33, 1
      %p313 = por %p311, %p312
      %p314 = scmp.ne.s32.totalorder %s303, %s304
      %p315 = scmp.eq.s32.totalorder %s33, 0
      %p316 = por %p314, %p315
      %p317 = scmp.ne.s32.totalorder %s303, %s304
      %p318 = scmp.eq.s32.totalorder %s34, 1
      %p319 = por %p317, %p318
      %p321 = scmp.ne.s32.totalorder %s304, %s320
      %p322 = scmp.eq.s32.totalorder %s34, 0
      %p323 = por %p321, %p322
      %p324 = scmp.le.s32.totalorder 1, %s28
      %p325 = scmp.lt.s32.totalorder %s28, 3
      %p326 = pnand %p324, %p325
      %p327 = pneg %p326
      // Predicated region
      $region9: #{tpu_custom_call.1} parent=5 // pred_check
        _
      $region10: #{tpu_custom_call.1} parent=5 // pred_check_branch
        %329 = sbr.rel (%p326) target = $region12
      $region11: #{tpu_custom_call.1} parent=5 // pred_region
        %s330 = ssub.s32 %s28, 1
        // Predicated region
        $region13: #{tpu_custom_call.1} parent=11 // pred_check
          %p331 = pneg %p75
        $region14: #{tpu_custom_call.1} parent=11 // pred_check_branch
          %333 = sbr.rel (%p331) target = $region16
        $region15: #{tpu_custom_call.1} parent=11 // pred_region
          %s335 = ssub.s32 128, 128
          %336 = vsyncadd [#allocation7], %s335
          %s338 = sshll.u32 [#allocation6], 4
          %s339 = int_to_ptr.vmem [resolvable:$true] %s338
          %341 = dma.hbm_to_vmem [thread:$0]  %s1, 128, %s339, [#allocation7]
        $region16: #{tpu_custom_call.1} parent=11 // pred_fallthru
          _
        // Predicated region
        $region17: #{tpu_custom_call.1} parent=11 // pred_check
          %p342 = pneg %p96
        $region18: #{tpu_custom_call.1} parent=11 // pred_check_branch
          %344 = sbr.rel (%p342) target = $region20
        $region19: #{tpu_custom_call.1} parent=11 // pred_region
          %s346 = ssub.s32 128, 128
          %347 = vsyncadd [#allocation7], %s346
          %s349 = sshll.u32 [#allocation8], 4
          %s350 = int_to_ptr.vmem [resolvable:$true] %s349
          %352 = dma.hbm_to_vmem [thread:$0]  %s2, 128, %s350, [#allocation7]
        $region20: #{tpu_custom_call.1} parent=11 // pred_fallthru
          _
        // Predicated region
        $region21: #{tpu_custom_call.1} parent=11 // pred_check
          %p353 = pneg %p117
        $region22: #{tpu_custom_call.1} parent=11 // pred_check_branch
          %355 = sbr.rel (%p353) target = $region24
        $region23: #{tpu_custom_call.1} parent=11 // pred_region
          _
        $region24: #{tpu_custom_call.1} parent=11 // pred_fallthru
          _
        // Predicated region
        $region25: #{tpu_custom_call.1} parent=11 // pred_check
          %p356 = pneg %p138
        $region26: #{tpu_custom_call.1} parent=11 // pred_check_branch
          %358 = sbr.rel (%p356) target = $region28
        $region27: #{tpu_custom_call.1} parent=11 // pred_region
          _
        $region28: #{tpu_custom_call.1} parent=11 // pred_fallthru
          _
        // Predicated region
        $region29: #{tpu_custom_call.1} parent=11 // pred_check
          %p359 = pneg %p159
        $region30: #{tpu_custom_call.1} parent=11 // pred_check_branch
          %361 = sbr.rel (%p359) target = $region32
        $region31: #{tpu_custom_call.1} parent=11 // pred_region
          _
        $region32: #{tpu_custom_call.1} parent=11 // pred_fallthru
          _
        // Predicated region
        $region33: #{tpu_custom_call.1} parent=11 // pred_check
          %p362 = pneg %p180
        $region34: #{tpu_custom_call.1} parent=11 // pred_check_branch
          %364 = sbr.rel (%p362) target = $region36
        $region35: #{tpu_custom_call.1} parent=11 // pred_region
          _
        $region36: #{tpu_custom_call.1} parent=11 // pred_fallthru
          _
        // Predicated region
        $region37: #{tpu_custom_call.1} parent=11 // pred_check
          %p365 = pneg %p201
        $region38: #{tpu_custom_call.1} parent=11 // pred_check_branch
          %367 = sbr.rel (%p365) target = $region40
        $region39: #{tpu_custom_call.1} parent=11 // pred_region
          _
        $region40: #{tpu_custom_call.1} parent=11 // pred_fallthru
          _
        // Predicated region
        $region41: #{tpu_custom_call.1} parent=11 // pred_check
          %p368 = pneg %p222
        $region42: #{tpu_custom_call.1} parent=11 // pred_check_branch
          %370 = sbr.rel (%p368) target = $region44
        $region43: #{tpu_custom_call.1} parent=11 // pred_region
          _
        $region44: #{tpu_custom_call.1} parent=11 // pred_fallthru
          _
        // Predicated region
        $region45: #{tpu_custom_call.1} parent=11 // pred_check
          %p371 = pneg %p243
        $region46: #{tpu_custom_call.1} parent=11 // pred_check_branch
          %373 = sbr.rel (%p371) target = $region48
        $region47: #{tpu_custom_call.1} parent=11 // pred_region
          _
        $region48: #{tpu_custom_call.1} parent=11 // pred_fallthru
          _
        // Predicated region
        $region49: #{tpu_custom_call.1} parent=11 // pred_check
          %p374 = pneg %p264
        $region50: #{tpu_custom_call.1} parent=11 // pred_check_branch
          %376 = sbr.rel (%p374) target = $region52
        $region51: #{tpu_custom_call.1} parent=11 // pred_region
          _
        $region52: #{tpu_custom_call.1} parent=11 // pred_fallthru
          _
      $region12: #{tpu_custom_call.1} parent=5 // pred_fallthru
        _
      %p377 = scmp.lt.s32.totalorder %s28, 2
      // Predicated region
      $region53: #{tpu_custom_call.1} parent=5 // pred_check
        %p378 = pneg %p377
      $region54: #{tpu_custom_call.1} parent=5 // pred_check_branch
        %380 = sbr.rel (%p378) target = $region56
      $region55: #{tpu_custom_call.1} parent=5 // pred_region
        // Predicated region
        $region57: #{tpu_custom_call.1} parent=55 // pred_check
          %p381 = pneg %p48
        $region58: #{tpu_custom_call.1} parent=55 // pred_check_branch
          %383 = sbr.rel (%p381) target = $region60
        $region59: #{tpu_custom_call.1} parent=55 // pred_region
          %s384 = sand.u32 %s38, 1
          %s385 = scalar_lea.sflag [#allocation4], %s384
          %s386 = sand.u32 %s38, 1
          %s387 = smul.addr %s386, 8
          %s388 = scalar_lea.vmem [#allocation3], %s387
          %s390 = ssub.s32 128, 128
          %391 = vsyncadd %s385, %s390
          %s392 = smul.addr %s28, 128
          %s393 = scalar_lea.hbm %s0, %s392
          %s395 = sshll.u32 %s388, 4
          %s396 = int_to_ptr.vmem [resolvable:$true] %s395
          %398 = dma.hbm_to_vmem [thread:$0]  %s393, 128, %s396, %s385
        $region60: #{tpu_custom_call.1} parent=55 // pred_fallthru
          _
      $region56: #{tpu_custom_call.1} parent=5 // pred_fallthru
        _
      %p399 = scmp.le.s32.totalorder 1, %s28
      %p400 = scmp.lt.s32.totalorder %s28, 3
      %p401 = pnand %p399, %p400
      %p402 = pneg %p401
      // Predicated region
      $region61: #{tpu_custom_call.1} parent=5 // pred_check
        _
      $region62: #{tpu_custom_call.1} parent=5 // pred_check_branch
        %404 = sbr.rel (%p401) target = $region64
      $region63: #{tpu_custom_call.1} parent=5 // pred_region
        %s405 = ssub.s32 %s28, 1
        %s406 = sand.u32 %s41, 1
        %s407 = scalar_lea.sflag [#allocation4], %s406
        %s408 = sand.u32 %s41, 1
        %s409 = smul.addr %s408, 8
        %s410 = scalar_lea.vmem [#allocation3], %s409
        // Predicated region
        $region65: #{tpu_custom_call.1} parent=63 // pred_check
          %p411 = pneg %p54
        $region66: #{tpu_custom_call.1} parent=63 // pred_check_branch
          %413 = sbr.rel (%p411) target = $region68
        $region67: #{tpu_custom_call.1} parent=63 // pred_region
          %414 = dma.done %s407, 128
        $region68: #{tpu_custom_call.1} parent=63 // pred_fallthru
          _
        // Predicated region
        $region69: #{tpu_custom_call.1} parent=63 // pred_check
          %p415 = pneg %p75
        $region70: #{tpu_custom_call.1} parent=63 // pred_check_branch
          %417 = sbr.rel (%p415) target = $region72
        $region71: #{tpu_custom_call.1} parent=63 // pred_region
          %418 = dma.done [#allocation7], 128
        $region72: #{tpu_custom_call.1} parent=63 // pred_fallthru
          _
        // Predicated region
        $region73: #{tpu_custom_call.1} parent=63 // pred_check
          %p419 = pneg %p96
        $region74: #{tpu_custom_call.1} parent=63 // pred_check_branch
          %421 = sbr.rel (%p419) target = $region76
        $region75: #{tpu_custom_call.1} parent=63 // pred_region
          %422 = dma.done [#allocation7], 128
        $region76: #{tpu_custom_call.1} parent=63 // pred_fallthru
          _
        %s423 = sand.u32 %s41, 1
        %s424 = scalar_lea.sflag [#allocation4], %s423
        %s425 = sand.u32 %s41, 1
        %s426 = smul.addr %s425, 8
        %s427 = scalar_lea.vmem [#allocation3], %s426
        %p428 = pneg %p54
        %p429 = pneg %p51
        %p430 = pneg %p75
        %p431 = pneg %p72
        %p432 = pneg %p96
        %p433 = pneg %p93
        %p434 = pneg %p117
        %p435 = pneg %p114
        %p436 = pneg %p138
        %p437 = pneg %p135
        %p438 = pneg %p159
        %p439 = pneg %p156
        %p440 = pneg %p180
        %p441 = pneg %p177
        %p442 = pneg %p201
        %p443 = pneg %p198
        %p444 = pneg %p222
        %p445 = pneg %p219
        %p446 = pneg %p243
        %p447 = pneg %p240
        %p448 = pneg %p264
        %p449 = pneg %p261
        %p450 = pneg %p290
        %p451 = pneg %p287
        %s452 = sand.u32 %s277, 1
        %s453 = scalar_lea.sflag [#allocation5], %s452
        %s454 = sand.u32 %s277, 1
        %s455 = smul.addr %s454, 8
        %s456 = scalar_lea.vmem [#allocation9], %s455
        %p457 = pneg %p316
        %p458 = pneg %p313
        %p459 = scmp.lt.s32.totalorder %s33, 1
        %s460 = scalar_select %p459, %s33, 1
        %s461 = smul.addr %s460, 8
        %s462 = scalar_lea.vmem %s12, %s461
        %p463 = scmp.lt.s32.totalorder %s33, 1
        %s464 = scalar_select %p463, %s33, 1
        %s465 = smul.addr %s464, 8
        %s466 = scalar_lea.vmem %s12, %s465
        %v468 = vld [vmem:[%s410] sm:$0xff]
        %v469 = vld [vmem:[#allocation6] sm:$0xff]
        %v470 = vld [vmem:[#allocation8] sm:$0xff]
        %v471 = vld [vmem:[%s9] sm:$0x1]
        %v473 = vlaneseq
        %v474 = vshrl.u32 %v473, 7
        %v475 = vsub.s32 0, %v474
        %v476 = vrot.slane %v471, %v475
        %v478 = vmul.f32 %v468, %v476
        %vm479 = vcmask 261120
        %v480 = vsel %vm479, %v478, 0.0
        %481 = vadd.xlane.f32.xlu0 %v480
        %v482 = vpop.xlane.xlu0 %481
        %v483 = vld [vmem:[#allocation2] sm:$0x1]
        %v485 = vlaneseq
        %v486 = vshrl.u32 %v485, 7
        %v487 = vsub.s32 0, %v486
        %v488 = vrot.slane %v483, %v487
        %v490 = vadd.f32 %v482, %v488
        %v491 = vxor.u32 %v490, 2147483648
        %v492 = vmul.f32 %v491, 1.442695
        %v493 = vpow.pop %v492
        %v494 = vadd.f32 %v493, 1.0
        %v495 = vrcp.pop %v494
        %v496 = vmul.f32 1.0, %v495
        %vm497 = vcmask 7168
        %498 = vst.msk [vmem:[%s466] sm:$0xff] %vm497, %v496
        %v499 = vlaneseq
        %v500 = vshrl.u32 %v499, 7
        %v501 = vlaneseq
        %v502 = vand.u32 %v501, 127
        %vm503 = vcmp.gt.s32.totalorder %v502, %v500
        %v504 = vsel %vm503, -inf, 0.0
        %v505 = vmul.f32 %v469, 0.35355338
        %v506 = vmul.f32 %v470, 0.35355338
        %v507 = vld [vmem:[%s3] sm:$0x1]
        %v508 = vmul.f32 %v468, %v468
        %v509 = vsel %vm479, %v508, 0.0
        %510 = vadd.xlane.f32.xlu0 %v509
        %v511 = vpop.xlane.xlu0 %510
        %v512 = vrcp.pop 32.0
        %v513 = vmul.f32 %v511, %v512
        %v514 = vadd.f32 %v513, 1e-05
        %v515 = vrsqrt.pop %v514
        %v516 = vmul.f32 %v468, %v515
        %v518 = vlaneseq
        %v519 = vshrl.u32 %v518, 7
        %v520 = vsub.s32 0, %v519
        %v521 = vrot.slane %v507, %v520
        %v523 = vmul.f32 %v521, %v516
        %v524 = vpack.c.bf16 %v523, %v523
        %v525 = vld [vmem:[%s4] sm:$0xf]
        %v526 = vld [vmem:[%s4 + $0x4] sm:$0xf]
        %v527 = vld [vmem:[%s4 + $0x8] sm:$0xf]
        %v528 = vld [vmem:[%s4 + $0xc] sm:$0xf]
        %v533 = vunpack.c.l.b16 %v525
        %v534 = vunpack.c.l.b16 %v526
        %v535 = vunpack.c.l.b16 %v527
        %v536 = vunpack.c.l.b16 %v528
        %v537 = vpack.c.b16 %v534, %v533
        %v538 = vpack.c.b16 %v536, %v535
        %v542 = vsel %vm479, %v524, 0
        %544 = vmatprep.subr.bf16.mxu0 0
        %545 = vmatpush1.bf16.msra.mxu0 0
        %546 = vmatprep.subr.bf16.mxu0 0
        %547 = vmatpush1.bf16.msra.mxu0 0
        %548 = vmatprep.subr.bf16.mxu0 0
        %549 = vmatpush1.bf16.msra.mxu0 0
        %550 = vmatprep.subr.bf16.mxu0 0
        %551 = vmatpush1.bf16.msra.mxu0 0
        %552 = vmatprep.subr.bf16.mxu0 0
        %553 = vmatpush1.bf16.msra.mxu0 0
        %554 = vmatprep.subr.bf16.mxu0 0
        %555 = vmatpush1.bf16.msra.mxu0 0
        %556 = vmatprep.subr.bf16.mxu0 0
        %557 = vmatpush1.bf16.msra.mxu0 %v538
        %558 = vmatprep.subr.bf16.mxu0 0
        %559 = vmatpush1.bf16.msra.mxu0 %v537
        %560 = vmatprep.subr.bf16.mxu0 0
        %561 = vmatpush2.bf16.msra.mxu0 0
        %562 = vmatprep.subr.bf16.mxu0 0
        %563 = vmatpush2.bf16.msra.mxu0 0
        %564 = vmatprep.subr.bf16.mxu0 0
        %565 = vmatpush2.bf16.msra.mxu0 0
        %566 = vmatprep.subr.bf16.mxu0 0
        %567 = vmatpush2.bf16.msra.mxu0 0
        %568 = vmatprep.subr.bf16.mxu0 0
        %569 = vmatpush2.bf16.msra.mxu0 0
        %570 = vmatprep.subr.bf16.mxu0 0
        %571 = vmatpush2.bf16.msra.mxu0 0
        %572 = vmatprep.subr.bf16.mxu0 0
        %573 = vmatpush2.bf16.msra.mxu0 0
        %574 = vmatprep.subr.bf16.mxu0 0
        %575 = vmatpush2.bf16.msra.mxu0 0
        %576 = vmatprep.mubr.bf16.mxu0 0
        %577 = vmatmul.mubr.bf16.gmra.mxu0 %v542
        %v578 = vpop.f32.mrf.mxu0
        %v579 = vadd.f32 0.0, %v578
        %v580 = vpop.f32.mrf.mxu0
        %v581 = vpop.f32.mrf.mxu0
        %v582 = vpop.f32.mrf.mxu0
        %583 = vdwg.mxu0
        %585 = vrot.lane.b32.xlu0 %v579, 104
        %v586 = vpop.permute.xlu0 %585
        %588 = vrot.lane.b32.xlu0 %v579, 80
        %v589 = vpop.permute.xlu0 %588
        %591 = vrot.lane.b32.xlu0 %v579, 56
        %v592 = vpop.permute.xlu0 %591
        %v594 = vmul.f32 %v579, %v505
        %v595 = vmul.f32 %v586, %v505
        %v596 = vmul.f32 %v589, %v505
        %v597 = vmul.f32 %v592, %v505
        %599 = vrot.lane.b32.xlu0 %v506, 4
        %v600 = vpop.permute.xlu0 %599
        %v602 = vmul.f32 %v579, %v600
        %v603 = vmul.f32 %v586, %v600
        %v604 = vmul.f32 %v589, %v600
        %v605 = vmul.f32 %v592, %v600
        %610 = vrot.lane.b32.xlu0 %v602, 124
        %v611 = vpop.permute.xlu0 %610
        %612 = vrot.lane.b32.xlu0 %v603, 124
        %v613 = vpop.permute.xlu0 %612
        %614 = vrot.lane.b32.xlu0 %v604, 124
        %v615 = vpop.permute.xlu0 %614
        %616 = vrot.lane.b32.xlu0 %v605, 124
        %v617 = vpop.permute.xlu0 %616
        %v622 = vsub.f32 %v594, %v611
        %v623 = vsub.f32 %v595, %v613
        %v624 = vsub.f32 %v596, %v615
        %v625 = vsub.f32 %v597, %v617
        %626 = vrot.lane.b32.xlu0 %v506, 124
        %v627 = vpop.permute.xlu0 %626
        %v629 = vmul.f32 %v579, %v627
        %v630 = vmul.f32 %v586, %v627
        %v631 = vmul.f32 %v589, %v627
        %v632 = vmul.f32 %v592, %v627
        %637 = vrot.lane.b32.xlu0 %v629, 4
        %v638 = vpop.permute.xlu0 %637
        %639 = vrot.lane.b32.xlu0 %v630, 4
        %v640 = vpop.permute.xlu0 %639
        %641 = vrot.lane.b32.xlu0 %v631, 4
        %v642 = vpop.permute.xlu0 %641
        %643 = vrot.lane.b32.xlu0 %v632, 4
        %v644 = vpop.permute.xlu0 %643
        %v649 = vadd.f32 %v594, %v638
        %v650 = vadd.f32 %v595, %v640
        %v651 = vadd.f32 %v596, %v642
        %v652 = vadd.f32 %v597, %v644
        %vm653 = vcmask 31744
        %v654 = vsel %vm653, %v622, %v649
        %v655 = vsel %vm653, %v623, %v650
        %v656 = vsel %vm653, %v624, %v651
        %v657 = vsel %vm653, %v625, %v652
        %659 = vrot.lane.b32.xlu0 %v469, 8
        %v660 = vpop.permute.xlu0 %659
        %v662 = vmul.f32 %v579, %v660
        %v663 = vmul.f32 %v586, %v660
        %v664 = vmul.f32 %v589, %v660
        %v665 = vmul.f32 %v592, %v660
        %667 = vrot.lane.b32.xlu0 %v470, 12
        %v668 = vpop.permute.xlu0 %667
        %v670 = vmul.f32 %v579, %v668
        %v671 = vmul.f32 %v586, %v668
        %v672 = vmul.f32 %v589, %v668
        %v673 = vmul.f32 %v592, %v668
        %678 = vrot.lane.b32.xlu0 %v670, 124
        %v679 = vpop.permute.xlu0 %678
        %680 = vrot.lane.b32.xlu0 %v671, 124
        %v681 = vpop.permute.xlu0 %680
        %682 = vrot.lane.b32.xlu0 %v672, 124
        %v683 = vpop.permute.xlu0 %682
        %684 = vrot.lane.b32.xlu0 %v673, 124
        %v685 = vpop.permute.xlu0 %684
        %v690 = vsub.f32 %v662, %v679
        %v691 = vsub.f32 %v663, %v681
        %v692 = vsub.f32 %v664, %v683
        %v693 = vsub.f32 %v665, %v685
        %694 = vrot.lane.b32.xlu0 %v470, 4
        %v695 = vpop.permute.xlu0 %694
        %v697 = vmul.f32 %v579, %v695
        %v698 = vmul.f32 %v586, %v695
        %v699 = vmul.f32 %v589, %v695
        %v700 = vmul.f32 %v592, %v695
        %705 = vrot.lane.b32.xlu0 %v697, 4
        %v706 = vpop.permute.xlu0 %705
        %707 = vrot.lane.b32.xlu0 %v698, 4
        %v708 = vpop.permute.xlu0 %707
        %709 = vrot.lane.b32.xlu0 %v699, 4
        %v710 = vpop.permute.xlu0 %709
        %711 = vrot.lane.b32.xlu0 %v700, 4
        %v712 = vpop.permute.xlu0 %711
        %v717 = vadd.f32 %v662, %v706
        %v718 = vadd.f32 %v663, %v708
        %v719 = vadd.f32 %v664, %v710
        %v720 = vadd.f32 %v665, %v712
        %725 = vrot.lane.b32.xlu0 %v690, 120
        %v726 = vpop.permute.xlu0 %725
        %727 = vrot.lane.b32.xlu0 %v691, 120
        %v728 = vpop.permute.xlu0 %727
        %729 = vrot.lane.b32.xlu0 %v692, 120
        %v730 = vpop.permute.xlu0 %729
        %731 = vrot.lane.b32.xlu0 %v693, 120
        %v732 = vpop.permute.xlu0 %731
        %741 = vrot.lane.b32.xlu0 %v717, 120
        %v742 = vpop.permute.xlu0 %741
        %743 = vrot.lane.b32.xlu0 %v718, 120
        %v744 = vpop.permute.xlu0 %743
        %745 = vrot.lane.b32.xlu0 %v719, 120
        %v746 = vpop.permute.xlu0 %745
        %747 = vrot.lane.b32.xlu0 %v720, 120
        %v748 = vpop.permute.xlu0 %747
        %v753 = vsel %vm653, %v726, %v742
        %v754 = vsel %vm653, %v728, %v744
        %v755 = vsel %vm653, %v730, %v746
        %v756 = vsel %vm653, %v732, %v748
        %v757 = vpack.c.bf16 %v654, %v654
        %v758 = vpack.c.bf16 %v655, %v655
        %v759 = vpack.c.bf16 %v656, %v656
        %v760 = vpack.c.bf16 %v657, %v657
        %v761 = vpack.c.bf16 %v753, %v753
        %v762 = vpack.c.bf16 %v754, %v754
        %v763 = vpack.c.bf16 %v755, %v755
        %v764 = vpack.c.bf16 %v756, %v756
        %vm765 = vcmask 64512
        %v767 = vsel %vm765, %v757, 0
        %v770 = vsel %vm765, %v761, 0
        %772 = vmatprep.subr.bf16.mxu0 0
        %773 = vmatpush1.bf16.xpose.msra.mxu0 0
        %774 = vmatprep.subr.bf16.mxu0 0
        %775 = vmatpush1.bf16.xpose.msra.mxu0 0
        %776 = vmatprep.subr.bf16.mxu0 0
        %777 = vmatpush1.bf16.xpose.msra.mxu0 0
        %778 = vmatprep.subr.bf16.mxu0 0
        %779 = vmatpush1.bf16.xpose.msra.mxu0 0
        %780 = vmatprep.subr.bf16.mxu0 0
        %781 = vmatpush1.bf16.xpose.msra.mxu0 0
        %782 = vmatprep.subr.bf16.mxu0 0
        %783 = vmatpush1.bf16.xpose.msra.mxu0 0
        %784 = vmatprep.subr.bf16.mxu0 0
        %785 = vmatpush1.bf16.xpose.msra.mxu0 0
        %786 = vmatprep.subr.bf16.mxu0 0
        %787 = vmatpush1.bf16.xpose.msra.mxu0 %v770
        %788 = vmatprep.subr.bf16.mxu0 0
        %789 = vmatpush2.bf16.xpose.msra.mxu0 0
        %790 = vmatprep.subr.bf16.mxu0 0
        %791 = vmatpush2.bf16.xpose.msra.mxu0 0
        %792 = vmatprep.subr.bf16.mxu0 0
        %793 = vmatpush2.bf16.xpose.msra.mxu0 0
        %794 = vmatprep.subr.bf16.mxu0 0
        %795 = vmatpush2.bf16.xpose.msra.mxu0 0
        %796 = vmatprep.subr.bf16.mxu0 0
        %797 = vmatpush2.bf16.xpose.msra.mxu0 0
        %798 = vmatprep.subr.bf16.mxu0 0
        %799 = vmatpush2.bf16.xpose.msra.mxu0 0
        %800 = vmatprep.subr.bf16.mxu0 0
        %801 = vmatpush2.bf16.xpose.msra.mxu0 0
        %802 = vmatprep.subr.bf16.mxu0 0
        %803 = vmatpush2.bf16.xpose.msra.mxu0 0
        %804 = vmatprep.mubr.bf16.mxu0 0
        %805 = vmatmul.mubr.bf16.gmra.mxu0 %v767
        %v806 = vpop.f32.mrf.mxu0
        %v807 = vadd.f32 %v504, %v806
        %v808 = vpop.f32.mrf.mxu0
        %v809 = vpop.f32.mrf.mxu0
        %v810 = vpop.f32.mrf.mxu0
        %811 = vdwg.mxu0
        %v813 = vsel %vm765, %v758, 0
        %v816 = vsel %vm765, %v762, 0
        %818 = vmatprep.subr.bf16.mxu0 0
        %819 = vmatpush1.bf16.xpose.msra.mxu0 0
        %820 = vmatprep.subr.bf16.mxu0 0
        %821 = vmatpush1.bf16.xpose.msra.mxu0 0
        %822 = vmatprep.subr.bf16.mxu0 0
        %823 = vmatpush1.bf16.xpose.msra.mxu0 0
        %824 = vmatprep.subr.bf16.mxu0 0
        %825 = vmatpush1.bf16.xpose.msra.mxu0 0
        %826 = vmatprep.subr.bf16.mxu0 0
        %827 = vmatpush1.bf16.xpose.msra.mxu0 0
        %828 = vmatprep.subr.bf16.mxu0 0
        %829 = vmatpush1.bf16.xpose.msra.mxu0 0
        %830 = vmatprep.subr.bf16.mxu0 0
        %831 = vmatpush1.bf16.xpose.msra.mxu0 0
        %832 = vmatprep.subr.bf16.mxu0 0
        %833 = vmatpush1.bf16.xpose.msra.mxu0 %v816
        %834 = vmatprep.subr.bf16.mxu0 0
        %835 = vmatpush2.bf16.xpose.msra.mxu0 0
        %836 = vmatprep.subr.bf16.mxu0 0
        %837 = vmatpush2.bf16.xpose.msra.mxu0 0
        %838 = vmatprep.subr.bf16.mxu0 0
        %839 = vmatpush2.bf16.xpose.msra.mxu0 0
        %840 = vmatprep.subr.bf16.mxu0 0
        %841 = vmatpush2.bf16.xpose.msra.mxu0 0
        %842 = vmatprep.subr.bf16.mxu0 0
        %843 = vmatpush2.bf16.xpose.msra.mxu0 0
        %844 = vmatprep.subr.bf16.mxu0 0
        %845 = vmatpush2.bf16.xpose.msra.mxu0 0
        %846 = vmatprep.subr.bf16.mxu0 0
        %847 = vmatpush2.bf16.xpose.msra.mxu0 0
        %848 = vmatprep.subr.bf16.mxu0 0
        %849 = vmatpush2.bf16.xpose.msra.mxu0 0
        %850 = vmatprep.mubr.bf16.mxu0 0
        %851 = vmatmul.mubr.bf16.gmra.mxu0 %v813
        %v852 = vpop.f32.mrf.mxu0
        %v853 = vadd.f32 %v504, %v852
        %v854 = vpop.f32.mrf.mxu0
        %v855 = vpop.f32.mrf.mxu0
        %v856 = vpop.f32.mrf.mxu0
        %857 = vdwg.mxu0
        %v859 = vsel %vm765, %v759, 0
        %v862 = vsel %vm765, %v763, 0
        %864 = vmatprep.subr.bf16.mxu0 0
        %865 = vmatpush1.bf16.xpose.msra.mxu0 0
        %866 = vmatprep.subr.bf16.mxu0 0
        %867 = vmatpush1.bf16.xpose.msra.mxu0 0
        %868 = vmatprep.subr.bf16.mxu0 0
        %869 = vmatpush1.bf16.xpose.msra.mxu0 0
        %870 = vmatprep.subr.bf16.mxu0 0
        %871 = vmatpush1.bf16.xpose.msra.mxu0 0
        %872 = vmatprep.subr.bf16.mxu0 0
        %873 = vmatpush1.bf16.xpose.msra.mxu0 0
        %874 = vmatprep.subr.bf16.mxu0 0
        %875 = vmatpush1.bf16.xpose.msra.mxu0 0
        %876 = vmatprep.subr.bf16.mxu0 0
        %877 = vmatpush1.bf16.xpose.msra.mxu0 0
        %878 = vmatprep.subr.bf16.mxu0 0
        %879 = vmatpush1.bf16.xpose.msra.mxu0 %v862
        %880 = vmatprep.subr.bf16.mxu0 0
        %881 = vmatpush2.bf16.xpose.msra.mxu0 0
        %882 = vmatprep.subr.bf16.mxu0 0
        %883 = vmatpush2.bf16.xpose.msra.mxu0 0
        %884 = vmatprep.subr.bf16.mxu0 0
        %885 = vmatpush2.bf16.xpose.msra.mxu0 0
        %886 = vmatprep.subr.bf16.mxu0 0
        %887 = vmatpush2.bf16.xpose.msra.mxu0 0
        %888 = vmatprep.subr.bf16.mxu0 0
        %889 = vmatpush2.bf16.xpose.msra.mxu0 0
        %890 = vmatprep.subr.bf16.mxu0 0
        %891 = vmatpush2.bf16.xpose.msra.mxu0 0
        %892 = vmatprep.subr.bf16.mxu0 0
        %893 = vmatpush2.bf16.xpose.msra.mxu0 0
        %894 = vmatprep.subr.bf16.mxu0 0
        %895 = vmatpush2.bf16.xpose.msra.mxu0 0
        %896 = vmatprep.mubr.bf16.mxu0 0
        %897 = vmatmul.mubr.bf16.gmra.mxu0 %v859
        %v898 = vpop.f32.mrf.mxu0
        %v899 = vadd.f32 %v504, %v898
        %v900 = vpop.f32.mrf.mxu0
        %v901 = vpop.f32.mrf.mxu0
        %v902 = vpop.f32.mrf.mxu0
        %903 = vdwg.mxu0
        %v905 = vsel %vm765, %v760, 0
        %v908 = vsel %vm765, %v764, 0
        %910 = vmatprep.subr.bf16.mxu0 0
        %911 = vmatpush1.bf16.xpose.msra.mxu0 0
        %912 = vmatprep.subr.bf16.mxu0 0
        %913 = vmatpush1.bf16.xpose.msra.mxu0 0
        %914 = vmatprep.subr.bf16.mxu0 0
        %915 = vmatpush1.bf16.xpose.msra.mxu0 0
        %916 = vmatprep.subr.bf16.mxu0 0
        %917 = vmatpush1.bf16.xpose.msra.mxu0 0
        %918 = vmatprep.subr.bf16.mxu0 0
        %919 = vmatpush1.bf16.xpose.msra.mxu0 0
        %920 = vmatprep.subr.bf16.mxu0 0
        %921 = vmatpush1.bf16.xpose.msra.mxu0 0
        %922 = vmatprep.subr.bf16.mxu0 0
        %923 = vmatpush1.bf16.xpose.msra.mxu0 0
        %924 = vmatprep.subr.bf16.mxu0 0
        %925 = vmatpush1.bf16.xpose.msra.mxu0 %v908
        %926 = vmatprep.subr.bf16.mxu0 0
        %927 = vmatpush2.bf16.xpose.msra.mxu0 0
        %928 = vmatprep.subr.bf16.mxu0 0
        %929 = vmatpush2.bf16.xpose.msra.mxu0 0
        %930 = vmatprep.subr.bf16.mxu0 0
        %931 = vmatpush2.bf16.xpose.msra.mxu0 0
        %932 = vmatprep.subr.bf16.mxu0 0
        %933 = vmatpush2.bf16.xpose.msra.mxu0 0
        %934 = vmatprep.subr.bf16.mxu0 0
        %935 = vmatpush2.bf16.xpose.msra.mxu0 0
        %936 = vmatprep.subr.bf16.mxu0 0
        %937 = vmatpush2.bf16.xpose.msra.mxu0 0
        %938 = vmatprep.subr.bf16.mxu0 0
        %939 = vmatpush2.bf16.xpose.msra.mxu0 0
        %940 = vmatprep.subr.bf16.mxu0 0
        %941 = vmatpush2.bf16.xpose.msra.mxu0 0
        %942 = vmatprep.mubr.bf16.mxu0 0
        %943 = vmatmul.mubr.bf16.gmra.mxu0 %v905
        %v944 = vpop.f32.mrf.mxu0
        %v945 = vadd.f32 %v504, %v944
        %v946 = vpop.f32.mrf.mxu0
        %v947 = vpop.f32.mrf.mxu0
        %v948 = vpop.f32.mrf.mxu0
        %949 = vdwg.mxu0
        %v950 = vsel %vm765, %v807, -inf
        %951 = vmax.xlane.f32.xlu0 %v950
        %v952 = vpop.xlane.xlu0 %951
        %v953 = vsel %vm765, %v853, -inf
        %954 = vmax.xlane.f32.xlu0 %v953
        %v955 = vpop.xlane.xlu0 %954
        %v956 = vsel %vm765, %v899, -inf
        %957 = vmax.xlane.f32.xlu0 %v956
        %v958 = vpop.xlane.xlu0 %957
        %v959 = vsel %vm765, %v945, -inf
        %960 = vmax.xlane.f32.xlu0 %v959
        %v961 = vpop.xlane.xlu0 %960
        %v962 = vsub.f32 %v807, %v952
        %v963 = vsub.f32 %v853, %v955
        %v964 = vsub.f32 %v899, %v958
        %v965 = vsub.f32 %v945, %v961
        %v966 = vmul.f32 %v962, 1.442695
        %v967 = vpow.pop %v966
        %v968 = vmul.f32 %v963, 1.442695
        %v969 = vpow.pop %v968
        %v970 = vmul.f32 %v964, 1.442695
        %v971 = vpow.pop %v970
        %v972 = vmul.f32 %v965, 1.442695
        %v973 = vpow.pop %v972
        %v974 = vsel %vm765, %v967, 0.0
        %975 = vadd.xlane.f32.xlu0 %v974
        %v976 = vpop.xlane.xlu0 %975
        %v977 = vsel %vm765, %v969, 0.0
        %978 = vadd.xlane.f32.xlu0 %v977
        %v979 = vpop.xlane.xlu0 %978
        %v980 = vsel %vm765, %v971, 0.0
        %981 = vadd.xlane.f32.xlu0 %v980
        %v982 = vpop.xlane.xlu0 %981
        %v983 = vsel %vm765, %v973, 0.0
        %984 = vadd.xlane.f32.xlu0 %v983
        %v985 = vpop.xlane.xlu0 %984
        %v986 = vrcp.pop %v976
        %v987 = vrcp.pop %v979
        %v988 = vrcp.pop %v982
        %v989 = vrcp.pop %v985
        %v990 = vmul.f32 %v967, %v986
        %v991 = vmul.f32 %v969, %v987
        %v992 = vmul.f32 %v971, %v988
        %v993 = vmul.f32 %v973, %v989
        %v994 = vpack.c.bf16 %v990, %v990
        %v995 = vpack.c.bf16 %v991, %v991
        %v996 = vpack.c.bf16 %v992, %v992
        %v997 = vpack.c.bf16 %v993, %v993
        %v998 = vpack.c.bf16 %v579, %v579
        %v999 = vpack.c.bf16 %v586, %v586
        %v1000 = vpack.c.bf16 %v589, %v589
        %v1001 = vpack.c.bf16 %v592, %v592
        %1003 = vrot.lane.b32.xlu0 %v998, 112
        %v1004 = vpop.permute.xlu0 %1003
        %v1006 = vsel %vm765, %v994, 0
        %vm1008 = vcmask 1043456
        %v1010 = vsel %vm1008, %v1004, 0
        %1012 = vmatprep.subr.bf16.mxu0 0
        %1013 = vmatpush1.bf16.msra.mxu0 0
        %1014 = vmatprep.subr.bf16.mxu0 0
        %1015 = vmatpush1.bf16.msra.mxu0 0
        %1016 = vmatprep.subr.bf16.mxu0 0
        %1017 = vmatpush1.bf16.msra.mxu0 0
        %1018 = vmatprep.subr.bf16.mxu0 0
        %1019 = vmatpush1.bf16.msra.mxu0 0
        %1020 = vmatprep.subr.bf16.mxu0 0
        %1021 = vmatpush1.bf16.msra.mxu0 0
        %1022 = vmatprep.subr.bf16.mxu0 0
        %1023 = vmatpush1.bf16.msra.mxu0 0
        %1024 = vmatprep.subr.bf16.mxu0 0
        %1025 = vmatpush1.bf16.msra.mxu0 0
        %1026 = vmatprep.subr.bf16.mxu0 0
        %1027 = vmatpush1.bf16.msra.mxu0 %v1010
        %1028 = vmatprep.subr.bf16.mxu0 0
        %1029 = vmatpush2.bf16.msra.mxu0 0
        %1030 = vmatprep.subr.bf16.mxu0 0
        %1031 = vmatpush2.bf16.msra.mxu0 0
        %1032 = vmatprep.subr.bf16.mxu0 0
        %1033 = vmatpush2.bf16.msra.mxu0 0
        %1034 = vmatprep.subr.bf16.mxu0 0
        %1035 = vmatpush2.bf16.msra.mxu0 0
        %1036 = vmatprep.subr.bf16.mxu0 0
        %1037 = vmatpush2.bf16.msra.mxu0 0
        %1038 = vmatprep.subr.bf16.mxu0 0
        %1039 = vmatpush2.bf16.msra.mxu0 0
        %1040 = vmatprep.subr.bf16.mxu0 0
        %1041 = vmatpush2.bf16.msra.mxu0 0
        %1042 = vmatprep.subr.bf16.mxu0 0
        %1043 = vmatpush2.bf16.msra.mxu0 0
        %1044 = vmatprep.mubr.bf16.mxu0 0
        %1045 = vmatmul.mubr.bf16.gmra.mxu0 %v1006
        %v1046 = vpop.f32.mrf.mxu0
        %v1047 = vadd.f32 0.0, %v1046
        %v1048 = vpop.f32.mrf.mxu0
        %v1049 = vpop.f32.mrf.mxu0
        %v1050 = vpop.f32.mrf.mxu0
        %1051 = vdwg.mxu0
        %1053 = vrot.lane.b32.xlu0 %v999, 112
        %v1054 = vpop.permute.xlu0 %1053
        %v1056 = vsel %vm765, %v995, 0
        %v1059 = vsel %vm1008, %v1054, 0
        %1061 = vmatprep.subr.bf16.mxu0 0
        %1062 = vmatpush1.bf16.msra.mxu0 0
        %1063 = vmatprep.subr.bf16.mxu0 0
        %1064 = vmatpush1.bf16.msra.mxu0 0
        %1065 = vmatprep.subr.bf16.mxu0 0
        %1066 = vmatpush1.bf16.msra.mxu0 0
        %1067 = vmatprep.subr.bf16.mxu0 0
        %1068 = vmatpush1.bf16.msra.mxu0 0
        %1069 = vmatprep.subr.bf16.mxu0 0
        %1070 = vmatpush1.bf16.msra.mxu0 0
        %1071 = vmatprep.subr.bf16.mxu0 0
        %1072 = vmatpush1.bf16.msra.mxu0 0
        %1073 = vmatprep.subr.bf16.mxu0 0
        %1074 = vmatpush1.bf16.msra.mxu0 0
        %1075 = vmatprep.subr.bf16.mxu0 0
        %1076 = vmatpush1.bf16.msra.mxu0 %v1059
        %1077 = vmatprep.subr.bf16.mxu0 0
        %1078 = vmatpush2.bf16.msra.mxu0 0
        %1079 = vmatprep.subr.bf16.mxu0 0
        %1080 = vmatpush2.bf16.msra.mxu0 0
        %1081 = vmatprep.subr.bf16.mxu0 0
        %1082 = vmatpush2.bf16.msra.mxu0 0
        %1083 = vmatprep.subr.bf16.mxu0 0
        %1084 = vmatpush2.bf16.msra.mxu0 0
        %1085 = vmatprep.subr.bf16.mxu0 0
        %1086 = vmatpush2.bf16.msra.mxu0 0
        %1087 = vmatprep.subr.bf16.mxu0 0
        %1088 = vmatpush2.bf16.msra.mxu0 0
        %1089 = vmatprep.subr.bf16.mxu0 0
        %1090 = vmatpush2.bf16.msra.mxu0 0
        %1091 = vmatprep.subr.bf16.mxu0 0
        %1092 = vmatpush2.bf16.msra.mxu0 0
        %1093 = vmatprep.mubr.bf16.mxu0 0
        %1094 = vmatmul.mubr.bf16.gmra.mxu0 %v1056
        %v1095 = vpop.f32.mrf.mxu0
        %v1096 = vadd.f32 0.0, %v1095
        %v1097 = vpop.f32.mrf.mxu0
        %v1098 = vpop.f32.mrf.mxu0
        %v1099 = vpop.f32.mrf.mxu0
        %1100 = vdwg.mxu0
        %1102 = vrot.lane.b32.xlu0 %v1000, 112
        %v1103 = vpop.permute.xlu0 %1102
        %v1105 = vsel %vm765, %v996, 0
        %v1108 = vsel %vm1008, %v1103, 0
        %1110 = vmatprep.subr.bf16.mxu0 0
        %1111 = vmatpush1.bf16.msra.mxu0 0
        %1112 = vmatprep.subr.bf16.mxu0 0
        %1113 = vmatpush1.bf16.msra.mxu0 0
        %1114 = vmatprep.subr.bf16.mxu0 0
        %1115 = vmatpush1.bf16.msra.mxu0 0
        %1116 = vmatprep.subr.bf16.mxu0 0
        %1117 = vmatpush1.bf16.msra.mxu0 0
        %1118 = vmatprep.subr.bf16.mxu0 0
        %1119 = vmatpush1.bf16.msra.mxu0 0
        %1120 = vmatprep.subr.bf16.mxu0 0
        %1121 = vmatpush1.bf16.msra.mxu0 0
        %1122 = vmatprep.subr.bf16.mxu0 0
        %1123 = vmatpush1.bf16.msra.mxu0 0
        %1124 = vmatprep.subr.bf16.mxu0 0
        %1125 = vmatpush1.bf16.msra.mxu0 %v1108
        %1126 = vmatprep.subr.bf16.mxu0 0
        %1127 = vmatpush2.bf16.msra.mxu0 0
        %1128 = vmatprep.subr.bf16.mxu0 0
        %1129 = vmatpush2.bf16.msra.mxu0 0
        %1130 = vmatprep.subr.bf16.mxu0 0
        %1131 = vmatpush2.bf16.msra.mxu0 0
        %1132 = vmatprep.subr.bf16.mxu0 0
        %1133 = vmatpush2.bf16.msra.mxu0 0
        %1134 = vmatprep.subr.bf16.mxu0 0
        %1135 = vmatpush2.bf16.msra.mxu0 0
        %1136 = vmatprep.subr.bf16.mxu0 0
        %1137 = vmatpush2.bf16.msra.mxu0 0
        %1138 = vmatprep.subr.bf16.mxu0 0
        %1139 = vmatpush2.bf16.msra.mxu0 0
        %1140 = vmatprep.subr.bf16.mxu0 0
        %1141 = vmatpush2.bf16.msra.mxu0 0
        %1142 = vmatprep.mubr.bf16.mxu0 0
        %1143 = vmatmul.mubr.bf16.gmra.mxu0 %v1105
        %v1144 = vpop.f32.mrf.mxu0
        %v1145 = vadd.f32 0.0, %v1144
        %v1146 = vpop.f32.mrf.mxu0
        %v1147 = vpop.f32.mrf.mxu0
        %v1148 = vpop.f32.mrf.mxu0
        %1149 = vdwg.mxu0
        %1151 = vrot.lane.b32.xlu0 %v1001, 112
        %v1152 = vpop.permute.xlu0 %1151
        %v1154 = vsel %vm765, %v997, 0
        %v1157 = vsel %vm1008, %v1152, 0
        %1159 = vmatprep.subr.bf16.mxu0 0
        %1160 = vmatpush1.bf16.msra.mxu0 0
        %1161 = vmatprep.subr.bf16.mxu0 0
        %1162 = vmatpush1.bf16.msra.mxu0 0
        %1163 = vmatprep.subr.bf16.mxu0 0
        %1164 = vmatpush1.bf16.msra.mxu0 0
        %1165 = vmatprep.subr.bf16.mxu0 0
        %1166 = vmatpush1.bf16.msra.mxu0 0
        %1167 = vmatprep.subr.bf16.mxu0 0
        %1168 = vmatpush1.bf16.msra.mxu0 0
        %1169 = vmatprep.subr.bf16.mxu0 0
        %1170 = vmatpush1.bf16.msra.mxu0 0
        %1171 = vmatprep.subr.bf16.mxu0 0
        %1172 = vmatpush1.bf16.msra.mxu0 0
        %1173 = vmatprep.subr.bf16.mxu0 0
        %1174 = vmatpush1.bf16.msra.mxu0 %v1157
        %1175 = vmatprep.subr.bf16.mxu0 0
        %1176 = vmatpush2.bf16.msra.mxu0 0
        %1177 = vmatprep.subr.bf16.mxu0 0
        %1178 = vmatpush2.bf16.msra.mxu0 0
        %1179 = vmatprep.subr.bf16.mxu0 0
        %1180 = vmatpush2.bf16.msra.mxu0 0
        %1181 = vmatprep.subr.bf16.mxu0 0
        %1182 = vmatpush2.bf16.msra.mxu0 0
        %1183 = vmatprep.subr.bf16.mxu0 0
        %1184 = vmatpush2.bf16.msra.mxu0 0
        %1185 = vmatprep.subr.bf16.mxu0 0
        %1186 = vmatpush2.bf16.msra.mxu0 0
        %1187 = vmatprep.subr.bf16.mxu0 0
        %1188 = vmatpush2.bf16.msra.mxu0 0
        %1189 = vmatprep.subr.bf16.mxu0 0
        %1190 = vmatpush2.bf16.msra.mxu0 0
        %1191 = vmatprep.mubr.bf16.mxu0 0
        %1192 = vmatmul.mubr.bf16.gmra.mxu0 %v1154
        %v1193 = vpop.f32.mrf.mxu0
        %v1194 = vadd.f32 0.0, %v1193
        %v1195 = vpop.f32.mrf.mxu0
        %v1196 = vpop.f32.mrf.mxu0
        %v1197 = vpop.f32.mrf.mxu0
        %1198 = vdwg.mxu0
        %1200 = vrot.lane.b32.xlu0 %v1096, 8
        %v1201 = vpop.permute.xlu0 %1200
        %1204 = vrot.lane.b32.xlu0 %v1145, 16
        %v1205 = vpop.permute.xlu0 %1204
        %1208 = vrot.lane.b32.xlu0 %v1194, 24
        %v1209 = vpop.permute.xlu0 %1208
        %v1211 = vsel %vm765, %v1047, %v1201
        %vm1212 = vcmask 130048
        %v1213 = vsel %vm1212, %v1211, %v1205
        %vm1214 = vcmask 195584
        %v1215 = vsel %vm1214, %v1213, %v1209
        %v1216 = vpack.c.bf16 %v1215, %v1215
        %v1217 = vld [vmem:[%s5] sm:$0xf]
        %v1218 = vld [vmem:[%s5 + $0x4] sm:$0xf]
        %v1219 = vld [vmem:[%s5 + $0x8] sm:$0xf]
        %v1220 = vld [vmem:[%s5 + $0xc] sm:$0xf]
        %v1225 = vunpack.c.l.b16 %v1217
        %v1226 = vunpack.c.l.b16 %v1218
        %v1227 = vunpack.c.l.b16 %v1219
        %v1228 = vunpack.c.l.b16 %v1220
        %v1229 = vpack.c.b16 %v1226, %v1225
        %v1230 = vpack.c.b16 %v1228, %v1227
        %v1234 = vsel %vm479, %v1216, 0
        %1236 = vmatprep.subr.bf16.mxu0 0
        %1237 = vmatpush1.bf16.msra.mxu0 0
        %1238 = vmatprep.subr.bf16.mxu0 0
        %1239 = vmatpush1.bf16.msra.mxu0 0
        %1240 = vmatprep.subr.bf16.mxu0 0
        %1241 = vmatpush1.bf16.msra.mxu0 0
        %1242 = vmatprep.subr.bf16.mxu0 0
        %1243 = vmatpush1.bf16.msra.mxu0 0
        %1244 = vmatprep.subr.bf16.mxu0 0
        %1245 = vmatpush1.bf16.msra.mxu0 0
        %1246 = vmatprep.subr.bf16.mxu0 0
        %1247 = vmatpush1.bf16.msra.mxu0 0
        %1248 = vmatprep.subr.bf16.mxu0 0
        %1249 = vmatpush1.bf16.msra.mxu0 %v1230
        %1250 = vmatprep.subr.bf16.mxu0 0
        %1251 = vmatpush1.bf16.msra.mxu0 %v1229
        %1252 = vmatprep.subr.bf16.mxu0 0
        %1253 = vmatpush2.bf16.msra.mxu0 0
        %1254 = vmatprep.subr.bf16.mxu0 0
        %1255 = vmatpush2.bf16.msra.mxu0 0
        %1256 = vmatprep.subr.bf16.mxu0 0
        %1257 = vmatpush2.bf16.msra.mxu0 0
        %1258 = vmatprep.subr.bf16.mxu0 0
        %1259 = vmatpush2.bf16.msra.mxu0 0
        %1260 = vmatprep.subr.bf16.mxu0 0
        %1261 = vmatpush2.bf16.msra.mxu0 0
        %1262 = vmatprep.subr.bf16.mxu0 0
        %1263 = vmatpush2.bf16.msra.mxu0 0
        %1264 = vmatprep.subr.bf16.mxu0 0
        %1265 = vmatpush2.bf16.msra.mxu0 0
        %1266 = vmatprep.subr.bf16.mxu0 0
        %1267 = vmatpush2.bf16.msra.mxu0 0
        %1268 = vmatprep.mubr.bf16.mxu0 0
        %1269 = vmatmul.mubr.bf16.gmra.mxu0 %v1234
        %v1270 = vpop.f32.mrf.mxu0
        %v1271 = vadd.f32 0.0, %v1270
        %v1272 = vpop.f32.mrf.mxu0
        %v1273 = vpop.f32.mrf.mxu0
        %v1274 = vpop.f32.mrf.mxu0
        %1275 = vdwg.mxu0
        %v1276 = vadd.f32 %v468, %v1271
        %v1277 = vld [vmem:[%s6] sm:$0x1]
        %v1278 = vmul.f32 %v1276, %v1276
        %v1279 = vsel %vm479, %v1278, 0.0
        %1280 = vadd.xlane.f32.xlu0 %v1279
        %v1281 = vpop.xlane.xlu0 %1280
        %v1282 = vmul.f32 %v1281, %v512
        %v1283 = vadd.f32 %v1282, 1e-05
        %v1284 = vrsqrt.pop %v1283
        %v1285 = vmul.f32 %v1276, %v1284
        %v1287 = vlaneseq
        %v1288 = vshrl.u32 %v1287, 7
        %v1289 = vsub.s32 0, %v1288
        %v1290 = vrot.slane %v1277, %v1289
        %v1292 = vmul.f32 %v1290, %v1285
        %v1293 = vpack.c.bf16 %v1292, %v1292
        %v1294 = vld [vmem:[%s7] sm:$0xf]
        %v1295 = vld [vmem:[%s7 + $0x4] sm:$0xf]
        %v1296 = vld [vmem:[%s7 + $0x8] sm:$0xf]
        %v1297 = vld [vmem:[%s7 + $0xc] sm:$0xf]
        %v1302 = vunpack.c.l.b16 %v1294
        %v1303 = vunpack.c.l.b16 %v1295
        %v1304 = vunpack.c.l.b16 %v1296
        %v1305 = vunpack.c.l.b16 %v1297
        %v1306 = vpack.c.b16 %v1303, %v1302
        %v1307 = vpack.c.b16 %v1305, %v1304
        %v1311 = vsel %vm479, %v1293, 0
        %1313 = vmatprep.subr.bf16.mxu0 0
        %1314 = vmatpush1.bf16.msra.mxu0 0
        %1315 = vmatprep.subr.bf16.mxu0 0
        %1316 = vmatpush1.bf16.msra.mxu0 0
        %1317 = vmatprep.subr.bf16.mxu0 0
        %1318 = vmatpush1.bf16.msra.mxu0 0
        %1319 = vmatprep.subr.bf16.mxu0 0
        %1320 = vmatpush1.bf16.msra.mxu0 0
        %1321 = vmatprep.subr.bf16.mxu0 0
        %1322 = vmatpush1.bf16.msra.mxu0 0
        %1323 = vmatprep.subr.bf16.mxu0 0
        %1324 = vmatpush1.bf16.msra.mxu0 0
        %1325 = vmatprep.subr.bf16.mxu0 0
        %1326 = vmatpush1.bf16.msra.mxu0 %v1307
        %1327 = vmatprep.subr.bf16.mxu0 0
        %1328 = vmatpush1.bf16.msra.mxu0 %v1306
        %1329 = vmatprep.subr.bf16.mxu0 0
        %1330 = vmatpush2.bf16.msra.mxu0 0
        %1331 = vmatprep.subr.bf16.mxu0 0
        %1332 = vmatpush2.bf16.msra.mxu0 0
        %1333 = vmatprep.subr.bf16.mxu0 0
        %1334 = vmatpush2.bf16.msra.mxu0 0
        %1335 = vmatprep.subr.bf16.mxu0 0
        %1336 = vmatpush2.bf16.msra.mxu0 0
        %1337 = vmatprep.subr.bf16.mxu0 0
        %1338 = vmatpush2.bf16.msra.mxu0 0
        %1339 = vmatprep.subr.bf16.mxu0 0
        %1340 = vmatpush2.bf16.msra.mxu0 0
        %1341 = vmatprep.subr.bf16.mxu0 0
        %1342 = vmatpush2.bf16.msra.mxu0 0
        %1343 = vmatprep.subr.bf16.mxu0 0
        %1344 = vmatpush2.bf16.msra.mxu0 0
        %1345 = vmatprep.mubr.bf16.mxu0 0
        %1346 = vmatmul.mubr.bf16.gmra.mxu0 %v1311
        %v1347 = vpop.f32.mrf.mxu0
        %v1348 = vadd.f32 0.0, %v1347
        %v1349 = vpop.f32.mrf.mxu0
        %v1350 = vpop.f32.mrf.mxu0
        %v1351 = vpop.f32.mrf.mxu0
        %1352 = vdwg.mxu0
        %v1353 = vxor.u32 %v1348, 2147483648
        %v1354 = vmul.f32 %v1353, 1.442695
        %v1355 = vpow.pop %v1354
        %v1356 = vadd.f32 %v1355, 1.0
        %v1357 = vrcp.pop %v1356
        %v1358 = vmul.f32 1.0, %v1357
        %v1359 = vmul.f32 %v1348, %v1358
        %1361 = vrot.lane.b32.xlu0 %v1348, 64
        %v1362 = vpop.permute.xlu0 %1361
        %v1364 = vmul.f32 %v1359, %v1362
        %v1365 = vpack.c.bf16 %v1364, %v1364
        %v1366 = vld [vmem:[%s8] sm:$0xf]
        %v1367 = vld [vmem:[%s8 + $0x4] sm:$0xf]
        %v1368 = vld [vmem:[%s8 + $0x8] sm:$0xf]
        %v1369 = vld [vmem:[%s8 + $0xc] sm:$0xf]
        %v1370 = vld [vmem:[%s8 + $0x10] sm:$0xf]
        %v1371 = vld [vmem:[%s8 + $0x14] sm:$0xf]
        %v1372 = vld [vmem:[%s8 + $0x18] sm:$0xf]
        %v1373 = vld [vmem:[%s8 + $0x1c] sm:$0xf]
        %v1382 = vunpack.c.l.b16 %v1366
        %v1383 = vunpack.c.l.b16 %v1367
        %v1384 = vunpack.c.l.b16 %v1368
        %v1385 = vunpack.c.l.b16 %v1369
        %v1386 = vunpack.c.l.b16 %v1370
        %v1387 = vunpack.c.l.b16 %v1371
        %v1388 = vunpack.c.l.b16 %v1372
        %v1389 = vunpack.c.l.b16 %v1373
        %v1390 = vpack.c.b16 %v1383, %v1382
        %v1391 = vpack.c.b16 %v1385, %v1384
        %v1392 = vpack.c.b16 %v1387, %v1386
        %v1393 = vpack.c.b16 %v1389, %v1388
        %vm1398 = vcmask 523264
        %v1400 = vsel %vm1398, %v1365, 0
        %1402 = vmatprep.subr.bf16.mxu0 0
        %1403 = vmatpush1.bf16.msra.mxu0 0
        %1404 = vmatprep.subr.bf16.mxu0 0
        %1405 = vmatpush1.bf16.msra.mxu0 0
        %1406 = vmatprep.subr.bf16.mxu0 0
        %1407 = vmatpush1.bf16.msra.mxu0 0
        %1408 = vmatprep.subr.bf16.mxu0 0
        %1409 = vmatpush1.bf16.msra.mxu0 0
        %1410 = vmatprep.subr.bf16.mxu0 0
        %1411 = vmatpush1.bf16.msra.mxu0 %v1393
        %1412 = vmatprep.subr.bf16.mxu0 0
        %1413 = vmatpush1.bf16.msra.mxu0 %v1392
        %1414 = vmatprep.subr.bf16.mxu0 0
        %1415 = vmatpush1.bf16.msra.mxu0 %v1391
        %1416 = vmatprep.subr.bf16.mxu0 0
        %1417 = vmatpush1.bf16.msra.mxu0 %v1390
        %1418 = vmatprep.subr.bf16.mxu0 0
        %1419 = vmatpush2.bf16.msra.mxu0 0
        %1420 = vmatprep.subr.bf16.mxu0 0
        %1421 = vmatpush2.bf16.msra.mxu0 0
        %1422 = vmatprep.subr.bf16.mxu0 0
        %1423 = vmatpush2.bf16.msra.mxu0 0
        %1424 = vmatprep.subr.bf16.mxu0 0
        %1425 = vmatpush2.bf16.msra.mxu0 0
        %1426 = vmatprep.subr.bf16.mxu0 0
        %1427 = vmatpush2.bf16.msra.mxu0 0
        %1428 = vmatprep.subr.bf16.mxu0 0
        %1429 = vmatpush2.bf16.msra.mxu0 0
        %1430 = vmatprep.subr.bf16.mxu0 0
        %1431 = vmatpush2.bf16.msra.mxu0 0
        %1432 = vmatprep.subr.bf16.mxu0 0
        %1433 = vmatpush2.bf16.msra.mxu0 0
        %1434 = vmatprep.mubr.bf16.mxu0 0
        %1435 = vmatmul.mubr.bf16.gmra.mxu0 %v1400
        %v1436 = vpop.f32.mrf.mxu0
        %v1437 = vadd.f32 0.0, %v1436
        %v1438 = vpop.f32.mrf.mxu0
        %v1439 = vpop.f32.mrf.mxu0
        %v1440 = vpop.f32.mrf.mxu0
        %1441 = vdwg.mxu0
        %v1442 = vadd.f32 %v1276, %v1437
        %s1443 = scalar_lea.vmem %s3, 1
        %v1444 = vld [vmem:[%s1443] sm:$0x1]
        %v1445 = vmul.f32 %v1442, %v1442
        %v1446 = vsel %vm479, %v1445, 0.0
        %1447 = vadd.xlane.f32.xlu0 %v1446
        %v1448 = vpop.xlane.xlu0 %1447
        %v1449 = vmul.f32 %v1448, %v512
        %v1450 = vadd.f32 %v1449, 1e-05
        %v1451 = vrsqrt.pop %v1450
        %v1452 = vmul.f32 %v1442, %v1451
        %v1454 = vlaneseq
        %v1455 = vshrl.u32 %v1454, 7
        %v1456 = vsub.s32 0, %v1455
        %v1457 = vrot.slane %v1444, %v1456
        %v1459 = vmul.f32 %v1457, %v1452
        %v1460 = vpack.c.bf16 %v1459, %v1459
        %s1461 = scalar_lea.vmem %s4, 16
        %v1462 = vld [vmem:[%s1461] sm:$0xf]
        %v1463 = vld [vmem:[%s1461 + $0x4] sm:$0xf]
        %v1464 = vld [vmem:[%s1461 + $0x8] sm:$0xf]
        %v1465 = vld [vmem:[%s1461 + $0xc] sm:$0xf]
        %v1470 = vunpack.c.l.b16 %v1462
        %v1471 = vunpack.c.l.b16 %v1463
        %v1472 = vunpack.c.l.b16 %v1464
        %v1473 = vunpack.c.l.b16 %v1465
        %v1474 = vpack.c.b16 %v1471, %v1470
        %v1475 = vpack.c.b16 %v1473, %v1472
        %v1479 = vsel %vm479, %v1460, 0
        %1481 = vmatprep.subr.bf16.mxu0 0
        %1482 = vmatpush1.bf16.msra.mxu0 0
        %1483 = vmatprep.subr.bf16.mxu0 0
        %1484 = vmatpush1.bf16.msra.mxu0 0
        %1485 = vmatprep.subr.bf16.mxu0 0
        %1486 = vmatpush1.bf16.msra.mxu0 0
        %1487 = vmatprep.subr.bf16.mxu0 0
        %1488 = vmatpush1.bf16.msra.mxu0 0
        %1489 = vmatprep.subr.bf16.mxu0 0
        %1490 = vmatpush1.bf16.msra.mxu0 0
        %1491 = vmatprep.subr.bf16.mxu0 0
        %1492 = vmatpush1.bf16.msra.mxu0 0
        %1493 = vmatprep.subr.bf16.mxu0 0
        %1494 = vmatpush1.bf16.msra.mxu0 %v1475
        %1495 = vmatprep.subr.bf16.mxu0 0
        %1496 = vmatpush1.bf16.msra.mxu0 %v1474
        %1497 = vmatprep.subr.bf16.mxu0 0
        %1498 = vmatpush2.bf16.msra.mxu0 0
        %1499 = vmatprep.subr.bf16.mxu0 0
        %1500 = vmatpush2.bf16.msra.mxu0 0
        %1501 = vmatprep.subr.bf16.mxu0 0
        %1502 = vmatpush2.bf16.msra.mxu0 0
        %1503 = vmatprep.subr.bf16.mxu0 0
        %1504 = vmatpush2.bf16.msra.mxu0 0
        %1505 = vmatprep.subr.bf16.mxu0 0
        %1506 = vmatpush2.bf16.msra.mxu0 0
        %1507 = vmatprep.subr.bf16.mxu0 0
        %1508 = vmatpush2.bf16.msra.mxu0 0
        %1509 = vmatprep.subr.bf16.mxu0 0
        %1510 = vmatpush2.bf16.msra.mxu0 0
        %1511 = vmatprep.subr.bf16.mxu0 0
        %1512 = vmatpush2.bf16.msra.mxu0 0
        %1513 = vmatprep.mubr.bf16.mxu0 0
        %1514 = vmatmul.mubr.bf16.gmra.mxu0 %v1479
        %v1515 = vpop.f32.mrf.mxu0
        %v1516 = vadd.f32 0.0, %v1515
        %v1517 = vpop.f32.mrf.mxu0
        %v1518 = vpop.f32.mrf.mxu0
        %v1519 = vpop.f32.mrf.mxu0
        %1520 = vdwg.mxu0
        %1522 = vrot.lane.b32.xlu0 %v1516, 104
        %v1523 = vpop.permute.xlu0 %1522
        %1525 = vrot.lane.b32.xlu0 %v1516, 80
        %v1526 = vpop.permute.xlu0 %1525
        %1528 = vrot.lane.b32.xlu0 %v1516, 56
        %v1529 = vpop.permute.xlu0 %1528
        %v1531 = vmul.f32 %v1516, %v505
        %v1532 = vmul.f32 %v1523, %v505
        %v1533 = vmul.f32 %v1526, %v505
        %v1534 = vmul.f32 %v1529, %v505
        %v1535 = vmul.f32 %v1516, %v600
        %v1536 = vmul.f32 %v1523, %v600
        %v1537 = vmul.f32 %v1526, %v600
        %v1538 = vmul.f32 %v1529, %v600
        %1543 = vrot.lane.b32.xlu0 %v1535, 124
        %v1544 = vpop.permute.xlu0 %1543
        %1545 = vrot.lane.b32.xlu0 %v1536, 124
        %v1546 = vpop.permute.xlu0 %1545
        %1547 = vrot.lane.b32.xlu0 %v1537, 124
        %v1548 = vpop.permute.xlu0 %1547
        %1549 = vrot.lane.b32.xlu0 %v1538, 124
        %v1550 = vpop.permute.xlu0 %1549
        %v1555 = vsub.f32 %v1531, %v1544
        %v1556 = vsub.f32 %v1532, %v1546
        %v1557 = vsub.f32 %v1533, %v1548
        %v1558 = vsub.f32 %v1534, %v1550
        %v1559 = vmul.f32 %v1516, %v627
        %v1560 = vmul.f32 %v1523, %v627
        %v1561 = vmul.f32 %v1526, %v627
        %v1562 = vmul.f32 %v1529, %v627
        %1567 = vrot.lane.b32.xlu0 %v1559, 4
        %v1568 = vpop.permute.xlu0 %1567
        %1569 = vrot.lane.b32.xlu0 %v1560, 4
        %v1570 = vpop.permute.xlu0 %1569
        %1571 = vrot.lane.b32.xlu0 %v1561, 4
        %v1572 = vpop.permute.xlu0 %1571
        %1573 = vrot.lane.b32.xlu0 %v1562, 4
        %v1574 = vpop.permute.xlu0 %1573
        %v1579 = vadd.f32 %v1531, %v1568
        %v1580 = vadd.f32 %v1532, %v1570
        %v1581 = vadd.f32 %v1533, %v1572
        %v1582 = vadd.f32 %v1534, %v1574
        %v1583 = vsel %vm653, %v1555, %v1579
        %v1584 = vsel %vm653, %v1556, %v1580
        %v1585 = vsel %vm653, %v1557, %v1581
        %v1586 = vsel %vm653, %v1558, %v1582
        %v1587 = vmul.f32 %v1516, %v660
        %v1588 = vmul.f32 %v1523, %v660
        %v1589 = vmul.f32 %v1526, %v660
        %v1590 = vmul.f32 %v1529, %v660
        %v1591 = vmul.f32 %v1516, %v668
        %v1592 = vmul.f32 %v1523, %v668
        %v1593 = vmul.f32 %v1526, %v668
        %v1594 = vmul.f32 %v1529, %v668
        %1599 = vrot.lane.b32.xlu0 %v1591, 124
        %v1600 = vpop.permute.xlu0 %1599
        %1601 = vrot.lane.b32.xlu0 %v1592, 124
        %v1602 = vpop.permute.xlu0 %1601
        %1603 = vrot.lane.b32.xlu0 %v1593, 124
        %v1604 = vpop.permute.xlu0 %1603
        %1605 = vrot.lane.b32.xlu0 %v1594, 124
        %v1606 = vpop.permute.xlu0 %1605
        %v1611 = vsub.f32 %v1587, %v1600
        %v1612 = vsub.f32 %v1588, %v1602
        %v1613 = vsub.f32 %v1589, %v1604
        %v1614 = vsub.f32 %v1590, %v1606
        %v1615 = vmul.f32 %v1516, %v695
        %v1616 = vmul.f32 %v1523, %v695
        %v1617 = vmul.f32 %v1526, %v695
        %v1618 = vmul.f32 %v1529, %v695
        %1623 = vrot.lane.b32.xlu0 %v1615, 4
        %v1624 = vpop.permute.xlu0 %1623
        %1625 = vrot.lane.b32.xlu0 %v1616, 4
        %v1626 = vpop.permute.xlu0 %1625
        %1627 = vrot.lane.b32.xlu0 %v1617, 4
        %v1628 = vpop.permute.xlu0 %1627
        %1629 = vrot.lane.b32.xlu0 %v1618, 4
        %v1630 = vpop.permute.xlu0 %1629
        %v1635 = vadd.f32 %v1587, %v1624
        %v1636 = vadd.f32 %v1588, %v1626
        %v1637 = vadd.f32 %v1589, %v1628
        %v1638 = vadd.f32 %v1590, %v1630
        %1643 = vrot.lane.b32.xlu0 %v1611, 120
        %v1644 = vpop.permute.xlu0 %1643
        %1645 = vrot.lane.b32.xlu0 %v1612, 120
        %v1646 = vpop.permute.xlu0 %1645
        %1647 = vrot.lane.b32.xlu0 %v1613, 120
        %v1648 = vpop.permute.xlu0 %1647
        %1649 = vrot.lane.b32.xlu0 %v1614, 120
        %v1650 = vpop.permute.xlu0 %1649
        %1659 = vrot.lane.b32.xlu0 %v1635, 120
        %v1660 = vpop.permute.xlu0 %1659
        %1661 = vrot.lane.b32.xlu0 %v1636, 120
        %v1662 = vpop.permute.xlu0 %1661
        %1663 = vrot.lane.b32.xlu0 %v1637, 120
        %v1664 = vpop.permute.xlu0 %1663
        %1665 = vrot.lane.b32.xlu0 %v1638, 120
        %v1666 = vpop.permute.xlu0 %1665
        %v1671 = vsel %vm653, %v1644, %v1660
        %v1672 = vsel %vm653, %v1646, %v1662
        %v1673 = vsel %vm653, %v1648, %v1664
        %v1674 = vsel %vm653, %v1650, %v1666
        %v1675 = vpack.c.bf16 %v1583, %v1583
        %v1676 = vpack.c.bf16 %v1584, %v1584
        %v1677 = vpack.c.bf16 %v1585, %v1585
        %v1678 = vpack.c.bf16 %v1586, %v1586
        %v1679 = vpack.c.bf16 %v1671, %v1671
        %v1680 = vpack.c.bf16 %v1672, %v1672
        %v1681 = vpack.c.bf16 %v1673, %v1673
        %v1682 = vpack.c.bf16 %v1674, %v1674
        %v1684 = vsel %vm765, %v1675, 0
        %v1687 = vsel %vm765, %v1679, 0
        %1689 = vmatprep.subr.bf16.mxu0 0
        %1690 = vmatpush1.bf16.xpose.msra.mxu0 0
        %1691 = vmatprep.subr.bf16.mxu0 0
        %1692 = vmatpush1.bf16.xpose.msra.mxu0 0
        %1693 = vmatprep.subr.bf16.mxu0 0
        %1694 = vmatpush1.bf16.xpose.msra.mxu0 0
        %1695 = vmatprep.subr.bf16.mxu0 0
        %1696 = vmatpush1.bf16.xpose.msra.mxu0 0
        %1697 = vmatprep.subr.bf16.mxu0 0
        %1698 = vmatpush1.bf16.xpose.msra.mxu0 0
        %1699 = vmatprep.subr.bf16.mxu0 0
        %1700 = vmatpush1.bf16.xpose.msra.mxu0 0
        %1701 = vmatprep.subr.bf16.mxu0 0
        %1702 = vmatpush1.bf16.xpose.msra.mxu0 0
        %1703 = vmatprep.subr.bf16.mxu0 0
        %1704 = vmatpush1.bf16.xpose.msra.mxu0 %v1687
        %1705 = vmatprep.subr.bf16.mxu0 0
        %1706 = vmatpush2.bf16.xpose.msra.mxu0 0
        %1707 = vmatprep.subr.bf16.mxu0 0
        %1708 = vmatpush2.bf16.xpose.msra.mxu0 0
        %1709 = vmatprep.subr.bf16.mxu0 0
        %1710 = vmatpush2.bf16.xpose.msra.mxu0 0
        %1711 = vmatprep.subr.bf16.mxu0 0
        %1712 = vmatpush2.bf16.xpose.msra.mxu0 0
        %1713 = vmatprep.subr.bf16.mxu0 0
        %1714 = vmatpush2.bf16.xpose.msra.mxu0 0
        %1715 = vmatprep.subr.bf16.mxu0 0
        %1716 = vmatpush2.bf16.xpose.msra.mxu0 0
        %1717 = vmatprep.subr.bf16.mxu0 0
        %1718 = vmatpush2.bf16.xpose.msra.mxu0 0
        %1719 = vmatprep.subr.bf16.mxu0 0
        %1720 = vmatpush2.bf16.xpose.msra.mxu0 0
        %1721 = vmatprep.mubr.bf16.mxu0 0
        %1722 = vmatmul.mubr.bf16.gmra.mxu0 %v1684
        %v1723 = vpop.f32.mrf.mxu0
        %v1724 = vadd.f32 %v504, %v1723
        %v1725 = vpop.f32.mrf.mxu0
        %v1726 = vpop.f32.mrf.mxu0
        %v1727 = vpop.f32.mrf.mxu0
        %1728 = vdwg.mxu0
        %v1730 = vsel %vm765, %v1676, 0
        %v1733 = vsel %vm765, %v1680, 0
        %1735 = vmatprep.subr.bf16.mxu0 0
        %1736 = vmatpush1.bf16.xpose.msra.mxu0 0
        %1737 = vmatprep.subr.bf16.mxu0 0
        %1738 = vmatpush1.bf16.xpose.msra.mxu0 0
        %1739 = vmatprep.subr.bf16.mxu0 0
        %1740 = vmatpush1.bf16.xpose.msra.mxu0 0
        %1741 = vmatprep.subr.bf16.mxu0 0
        %1742 = vmatpush1.bf16.xpose.msra.mxu0 0
        %1743 = vmatprep.subr.bf16.mxu0 0
        %1744 = vmatpush1.bf16.xpose.msra.mxu0 0
        %1745 = vmatprep.subr.bf16.mxu0 0
        %1746 = vmatpush1.bf16.xpose.msra.mxu0 0
        %1747 = vmatprep.subr.bf16.mxu0 0
        %1748 = vmatpush1.bf16.xpose.msra.mxu0 0
        %1749 = vmatprep.subr.bf16.mxu0 0
        %1750 = vmatpush1.bf16.xpose.msra.mxu0 %v1733
        %1751 = vmatprep.subr.bf16.mxu0 0
        %1752 = vmatpush2.bf16.xpose.msra.mxu0 0
        %1753 = vmatprep.subr.bf16.mxu0 0
        %1754 = vmatpush2.bf16.xpose.msra.mxu0 0
        %1755 = vmatprep.subr.bf16.mxu0 0
        %1756 = vmatpush2.bf16.xpose.msra.mxu0 0
        %1757 = vmatprep.subr.bf16.mxu0 0
        %1758 = vmatpush2.bf16.xpose.msra.mxu0 0
        %1759 = vmatprep.subr.bf16.mxu0 0
        %1760 = vmatpush2.bf16.xpose.msra.mxu0 0
        %1761 = vmatprep.subr.bf16.mxu0 0
        %1762 = vmatpush2.bf16.xpose.msra.mxu0 0
        %1763 = vmatprep.subr.bf16.mxu0 0
        %1764 = vmatpush2.bf16.xpose.msra.mxu0 0
        %1765 = vmatprep.subr.bf16.mxu0 0
        %1766 = vmatpush2.bf16.xpose.msra.mxu0 0
        %1767 = vmatprep.mubr.bf16.mxu0 0
        %1768 = vmatmul.mubr.bf16.gmra.mxu0 %v1730
        %v1769 = vpop.f32.mrf.mxu0
        %v1770 = vadd.f32 %v504, %v1769
        %v1771 = vpop.f32.mrf.mxu0
        %v1772 = vpop.f32.mrf.mxu0
        %v1773 = vpop.f32.mrf.mxu0
        %1774 = vdwg.mxu0
        %v1776 = vsel %vm765, %v1677, 0
        %v1779 = vsel %vm765, %v1681, 0
        %1781 = vmatprep.subr.bf16.mxu0 0
        %1782 = vmatpush1.bf16.xpose.msra.mxu0 0
        %1783 = vmatprep.subr.bf16.mxu0 0
        %1784 = vmatpush1.bf16.xpose.msra.mxu0 0
        %1785 = vmatprep.subr.bf16.mxu0 0
        %1786 = vmatpush1.bf16.xpose.msra.mxu0 0
        %1787 = vmatprep.subr.bf16.mxu0 0
        %1788 = vmatpush1.bf16.xpose.msra.mxu0 0
        %1789 = vmatprep.subr.bf16.mxu0 0
        %1790 = vmatpush1.bf16.xpose.msra.mxu0 0
        %1791 = vmatprep.subr.bf16.mxu0 0
        %1792 = vmatpush1.bf16.xpose.msra.mxu0 0
        %1793 = vmatprep.subr.bf16.mxu0 0
        %1794 = vmatpush1.bf16.xpose.msra.mxu0 0
        %1795 = vmatprep.subr.bf16.mxu0 0
        %1796 = vmatpush1.bf16.xpose.msra.mxu0 %v1779
        %1797 = vmatprep.subr.bf16.mxu0 0
        %1798 = vmatpush2.bf16.xpose.msra.mxu0 0
        %1799 = vmatprep.subr.bf16.mxu0 0
        %1800 = vmatpush2.bf16.xpose.msra.mxu0 0
        %1801 = vmatprep.subr.bf16.mxu0 0
        %1802 = vmatpush2.bf16.xpose.msra.mxu0 0
        %1803 = vmatprep.subr.bf16.mxu0 0
        %1804 = vmatpush2.bf16.xpose.msra.mxu0 0
        %1805 = vmatprep.subr.bf16.mxu0 0
        %1806 = vmatpush2.bf16.xpose.msra.mxu0 0
        %1807 = vmatprep.subr.bf16.mxu0 0
        %1808 = vmatpush2.bf16.xpose.msra.mxu0 0
        %1809 = vmatprep.subr.bf16.mxu0 0
        %1810 = vmatpush2.bf16.xpose.msra.mxu0 0
        %1811 = vmatprep.subr.bf16.mxu0 0
        %1812 = vmatpush2.bf16.xpose.msra.mxu0 0
        %1813 = vmatprep.mubr.bf16.mxu0 0
        %1814 = vmatmul.mubr.bf16.gmra.mxu0 %v1776
        %v1815 = vpop.f32.mrf.mxu0
        %v1816 = vadd.f32 %v504, %v1815
        %v1817 = vpop.f32.mrf.mxu0
        %v1818 = vpop.f32.mrf.mxu0
        %v1819 = vpop.f32.mrf.mxu0
        %1820 = vdwg.mxu0
        %v1822 = vsel %vm765, %v1678, 0
        %v1825 = vsel %vm765, %v1682, 0
        %1827 = vmatprep.subr.bf16.mxu0 0
        %1828 = vmatpush1.bf16.xpose.msra.mxu0 0
        %1829 = vmatprep.subr.bf16.mxu0 0
        %1830 = vmatpush1.bf16.xpose.msra.mxu0 0
        %1831 = vmatprep.subr.bf16.mxu0 0
        %1832 = vmatpush1.bf16.xpose.msra.mxu0 0
        %1833 = vmatprep.subr.bf16.mxu0 0
        %1834 = vmatpush1.bf16.xpose.msra.mxu0 0
        %1835 = vmatprep.subr.bf16.mxu0 0
        %1836 = vmatpush1.bf16.xpose.msra.mxu0 0
        %1837 = vmatprep.subr.bf16.mxu0 0
        %1838 = vmatpush1.bf16.xpose.msra.mxu0 0
        %1839 = vmatprep.subr.bf16.mxu0 0
        %1840 = vmatpush1.bf16.xpose.msra.mxu0 0
        %1841 = vmatprep.subr.bf16.mxu0 0
        %1842 = vmatpush1.bf16.xpose.msra.mxu0 %v1825
        %1843 = vmatprep.subr.bf16.mxu0 0
        %1844 = vmatpush2.bf16.xpose.msra.mxu0 0
        %1845 = vmatprep.subr.bf16.mxu0 0
        %1846 = vmatpush2.bf16.xpose.msra.mxu0 0
        %1847 = vmatprep.subr.bf16.mxu0 0
        %1848 = vmatpush2.bf16.xpose.msra.mxu0 0
        %1849 = vmatprep.subr.bf16.mxu0 0
        %1850 = vmatpush2.bf16.xpose.msra.mxu0 0
        %1851 = vmatprep.subr.bf16.mxu0 0
        %1852 = vmatpush2.bf16.xpose.msra.mxu0 0
        %1853 = vmatprep.subr.bf16.mxu0 0
        %1854 = vmatpush2.bf16.xpose.msra.mxu0 0
        %1855 = vmatprep.subr.bf16.mxu0 0
        %1856 = vmatpush2.bf16.xpose.msra.mxu0 0
        %1857 = vmatprep.subr.bf16.mxu0 0
        %1858 = vmatpush2.bf16.xpose.msra.mxu0 0
        %1859 = vmatprep.mubr.bf16.mxu0 0
        %1860 = vmatmul.mubr.bf16.gmra.mxu0 %v1822
        %v1861 = vpop.f32.mrf.mxu0
        %v1862 = vadd.f32 %v504, %v1861
        %v1863 = vpop.f32.mrf.mxu0
        %v1864 = vpop.f32.mrf.mxu0
        %v1865 = vpop.f32.mrf.mxu0
        %1866 = vdwg.mxu0
        %v1867 = vsel %vm765, %v1724, -inf
        %1868 = vmax.xlane.f32.xlu0 %v1867
        %v1869 = vpop.xlane.xlu0 %1868
        %v1870 = vsel %vm765, %v1770, -inf
        %1871 = vmax.xlane.f32.xlu0 %v1870
        %v1872 = vpop.xlane.xlu0 %1871
        %v1873 = vsel %vm765, %v1816, -inf
        %1874 = vmax.xlane.f32.xlu0 %v1873
        %v1875 = vpop.xlane.xlu0 %1874
        %v1876 = vsel %vm765, %v1862, -inf
        %1877 = vmax.xlane.f32.xlu0 %v1876
        %v1878 = vpop.xlane.xlu0 %1877
        %v1879 = vsub.f32 %v1724, %v1869
        %v1880 = vsub.f32 %v1770, %v1872
        %v1881 = vsub.f32 %v1816, %v1875
        %v1882 = vsub.f32 %v1862, %v1878
        %v1883 = vmul.f32 %v1879, 1.442695
        %v1884 = vpow.pop %v1883
        %v1885 = vmul.f32 %v1880, 1.442695
        %v1886 = vpow.pop %v1885
        %v1887 = vmul.f32 %v1881, 1.442695
        %v1888 = vpow.pop %v1887
        %v1889 = vmul.f32 %v1882, 1.442695
        %v1890 = vpow.pop %v1889
        %v1891 = vsel %vm765, %v1884, 0.0
        %1892 = vadd.xlane.f32.xlu0 %v1891
        %v1893 = vpop.xlane.xlu0 %1892
        %v1894 = vsel %vm765, %v1886, 0.0
        %1895 = vadd.xlane.f32.xlu0 %v1894
        %v1896 = vpop.xlane.xlu0 %1895
        %v1897 = vsel %vm765, %v1888, 0.0
        %1898 = vadd.xlane.f32.xlu0 %v1897
        %v1899 = vpop.xlane.xlu0 %1898
        %v1900 = vsel %vm765, %v1890, 0.0
        %1901 = vadd.xlane.f32.xlu0 %v1900
        %v1902 = vpop.xlane.xlu0 %1901
        %v1903 = vrcp.pop %v1893
        %v1904 = vrcp.pop %v1896
        %v1905 = vrcp.pop %v1899
        %v1906 = vrcp.pop %v1902
        %v1907 = vmul.f32 %v1884, %v1903
        %v1908 = vmul.f32 %v1886, %v1904
        %v1909 = vmul.f32 %v1888, %v1905
        %v1910 = vmul.f32 %v1890, %v1906
        %v1911 = vpack.c.bf16 %v1907, %v1907
        %v1912 = vpack.c.bf16 %v1908, %v1908
        %v1913 = vpack.c.bf16 %v1909, %v1909
        %v1914 = vpack.c.bf16 %v1910, %v1910
        %v1915 = vpack.c.bf16 %v1516, %v1516
        %v1916 = vpack.c.bf16 %v1523, %v1523
        %v1917 = vpack.c.bf16 %v1526, %v1526
        %v1918 = vpack.c.bf16 %v1529, %v1529
        %1920 = vrot.lane.b32.xlu0 %v1915, 112
        %v1921 = vpop.permute.xlu0 %1920
        %v1923 = vsel %vm765, %v1911, 0
        %v1926 = vsel %vm1008, %v1921, 0
        %1928 = vmatprep.subr.bf16.mxu0 0
        %1929 = vmatpush1.bf16.msra.mxu0 0
        %1930 = vmatprep.subr.bf16.mxu0 0
        %1931 = vmatpush1.bf16.msra.mxu0 0
        %1932 = vmatprep.subr.bf16.mxu0 0
        %1933 = vmatpush1.bf16.msra.mxu0 0
        %1934 = vmatprep.subr.bf16.mxu0 0
        %1935 = vmatpush1.bf16.msra.mxu0 0
        %1936 = vmatprep.subr.bf16.mxu0 0
        %1937 = vmatpush1.bf16.msra.mxu0 0
        %1938 = vmatprep.subr.bf16.mxu0 0
        %1939 = vmatpush1.bf16.msra.mxu0 0
        %1940 = vmatprep.subr.bf16.mxu0 0
        %1941 = vmatpush1.bf16.msra.mxu0 0
        %1942 = vmatprep.subr.bf16.mxu0 0
        %1943 = vmatpush1.bf16.msra.mxu0 %v1926
        %1944 = vmatprep.subr.bf16.mxu0 0
        %1945 = vmatpush2.bf16.msra.mxu0 0
        %1946 = vmatprep.subr.bf16.mxu0 0
        %1947 = vmatpush2.bf16.msra.mxu0 0
        %1948 = vmatprep.subr.bf16.mxu0 0
        %1949 = vmatpush2.bf16.msra.mxu0 0
        %1950 = vmatprep.subr.bf16.mxu0 0
        %1951 = vmatpush2.bf16.msra.mxu0 0
        %1952 = vmatprep.subr.bf16.mxu0 0
        %1953 = vmatpush2.bf16.msra.mxu0 0
        %1954 = vmatprep.subr.bf16.mxu0 0
        %1955 = vmatpush2.bf16.msra.mxu0 0
        %1956 = vmatprep.subr.bf16.mxu0 0
        %1957 = vmatpush2.bf16.msra.mxu0 0
        %1958 = vmatprep.subr.bf16.mxu0 0
        %1959 = vmatpush2.bf16.msra.mxu0 0
        %1960 = vmatprep.mubr.bf16.mxu0 0
        %1961 = vmatmul.mubr.bf16.gmra.mxu0 %v1923
        %v1962 = vpop.f32.mrf.mxu0
        %v1963 = vadd.f32 0.0, %v1962
        %v1964 = vpop.f32.mrf.mxu0
        %v1965 = vpop.f32.mrf.mxu0
        %v1966 = vpop.f32.mrf.mxu0
        %1967 = vdwg.mxu0
        %1969 = vrot.lane.b32.xlu0 %v1916, 112
        %v1970 = vpop.permute.xlu0 %1969
        %v1972 = vsel %vm765, %v1912, 0
        %v1975 = vsel %vm1008, %v1970, 0
        %1977 = vmatprep.subr.bf16.mxu0 0
        %1978 = vmatpush1.bf16.msra.mxu0 0
        %1979 = vmatprep.subr.bf16.mxu0 0
        %1980 = vmatpush1.bf16.msra.mxu0 0
        %1981 = vmatprep.subr.bf16.mxu0 0
        %1982 = vmatpush1.bf16.msra.mxu0 0
        %1983 = vmatprep.subr.bf16.mxu0 0
        %1984 = vmatpush1.bf16.msra.mxu0 0
        %1985 = vmatprep.subr.bf16.mxu0 0
        %1986 = vmatpush1.bf16.msra.mxu0 0
        %1987 = vmatprep.subr.bf16.mxu0 0
        %1988 = vmatpush1.bf16.msra.mxu0 0
        %1989 = vmatprep.subr.bf16.mxu0 0
        %1990 = vmatpush1.bf16.msra.mxu0 0
        %1991 = vmatprep.subr.bf16.mxu0 0
        %1992 = vmatpush1.bf16.msra.mxu0 %v1975
        %1993 = vmatprep.subr.bf16.mxu0 0
        %1994 = vmatpush2.bf16.msra.mxu0 0
        %1995 = vmatprep.subr.bf16.mxu0 0
        %1996 = vmatpush2.bf16.msra.mxu0 0
        %1997 = vmatprep.subr.bf16.mxu0 0
        %1998 = vmatpush2.bf16.msra.mxu0 0
        %1999 = vmatprep.subr.bf16.mxu0 0
        %2000 = vmatpush2.bf16.msra.mxu0 0
        %2001 = vmatprep.subr.bf16.mxu0 0
        %2002 = vmatpush2.bf16.msra.mxu0 0
        %2003 = vmatprep.subr.bf16.mxu0 0
        %2004 = vmatpush2.bf16.msra.mxu0 0
        %2005 = vmatprep.subr.bf16.mxu0 0
        %2006 = vmatpush2.bf16.msra.mxu0 0
        %2007 = vmatprep.subr.bf16.mxu0 0
        %2008 = vmatpush2.bf16.msra.mxu0 0
        %2009 = vmatprep.mubr.bf16.mxu0 0
        %2010 = vmatmul.mubr.bf16.gmra.mxu0 %v1972
        %v2011 = vpop.f32.mrf.mxu0
        %v2012 = vadd.f32 0.0, %v2011
        %v2013 = vpop.f32.mrf.mxu0
        %v2014 = vpop.f32.mrf.mxu0
        %v2015 = vpop.f32.mrf.mxu0
        %2016 = vdwg.mxu0
        %2018 = vrot.lane.b32.xlu0 %v1917, 112
        %v2019 = vpop.permute.xlu0 %2018
        %v2021 = vsel %vm765, %v1913, 0
        %v2024 = vsel %vm1008, %v2019, 0
        %2026 = vmatprep.subr.bf16.mxu0 0
        %2027 = vmatpush1.bf16.msra.mxu0 0
        %2028 = vmatprep.subr.bf16.mxu0 0
        %2029 = vmatpush1.bf16.msra.mxu0 0
        %2030 = vmatprep.subr.bf16.mxu0 0
        %2031 = vmatpush1.bf16.msra.mxu0 0
        %2032 = vmatprep.subr.bf16.mxu0 0
        %2033 = vmatpush1.bf16.msra.mxu0 0
        %2034 = vmatprep.subr.bf16.mxu0 0
        %2035 = vmatpush1.bf16.msra.mxu0 0
        %2036 = vmatprep.subr.bf16.mxu0 0
        %2037 = vmatpush1.bf16.msra.mxu0 0
        %2038 = vmatprep.subr.bf16.mxu0 0
        %2039 = vmatpush1.bf16.msra.mxu0 0
        %2040 = vmatprep.subr.bf16.mxu0 0
        %2041 = vmatpush1.bf16.msra.mxu0 %v2024
        %2042 = vmatprep.subr.bf16.mxu0 0
        %2043 = vmatpush2.bf16.msra.mxu0 0
        %2044 = vmatprep.subr.bf16.mxu0 0
        %2045 = vmatpush2.bf16.msra.mxu0 0
        %2046 = vmatprep.subr.bf16.mxu0 0
        %2047 = vmatpush2.bf16.msra.mxu0 0
        %2048 = vmatprep.subr.bf16.mxu0 0
        %2049 = vmatpush2.bf16.msra.mxu0 0
        %2050 = vmatprep.subr.bf16.mxu0 0
        %2051 = vmatpush2.bf16.msra.mxu0 0
        %2052 = vmatprep.subr.bf16.mxu0 0
        %2053 = vmatpush2.bf16.msra.mxu0 0
        %2054 = vmatprep.subr.bf16.mxu0 0
        %2055 = vmatpush2.bf16.msra.mxu0 0
        %2056 = vmatprep.subr.bf16.mxu0 0
        %2057 = vmatpush2.bf16.msra.mxu0 0
        %2058 = vmatprep.mubr.bf16.mxu0 0
        %2059 = vmatmul.mubr.bf16.gmra.mxu0 %v2021
        %v2060 = vpop.f32.mrf.mxu0
        %v2061 = vadd.f32 0.0, %v2060
        %v2062 = vpop.f32.mrf.mxu0
        %v2063 = vpop.f32.mrf.mxu0
        %v2064 = vpop.f32.mrf.mxu0
        %2065 = vdwg.mxu0
        %2067 = vrot.lane.b32.xlu0 %v1918, 112
        %v2068 = vpop.permute.xlu0 %2067
        %v2070 = vsel %vm765, %v1914, 0
        %v2073 = vsel %vm1008, %v2068, 0
        %2075 = vmatprep.subr.bf16.mxu0 0
        %2076 = vmatpush1.bf16.msra.mxu0 0
        %2077 = vmatprep.subr.bf16.mxu0 0
        %2078 = vmatpush1.bf16.msra.mxu0 0
        %2079 = vmatprep.subr.bf16.mxu0 0
        %2080 = vmatpush1.bf16.msra.mxu0 0
        %2081 = vmatprep.subr.bf16.mxu0 0
        %2082 = vmatpush1.bf16.msra.mxu0 0
        %2083 = vmatprep.subr.bf16.mxu0 0
        %2084 = vmatpush1.bf16.msra.mxu0 0
        %2085 = vmatprep.subr.bf16.mxu0 0
        %2086 = vmatpush1.bf16.msra.mxu0 0
        %2087 = vmatprep.subr.bf16.mxu0 0
        %2088 = vmatpush1.bf16.msra.mxu0 0
        %2089 = vmatprep.subr.bf16.mxu0 0
        %2090 = vmatpush1.bf16.msra.mxu0 %v2073
        %2091 = vmatprep.subr.bf16.mxu0 0
        %2092 = vmatpush2.bf16.msra.mxu0 0
        %2093 = vmatprep.subr.bf16.mxu0 0
        %2094 = vmatpush2.bf16.msra.mxu0 0
        %2095 = vmatprep.subr.bf16.mxu0 0
        %2096 = vmatpush2.bf16.msra.mxu0 0
        %2097 = vmatprep.subr.bf16.mxu0 0
        %2098 = vmatpush2.bf16.msra.mxu0 0
        %2099 = vmatprep.subr.bf16.mxu0 0
        %2100 = vmatpush2.bf16.msra.mxu0 0
        %2101 = vmatprep.subr.bf16.mxu0 0
        %2102 = vmatpush2.bf16.msra.mxu0 0
        %2103 = vmatprep.subr.bf16.mxu0 0
        %2104 = vmatpush2.bf16.msra.mxu0 0
        %2105 = vmatprep.subr.bf16.mxu0 0
        %2106 = vmatpush2.bf16.msra.mxu0 0
        %2107 = vmatprep.mubr.bf16.mxu0 0
        %2108 = vmatmul.mubr.bf16.gmra.mxu0 %v2070
        %v2109 = vpop.f32.mrf.mxu0
        %v2110 = vadd.f32 0.0, %v2109
        %v2111 = vpop.f32.mrf.mxu0
        %v2112 = vpop.f32.mrf.mxu0
        %v2113 = vpop.f32.mrf.mxu0
        %2114 = vdwg.mxu0
        %2116 = vrot.lane.b32.xlu0 %v2012, 8
        %v2117 = vpop.permute.xlu0 %2116
        %2120 = vrot.lane.b32.xlu0 %v2061, 16
        %v2121 = vpop.permute.xlu0 %2120
        %2124 = vrot.lane.b32.xlu0 %v2110, 24
        %v2125 = vpop.permute.xlu0 %2124
        %v2127 = vsel %vm765, %v1963, %v2117
        %v2128 = vsel %vm1212, %v2127, %v2121
        %v2129 = vsel %vm1214, %v2128, %v2125
        %v2130 = vpack.c.bf16 %v2129, %v2129
        %s2131 = scalar_lea.vmem %s5, 16
        %v2132 = vld [vmem:[%s2131] sm:$0xf]
        %v2133 = vld [vmem:[%s2131 + $0x4] sm:$0xf]
        %v2134 = vld [vmem:[%s2131 + $0x8] sm:$0xf]
        %v2135 = vld [vmem:[%s2131 + $0xc] sm:$0xf]
        %v2140 = vunpack.c.l.b16 %v2132
        %v2141 = vunpack.c.l.b16 %v2133
        %v2142 = vunpack.c.l.b16 %v2134
        %v2143 = vunpack.c.l.b16 %v2135
        %v2144 = vpack.c.b16 %v2141, %v2140
        %v2145 = vpack.c.b16 %v2143, %v2142
        %v2149 = vsel %vm479, %v2130, 0
        %2151 = vmatprep.subr.bf16.mxu0 0
        %2152 = vmatpush1.bf16.msra.mxu0 0
        %2153 = vmatprep.subr.bf16.mxu0 0
        %2154 = vmatpush1.bf16.msra.mxu0 0
        %2155 = vmatprep.subr.bf16.mxu0 0
        %2156 = vmatpush1.bf16.msra.mxu0 0
        %2157 = vmatprep.subr.bf16.mxu0 0
        %2158 = vmatpush1.bf16.msra.mxu0 0
        %2159 = vmatprep.subr.bf16.mxu0 0
        %2160 = vmatpush1.bf16.msra.mxu0 0
        %2161 = vmatprep.subr.bf16.mxu0 0
        %2162 = vmatpush1.bf16.msra.mxu0 0
        %2163 = vmatprep.subr.bf16.mxu0 0
        %2164 = vmatpush1.bf16.msra.mxu0 %v2145
        %2165 = vmatprep.subr.bf16.mxu0 0
        %2166 = vmatpush1.bf16.msra.mxu0 %v2144
        %2167 = vmatprep.subr.bf16.mxu0 0
        %2168 = vmatpush2.bf16.msra.mxu0 0
        %2169 = vmatprep.subr.bf16.mxu0 0
        %2170 = vmatpush2.bf16.msra.mxu0 0
        %2171 = vmatprep.subr.bf16.mxu0 0
        %2172 = vmatpush2.bf16.msra.mxu0 0
        %2173 = vmatprep.subr.bf16.mxu0 0
        %2174 = vmatpush2.bf16.msra.mxu0 0
        %2175 = vmatprep.subr.bf16.mxu0 0
        %2176 = vmatpush2.bf16.msra.mxu0 0
        %2177 = vmatprep.subr.bf16.mxu0 0
        %2178 = vmatpush2.bf16.msra.mxu0 0
        %2179 = vmatprep.subr.bf16.mxu0 0
        %2180 = vmatpush2.bf16.msra.mxu0 0
        %2181 = vmatprep.subr.bf16.mxu0 0
        %2182 = vmatpush2.bf16.msra.mxu0 0
        %2183 = vmatprep.mubr.bf16.mxu0 0
        %2184 = vmatmul.mubr.bf16.gmra.mxu0 %v2149
        %v2185 = vpop.f32.mrf.mxu0
        %v2186 = vadd.f32 0.0, %v2185
        %v2187 = vpop.f32.mrf.mxu0
        %v2188 = vpop.f32.mrf.mxu0
        %v2189 = vpop.f32.mrf.mxu0
        %2190 = vdwg.mxu0
        %v2191 = vadd.f32 %v1442, %v2186
        %s2192 = scalar_lea.vmem %s6, 1
        %v2193 = vld [vmem:[%s2192] sm:$0x1]
        %v2194 = vmul.f32 %v2191, %v2191
        %v2195 = vsel %vm479, %v2194, 0.0
        %2196 = vadd.xlane.f32.xlu0 %v2195
        %v2197 = vpop.xlane.xlu0 %2196
        %v2198 = vmul.f32 %v2197, %v512
        %v2199 = vadd.f32 %v2198, 1e-05
        %v2200 = vrsqrt.pop %v2199
        %v2201 = vmul.f32 %v2191, %v2200
        %v2203 = vlaneseq
        %v2204 = vshrl.u32 %v2203, 7
        %v2205 = vsub.s32 0, %v2204
        %v2206 = vrot.slane %v2193, %v2205
        %v2208 = vmul.f32 %v2206, %v2201
        %v2209 = vpack.c.bf16 %v2208, %v2208
        %s2210 = scalar_lea.vmem %s7, 16
        %v2211 = vld [vmem:[%s2210] sm:$0xf]
        %v2212 = vld [vmem:[%s2210 + $0x4] sm:$0xf]
        %v2213 = vld [vmem:[%s2210 + $0x8] sm:$0xf]
        %v2214 = vld [vmem:[%s2210 + $0xc] sm:$0xf]
        %v2219 = vunpack.c.l.b16 %v2211
        %v2220 = vunpack.c.l.b16 %v2212
        %v2221 = vunpack.c.l.b16 %v2213
        %v2222 = vunpack.c.l.b16 %v2214
        %v2223 = vpack.c.b16 %v2220, %v2219
        %v2224 = vpack.c.b16 %v2222, %v2221
        %v2228 = vsel %vm479, %v2209, 0
        %2230 = vmatprep.subr.bf16.mxu0 0
        %2231 = vmatpush1.bf16.msra.mxu0 0
        %2232 = vmatprep.subr.bf16.mxu0 0
        %2233 = vmatpush1.bf16.msra.mxu0 0
        %2234 = vmatprep.subr.bf16.mxu0 0
        %2235 = vmatpush1.bf16.msra.mxu0 0
        %2236 = vmatprep.subr.bf16.mxu0 0
        %2237 = vmatpush1.bf16.msra.mxu0 0
        %2238 = vmatprep.subr.bf16.mxu0 0
        %2239 = vmatpush1.bf16.msra.mxu0 0
        %2240 = vmatprep.subr.bf16.mxu0 0
        %2241 = vmatpush1.bf16.msra.mxu0 0
        %2242 = vmatprep.subr.bf16.mxu0 0
        %2243 = vmatpush1.bf16.msra.mxu0 %v2224
        %2244 = vmatprep.subr.bf16.mxu0 0
        %2245 = vmatpush1.bf16.msra.mxu0 %v2223
        %2246 = vmatprep.subr.bf16.mxu0 0
        %2247 = vmatpush2.bf16.msra.mxu0 0
        %2248 = vmatprep.subr.bf16.mxu0 0
        %2249 = vmatpush2.bf16.msra.mxu0 0
        %2250 = vmatprep.subr.bf16.mxu0 0
        %2251 = vmatpush2.bf16.msra.mxu0 0
        %2252 = vmatprep.subr.bf16.mxu0 0
        %2253 = vmatpush2.bf16.msra.mxu0 0
        %2254 = vmatprep.subr.bf16.mxu0 0
        %2255 = vmatpush2.bf16.msra.mxu0 0
        %2256 = vmatprep.subr.bf16.mxu0 0
        %2257 = vmatpush2.bf16.msra.mxu0 0
        %2258 = vmatprep.subr.bf16.mxu0 0
        %2259 = vmatpush2.bf16.msra.mxu0 0
        %2260 = vmatprep.subr.bf16.mxu0 0
        %2261 = vmatpush2.bf16.msra.mxu0 0
        %2262 = vmatprep.mubr.bf16.mxu0 0
        %2263 = vmatmul.mubr.bf16.gmra.mxu0 %v2228
        %v2264 = vpop.f32.mrf.mxu0
        %v2265 = vadd.f32 0.0, %v2264
        %v2266 = vpop.f32.mrf.mxu0
        %v2267 = vpop.f32.mrf.mxu0
        %v2268 = vpop.f32.mrf.mxu0
        %2269 = vdwg.mxu0
        %v2270 = vxor.u32 %v2265, 2147483648
        %v2271 = vmul.f32 %v2270, 1.442695
        %v2272 = vpow.pop %v2271
        %v2273 = vadd.f32 %v2272, 1.0
        %v2274 = vrcp.pop %v2273
        %v2275 = vmul.f32 1.0, %v2274
        %v2276 = vmul.f32 %v2265, %v2275
        %2278 = vrot.lane.b32.xlu0 %v2265, 64
        %v2279 = vpop.permute.xlu0 %2278
        %v2281 = vmul.f32 %v2276, %v2279
        %v2282 = vpack.c.bf16 %v2281, %v2281
        %s2283 = scalar_lea.vmem %s8, 32
        %v2284 = vld [vmem:[%s2283] sm:$0xf]
        %v2285 = vld [vmem:[%s2283 + $0x4] sm:$0xf]
        %v2286 = vld [vmem:[%s2283 + $0x8] sm:$0xf]
        %v2287 = vld [vmem:[%s2283 + $0xc] sm:$0xf]
        %v2288 = vld [vmem:[%s2283 + $0x10] sm:$0xf]
        %v2289 = vld [vmem:[%s2283 + $0x14] sm:$0xf]
        %v2290 = vld [vmem:[%s2283 + $0x18] sm:$0xf]
        %v2291 = vld [vmem:[%s2283 + $0x1c] sm:$0xf]
        %v2300 = vunpack.c.l.b16 %v2284
        %v2301 = vunpack.c.l.b16 %v2285
        %v2302 = vunpack.c.l.b16 %v2286
        %v2303 = vunpack.c.l.b16 %v2287
        %v2304 = vunpack.c.l.b16 %v2288
        %v2305 = vunpack.c.l.b16 %v2289
        %v2306 = vunpack.c.l.b16 %v2290
        %v2307 = vunpack.c.l.b16 %v2291
        %v2308 = vpack.c.b16 %v2301, %v2300
        %v2309 = vpack.c.b16 %v2303, %v2302
        %v2310 = vpack.c.b16 %v2305, %v2304
        %v2311 = vpack.c.b16 %v2307, %v2306
        %v2317 = vsel %vm1398, %v2282, 0
        %2319 = vmatprep.subr.bf16.mxu0 0
        %2320 = vmatpush1.bf16.msra.mxu0 0
        %2321 = vmatprep.subr.bf16.mxu0 0
        %2322 = vmatpush1.bf16.msra.mxu0 0
        %2323 = vmatprep.subr.bf16.mxu0 0
        %2324 = vmatpush1.bf16.msra.mxu0 0
        %2325 = vmatprep.subr.bf16.mxu0 0
        %2326 = vmatpush1.bf16.msra.mxu0 0
        %2327 = vmatprep.subr.bf16.mxu0 0
        %2328 = vmatpush1.bf16.msra.mxu0 %v2311
        %2329 = vmatprep.subr.bf16.mxu0 0
        %2330 = vmatpush1.bf16.msra.mxu0 %v2310
        %2331 = vmatprep.subr.bf16.mxu0 0
        %2332 = vmatpush1.bf16.msra.mxu0 %v2309
        %2333 = vmatprep.subr.bf16.mxu0 0
        %2334 = vmatpush1.bf16.msra.mxu0 %v2308
        %2335 = vmatprep.subr.bf16.mxu0 0
        %2336 = vmatpush2.bf16.msra.mxu0 0
        %2337 = vmatprep.subr.bf16.mxu0 0
        %2338 = vmatpush2.bf16.msra.mxu0 0
        %2339 = vmatprep.subr.bf16.mxu0 0
        %2340 = vmatpush2.bf16.msra.mxu0 0
        %2341 = vmatprep.subr.bf16.mxu0 0
        %2342 = vmatpush2.bf16.msra.mxu0 0
        %2343 = vmatprep.subr.bf16.mxu0 0
        %2344 = vmatpush2.bf16.msra.mxu0 0
        %2345 = vmatprep.subr.bf16.mxu0 0
        %2346 = vmatpush2.bf16.msra.mxu0 0
        %2347 = vmatprep.subr.bf16.mxu0 0
        %2348 = vmatpush2.bf16.msra.mxu0 0
        %2349 = vmatprep.subr.bf16.mxu0 0
        %2350 = vmatpush2.bf16.msra.mxu0 0
        %2351 = vmatprep.mubr.bf16.mxu0 0
        %2352 = vmatmul.mubr.bf16.gmra.mxu0 %v2317
        %v2353 = vpop.f32.mrf.mxu0
        %v2354 = vadd.f32 0.0, %v2353
        %v2355 = vpop.f32.mrf.mxu0
        %v2356 = vpop.f32.mrf.mxu0
        %v2357 = vpop.f32.mrf.mxu0
        %2358 = vdwg.mxu0
        %v2359 = vadd.f32 %v2191, %v2354
        %2360 = vst.msk [vmem:[%s456] sm:$0xff] %vm479, %v2359
        %s2361 = sand.u32 %s277, 1
        %s2362 = scalar_lea.sflag [#allocation5], %s2361
        %s2363 = sand.u32 %s277, 1
        %s2364 = smul.addr %s2363, 8
        %s2365 = scalar_lea.vmem [#allocation9], %s2364
        %p2366 = scmp.lt.s32.totalorder %s33, 1
        %s2367 = scalar_select %p2366, %s33, 1
        %s2368 = smul.addr %s2367, 8
        %s2369 = scalar_lea.vmem %s12, %s2368
        // Predicated region
        $region77: #{tpu_custom_call.1} parent=63 // pred_check
          %p2370 = pneg %p287
        $region78: #{tpu_custom_call.1} parent=63 // pred_check_branch
          %2372 = sbr.rel (%p2370) target = $region80
        $region79: #{tpu_custom_call.1} parent=63 // pred_region
          %s2374 = ssub.s32 128, 128
          %2375 = vsyncadd %s2362, %s2374
          %s2376 = smul.addr %s33, 128
          %s2377 = scalar_lea.hbm %s11, %s2376
          %s2379 = sshll.u32 %s2365, 4
          %s2380 = int_to_ptr.vmem [resolvable:$true] %s2379
          %2382 = dma.vmem_to_hbm [thread:$0]  %s2380, 128, %s2377, %s2362
        $region80: #{tpu_custom_call.1} parent=63 // pred_fallthru
          _
        // Predicated region
        $region81: #{tpu_custom_call.1} parent=63 // pred_check
          %p2383 = pneg %p313
        $region82: #{tpu_custom_call.1} parent=63 // pred_check_branch
          %2385 = sbr.rel (%p2383) target = $region84
        $region83: #{tpu_custom_call.1} parent=63 // pred_region
          _
        $region84: #{tpu_custom_call.1} parent=63 // pred_fallthru
          _
      $region64: #{tpu_custom_call.1} parent=5 // pred_fallthru
        _
      %p2386 = scmp.le.s32.totalorder 2, %s28
      // Predicated region
      $region85: #{tpu_custom_call.1} parent=5 // pred_check
        %p2387 = pneg %p2386
      $region86: #{tpu_custom_call.1} parent=5 // pred_check_branch
        %2389 = sbr.rel (%p2387) target = $region88
      $region87: #{tpu_custom_call.1} parent=5 // pred_region
        %s2390 = ssub.s32 %s28, 2
        // Predicated region
        $region89: #{tpu_custom_call.1} parent=87 // pred_check
          %p2391 = pneg %p293
        $region90: #{tpu_custom_call.1} parent=87 // pred_check_branch
          %2393 = sbr.rel (%p2391) target = $region92
        $region91: #{tpu_custom_call.1} parent=87 // pred_region
          %s2394 = sand.u32 %s278, 1
          %s2395 = scalar_lea.sflag [#allocation5], %s2394
          %s2396 = sand.u32 %s278, 1
          %s2397 = smul.addr %s2396, 8
          %s2398 = scalar_lea.vmem [#allocation9], %s2397
          %2399 = dma.done %s2395, 128
        $region92: #{tpu_custom_call.1} parent=87 // pred_fallthru
          _
        // Predicated region
        $region93: #{tpu_custom_call.1} parent=87 // pred_check
          %p2400 = pneg %p319
        $region94: #{tpu_custom_call.1} parent=87 // pred_check_branch
          %2402 = sbr.rel (%p2400) target = $region96
        $region95: #{tpu_custom_call.1} parent=87 // pred_region
          %p2403 = scmp.lt.s32.totalorder %s34, 1
          %s2404 = scalar_select %p2403, %s34, 1
          %s2405 = smul.addr %s2404, 8
          %s2406 = scalar_lea.vmem %s12, %s2405
        $region96: #{tpu_custom_call.1} parent=87 // pred_fallthru
          _
      $region88: #{tpu_custom_call.1} parent=5 // pred_fallthru
        _
    $region6: #{tpu_custom_call.1} parent=1 // loop_footer
      %s32 = sadd.s32 1, %s28
    $region7: #{tpu_custom_call.1} parent=1 // loop_footer_branch
      %27 = sbr.rel target = $region3
    $region8: #{tpu_custom_call.1} parent=1 // loop_exit
      _
    %2407 = vsyncpa [#allocation4], 1
    %s2408 = scalar_lea.sflag [#allocation4], 1
    %2409 = vsyncpa %s2408, 1
    %2410 = vsyncpa [#allocation7], 1
    %2411 = vsyncpa [#allocation5], 1
    %s2412 = scalar_lea.sflag [#allocation5], 1
    %2413 = vsyncpa %s2412, 1

</llo_original>
